<compile_context>
chip_gen: v7x
topology: tpu7x:2x2x1
jax: 0.10.0
libtpu: 0.0.40
codegen_flags: <defaults>
</compile_context>

<pallas_src>
import jax
import jax.numpy as jnp
import numpy as np
from jax.experimental import pallas as pl
from jax.experimental.pallas import tpu as pltpu

NUM_ITERS = 5          # ConvGRUDecoder.num_iters
OUT_LANES = 128        # lane-dense output width (flow lives in the first 3 columns)
_INV_SQRT2 = 0.7071067811865476


def _gelu_exact(x):
    # Matches torch.nn.GELU() default (approximate='none').
    return 0.5 * x * (1.0 + jax.lax.erf(x * _INV_SQRT2))


def convgru_decoder_kernel(feat_ref, wx_ref, bx_ref, wzr_h_ref, wq_h_ref,
                           wd1_h_ref, wd2_ref, bd2_ref, out_ref):
    c = wx_ref.shape[0]            # C (pseudoimage channels)
    two_c = 2 * c

    feat = feat_ref[...]                        # (tm, 3C) f32: [before|after voxel feats | offset feats]
    h = feat[:, :two_c]                         # (tm, 2C) initial hidden state (f32)
    x = feat[:, two_c:].astype(jnp.bfloat16)    # (tm, C)  offset-encoder features

    # Loop-invariant fused x-projection: columns = [zx | rx | qx | d1x], biases folded in.
    xproj = jnp.dot(x, wx_ref[...], preferred_element_type=jnp.float32) + bx_ref[...]
    zrx = xproj[:, : 2 * two_c]                 # (tm, 4C)
    qx = xproj[:, 2 * two_c: 3 * two_c]         # (tm, 2C)
    d1x = xproj[:, 3 * two_c:]                  # (tm, C//2)

    wzr_h = wzr_h_ref[...]                      # (2C, 4C) bf16  (z|r fused)
    wq_h = wq_h_ref[...]                        # (2C, 2C) bf16

    for _ in range(NUM_ITERS):                  # static unroll (num_iters = 5)
        zr = jax.nn.sigmoid(
            jnp.dot(h.astype(jnp.bfloat16), wzr_h, preferred_element_type=jnp.float32) + zrx)
        z = zr[:, :two_c]
        r = zr[:, two_c:]
        q = jnp.tanh(
            jnp.dot((r * h).astype(jnp.bfloat16), wq_h, preferred_element_type=jnp.float32) + qx)
        h = (1.0 - z) * h + z * q               # elementwise update stays f32

    # decoder: Linear(3C, C//2) -> GELU -> Linear(C//2, 3)  (output zero-padded to 128 lanes)
    d1 = _gelu_exact(
        jnp.dot(h.astype(jnp.bfloat16), wd1_h_ref[...], preferred_element_type=jnp.float32) + d1x)
    flow = jnp.dot(d1.astype(jnp.bfloat16), wd2_ref[...],
                   preferred_element_type=jnp.float32) + bd2_ref[...]
    out_ref[...] = flow.astype(out_ref.dtype)


def _choose_tm(n, tm_max=512, tm_min=128):
    # Keep >=2 grid steps (megacore / v7x dual TensorCore) when possible, else shrink.
    tm = tm_max
    while tm > tm_min and pl.cdiv(n, tm) < 2:
        tm //= 2
    return tm


def _fused_weights(params):
    C = params["woff"].shape[1]
    half_c = C // 2
    # Fused loop-invariant x-projection weights + biases: [z | r | q | d1].
    wx = jnp.concatenate(
        [params["wz_x"], params["wr_x"], params["wq_x"], params["wd1_x"]], axis=1
    ).astype(jnp.bfloat16)                                                       # (C, 6C + C//2)
    bx = jnp.concatenate(
        [params["bz"], params["br"], params["bq"], params["bd1"]], axis=1)       # (1, 6C + C//2)
    # Fused z|r hidden-state weight -> one wide MXU op per GRU iteration.
    wzr_h = jnp.concatenate([params["wz_h"], params["wr_h"]], axis=1).astype(jnp.bfloat16)  # (2C, 4C)
    wq_h = params["wq_h"].astype(jnp.bfloat16)                                   # (2C, 2C)
    wd1_h = params["wd1_h"].astype(jnp.bfloat16)                                 # (2C, C//2)
    # Lane-dense final projection: zero-pad the 3 flow columns to 128.
    wd2 = jnp.zeros((half_c, OUT_LANES), jnp.float32).at[:, :3].set(params["wd2"]).astype(jnp.bfloat16)
    bd2 = jnp.zeros((1, OUT_LANES), jnp.float32).at[:, :3].set(params["bd2"])
    return wx, bx, wzr_h, wq_h, wd1_h, wd2, bd2


def decode_points(params, hv, x, *, tm_max=512):
    """GRU + decoder Pallas kernel over packed per-point features.

    hv: (N, 2C) gathered voxel features; x: (N, C) offset-encoder features.
    """
    n = hv.shape[0]
    C = x.shape[1]
    feat = jnp.concatenate([hv, x], axis=1)                  # (N, 3C)

    tm = _choose_tm(n, tm_max)
    n_pad = pl.cdiv(n, tm) * tm
    feat = jnp.pad(feat, ((0, n_pad - n), (0, 0)))

    wx, bx, wzr_h, wq_h, wd1_h, wd2, bd2 = _fused_weights(params)

    def full(a):  # whole-array block, resident across all grid steps
        return pl.BlockSpec(a.shape, lambda i: (0, 0))

    flow = pl.pallas_call(
        convgru_decoder_kernel,
        out_shape=jax.ShapeDtypeStruct((n_pad, OUT_LANES), jnp.float32),
        grid_spec=pltpu.PrefetchScalarGridSpec(
            num_scalar_prefetch=0,
            grid=(n_pad // tm,),
            in_specs=[
                pl.BlockSpec((tm, 3 * C), lambda i: (i, 0)),
                full(wx), full(bx), full(wzr_h), full(wq_h),
                full(wd1_h), full(wd2), full(bd2),
            ],
            out_specs=pl.BlockSpec((tm, OUT_LANES), lambda i: (i, 0)),
        ),
        compiler_params=pltpu.CompilerParams(dimension_semantics=("parallel",)),
    )(feat, wx, bx, wzr_h, wq_h, wd1_h, wd2, bd2)
    return flow[:n, :3]


def forward(params, before_pseudoimages, after_pseudoimages, voxelizer_infos, *, tm_max=512):
    """ConvGRUDecoder.forward: per-sample gather + offset encoding in XLA, then one
    batched pallas_call over all points of all samples."""
    C = params["woff"].shape[1]
    B, _, H, W = before_pseudoimages.shape

    # Lane-dense (H*W, C) layout so the voxel lookup is a cheap row gather.
    before_flat = before_pseudoimages.reshape(B, C, H * W).transpose(0, 2, 1)
    after_flat = after_pseudoimages.reshape(B, C, H * W).transpose(0, 2, 1)

    hv_parts, x_parts, counts = [], [], []
    for b, info in enumerate(voxelizer_infos):
        vc = info["voxel_coords"].astype(jnp.int32)
        idx = vc[:, 1] * W + vc[:, 2]
        # TODO(synk): the data-dependent voxel gather stays in XLA (no rectangular
        # BlockSpec expresses it); everything downstream runs in the Pallas kernel.
        hv = jnp.concatenate([before_flat[b][idx], after_flat[b][idx]], axis=1)   # (N, 2C)
        # offset_encoder Linear(3, C): K=3 matmul wastes the MXU, so do it in XLA.
        x = info["point_offsets"].astype(jnp.float32) @ params["woff"] + params["boff"]
        hv_parts.append(hv)
        x_parts.append(x)
        counts.append(hv.shape[0])

    flow_all = decode_points(
        params,
        jnp.concatenate(hv_parts, axis=0),
        jnp.concatenate(x_parts, axis=0),
        tm_max=tm_max)

    flows, start = [], 0
    for n in counts:
        flows.append(flow_all[start:start + n])
        start += n
    return flows


def reference_forward_single(params, before_pi, after_pi, point_offsets, voxel_coords,
                             *, bf16_matmuls=False):
    """Pure-JAX reference mirroring the PyTorch math.

    bf16_matmuls=True mirrors the kernel's bf16-operand / f32-accumulate MXU matmuls.
    """
    def dot(a, b):
        if bf16_matmuls:
            return jnp.dot(a.astype(jnp.bfloat16), b.astype(jnp.bfloat16),
                           preferred_element_type=jnp.float32)
        return jnp.dot(a, b, preferred_element_type=jnp.float32)

    vc = voxel_coords.astype(jnp.int32)
    before_vec = before_pi[:, vc[:, 1], vc[:, 2]].T
    after_vec = after_pi[:, vc[:, 1], vc[:, 2]].T
    h = jnp.concatenate([before_vec, after_vec], axis=1)
    x = point_offsets @ params["woff"] + params["boff"]        # f32, same as the wrapper
    for _ in range(NUM_ITERS):
        z = jax.nn.sigmoid(dot(h, params["wz_h"]) + dot(x, params["wz_x"]) + params["bz"])
        r = jax.nn.sigmoid(dot(h, params["wr_h"]) + dot(x, params["wr_x"]) + params["br"])
        q = jnp.tanh(dot(r * h, params["wq_h"]) + dot(x, params["wq_x"]) + params["bq"])
        h = (1.0 - z) * h + z * q
    d1 = _gelu_exact(dot(h, params["wd1_h"]) + dot(x, params["wd1_x"]) + params["bd1"])
    return dot(d1, params["wd2"]) + params["bd2"]


def init_params(key, C):
    """Deterministic synthetic parameters (shapes from ConvGRUDecoder.__init__)."""
    two_c, half_c = 2 * C, C // 2
    ks = jax.random.split(key, 16)

    def w(k, fan_in, shape):
        return jax.random.normal(k, shape, jnp.float32) / jnp.sqrt(jnp.float32(fan_in))

    def b(k, shape):
        return 0.01 * jax.random.normal(k, shape, jnp.float32)

    return {
        # offset_encoder: Linear(3, C), stored as (in, out)
        "woff": w(ks[0], 3, (3, C)), "boff": b(ks[1], (1, C)),
        # gru convz/convr/convq: Conv1d(3C, 2C, 1) split into h (2C rows) / x (C rows) parts
        "wz_h": w(ks[2], 3 * C, (two_c, two_c)), "wz_x": w(ks[3], 3 * C, (C, two_c)), "bz": b(ks[4], (1, two_c)),
        "wr_h": w(ks[5], 3 * C, (two_c, two_c)), "wr_x": w(ks[6], 3 * C, (C, two_c)), "br": b(ks[7], (1, two_c)),
        "wq_h": w(ks[8], 3 * C, (two_c, two_c)), "wq_x": w(ks[9], 3 * C, (C, two_c)), "bq": b(ks[10], (1, two_c)),
        # decoder: Linear(3C, C//2) split into h / x parts, then Linear(C//2, 3)
        "wd1_h": w(ks[11], 3 * C, (two_c, half_c)), "wd1_x": w(ks[12], 3 * C, (C, half_c)), "bd1": b(ks[13], (1, half_c)),
        "wd2": w(ks[14], half_c, (half_c, 3)), "bd2": b(ks[15], (1, 3)),
    }


if __name__ == "__main__":
    key = jax.random.PRNGKey(0)
    C, H, W, B = 32, 16, 16, 2      # pseudoimage_channels=32, 16x16 pseudoimage, batch=2
    point_counts = [200, 136]       # variable #points per sample (exercises padding + batching)

    kp, kb, ka, kv = jax.random.split(key, 4)
    params = init_params(kp, C)
    before_pseudoimages = jax.random.normal(kb, (B, C, H, W), jnp.float32)
    after_pseudoimages = jax.random.normal(ka, (B, C, H, W), jnp.float32)

    voxelizer_infos = []
    for b, n in enumerate(point_counts):
        k0 = jax.random.fold_in(kv, b)
        k1, k2, k3 = jax.random.split(k0, 3)
        point_offsets = jax.random.normal(k1, (n, 3), jnp.float32)
        voxel_coords = jnp.stack(
            [jnp.full((n,), b, jnp.int32),
             jax.random.randint(k2, (n,), 0, H, jnp.int32),
             jax.random.randint(k3, (n,), 0, W, jnp.int32)], axis=1)
        voxelizer_infos.append({"point_offsets": point_offsets, "voxel_coords": voxel_coords})

    flows = forward(params, before_pseudoimages, after_pseudoimages, voxelizer_infos)
    flows = jax.block_until_ready(flows)

    for b in range(B):
        args = (params, before_pseudoimages[b], after_pseudoimages[b],
                voxelizer_infos[b]["point_offsets"], voxelizer_infos[b]["voxel_coords"])
        ref_bf16 = reference_forward_single(*args, bf16_matmuls=True)
        ref_f32 = reference_forward_single(*args, bf16_matmuls=False)
        assert flows[b].shape == (point_counts[b], 3)
        out = np.asarray(flows[b])
        # Tight check: kernel vs a reference using the same bf16-operand MXU matmuls.
        np.testing.assert_allclose(out, np.asarray(ref_bf16), rtol=2e-3, atol=2e-3)
        # Sanity check: kernel vs the exact f32 reference (bf16 operand rounding allowed).
        np.testing.assert_allclose(out, np.asarray(ref_f32), rtol=5e-2, atol=5e-2)

    print("KERNEL_OK")
</pallas_src>

<mosaic_0001>
module attributes {stable_mosaic.version = 11 : i64} {
  func.func @convgru_decoder_kernel(%arg0: i32, %arg1: memref<256x96xf32, #tpu.memory_space<vmem>>, %arg2: memref<32x208xbf16, #tpu.memory_space<vmem>>, %arg3: memref<1x208xf32, #tpu.memory_space<vmem>>, %arg4: memref<64x128xbf16, #tpu.memory_space<vmem>>, %arg5: memref<64x64xbf16, #tpu.memory_space<vmem>>, %arg6: memref<64x16xbf16, #tpu.memory_space<vmem>>, %arg7: memref<16x128xbf16, #tpu.memory_space<vmem>>, %arg8: memref<1x128xf32, #tpu.memory_space<vmem>>, %arg9: memref<256x128xf32, #tpu.memory_space<vmem>>) attributes {dimension_semantics = [#tpu.dimension_semantics<parallel>], iteration_bounds = array<i64: 2>, scalar_prefetch = 0 : i64, scratch_operands = 0 : i64, tpu.core_type = #tpu.core_type<tc>, window_params = [{transform_indices = @transform_0, window_bounds = array<i64: 256, 96>}, {pipeline_mode = #tpu.pipeline_mode<synchronous>, transform_indices = @transform_1, window_bounds = array<i64: 32, 208>}, {pipeline_mode = #tpu.pipeline_mode<synchronous>, transform_indices = @transform_2, window_bounds = array<i64: 1, 208>}, {pipeline_mode = #tpu.pipeline_mode<synchronous>, transform_indices = @transform_3, window_bounds = array<i64: 64, 128>}, {pipeline_mode = #tpu.pipeline_mode<synchronous>, transform_indices = @transform_4, window_bounds = array<i64: 64, 64>}, {pipeline_mode = #tpu.pipeline_mode<synchronous>, transform_indices = @transform_5, window_bounds = array<i64: 64, 16>}, {pipeline_mode = #tpu.pipeline_mode<synchronous>, transform_indices = @transform_6, window_bounds = array<i64: 16, 128>}, {pipeline_mode = #tpu.pipeline_mode<synchronous>, transform_indices = @transform_7, window_bounds = array<i64: 1, 128>}, {transform_indices = @transform_8, window_bounds = array<i64: 256, 128>}]} {
    %c0 = arith.constant 0 : index
    %c0_0 = arith.constant 0 : index
    %0 = vector.load %arg1[%c0, %c0_0] : memref<256x96xf32, #tpu.memory_space<vmem>>, vector<256x96xf32>
    %1 = vector.extract_strided_slice %0 {offsets = [0, 0], sizes = [256, 64], strides = [1, 1]} : vector<256x96xf32> to vector<256x64xf32>
    %2 = vector.extract_strided_slice %0 {offsets = [0, 64], sizes = [256, 32], strides = [1, 1]} : vector<256x96xf32> to vector<256x32xf32>
    %3 = arith.truncf %2 : vector<256x32xf32> to vector<256x32xbf16>
    %c0_1 = arith.constant 0 : index
    %c0_2 = arith.constant 0 : index
    %4 = vector.load %arg2[%c0_1, %c0_2] : memref<32x208xbf16, #tpu.memory_space<vmem>>, vector<32x208xbf16>
    %cst = arith.constant dense<0.000000e+00> : vector<256x208xf32>
    %5 = tpu.matmul %3, %4, %cst {dimension_numbers = #tpu.dot_dimension_numbers<[1], [0], [0], [1], [0, 0, 1, 1], [], []>} : vector<256x32xbf16>, vector<32x208xbf16>, vector<256x208xf32> -> vector<256x208xf32>
    %c0_3 = arith.constant 0 : index
    %c0_4 = arith.constant 0 : index
    %6 = vector.load %arg3[%c0_3, %c0_4] : memref<1x208xf32, #tpu.memory_space<vmem>>, vector<1x208xf32>
    %7 = vector.broadcast %6 : vector<1x208xf32> to vector<256x208xf32>
    %8 = arith.addf %5, %7 : vector<256x208xf32>
    %9 = vector.extract_strided_slice %8 {offsets = [0, 0], sizes = [256, 128], strides = [1, 1]} : vector<256x208xf32> to vector<256x128xf32>
    %10 = vector.extract_strided_slice %8 {offsets = [0, 128], sizes = [256, 64], strides = [1, 1]} : vector<256x208xf32> to vector<256x64xf32>
    %11 = vector.extract_strided_slice %8 {offsets = [0, 192], sizes = [256, 16], strides = [1, 1]} : vector<256x208xf32> to vector<256x16xf32>
    %c0_5 = arith.constant 0 : index
    %c0_6 = arith.constant 0 : index
    %12 = vector.load %arg4[%c0_5, %c0_6] : memref<64x128xbf16, #tpu.memory_space<vmem>>, vector<64x128xbf16>
    %c0_7 = arith.constant 0 : index
    %c0_8 = arith.constant 0 : index
    %13 = vector.load %arg5[%c0_7, %c0_8] : memref<64x64xbf16, #tpu.memory_space<vmem>>, vector<64x64xbf16>
    %14 = arith.truncf %1 : vector<256x64xf32> to vector<256x64xbf16>
    %cst_9 = arith.constant dense<0.000000e+00> : vector<256x128xf32>
    %15 = tpu.matmul %14, %12, %cst_9 {dimension_numbers = #tpu.dot_dimension_numbers<[1], [0], [0], [1], [0, 0, 1, 1], [], []>} : vector<256x64xbf16>, vector<64x128xbf16>, vector<256x128xf32> -> vector<256x128xf32>
    %16 = arith.addf %15, %9 : vector<256x128xf32>
    %17 = arith.negf %16 : vector<256x128xf32>
    %18 = math.exp %17 : vector<256x128xf32>
    %cst_10 = arith.constant 1.000000e+00 : f32
    %19 = vector.broadcast %cst_10 : f32 to vector<256x128xf32>
    %20 = arith.addf %19, %18 : vector<256x128xf32>
    %21 = arith.divf %19, %20 : vector<256x128xf32>
    %22 = vector.extract_strided_slice %21 {offsets = [0, 0], sizes = [256, 64], strides = [1, 1]} : vector<256x128xf32> to vector<256x64xf32>
    %23 = vector.extract_strided_slice %21 {offsets = [0, 64], sizes = [256, 64], strides = [1, 1]} : vector<256x128xf32> to vector<256x64xf32>
    %24 = arith.mulf %23, %1 : vector<256x64xf32>
    %25 = arith.truncf %24 : vector<256x64xf32> to vector<256x64xbf16>
    %cst_11 = arith.constant dense<0.000000e+00> : vector<256x64xf32>
    %26 = tpu.matmul %25, %13, %cst_11 {dimension_numbers = #tpu.dot_dimension_numbers<[1], [0], [0], [1], [0, 0, 1, 1], [], []>} : vector<256x64xbf16>, vector<64x64xbf16>, vector<256x64xf32> -> vector<256x64xf32>
    %27 = arith.addf %26, %10 : vector<256x64xf32>
    %28 = math.tanh %27 : vector<256x64xf32>
    %cst_12 = arith.constant 1.000000e+00 : f32
    %29 = vector.broadcast %cst_12 : f32 to vector<256x64xf32>
    %30 = arith.subf %29, %22 : vector<256x64xf32>
    %31 = arith.mulf %30, %1 : vector<256x64xf32>
    %32 = arith.mulf %22, %28 : vector<256x64xf32>
    %33 = arith.addf %31, %32 : vector<256x64xf32>
    %34 = arith.truncf %33 : vector<256x64xf32> to vector<256x64xbf16>
    %cst_13 = arith.constant dense<0.000000e+00> : vector<256x128xf32>
    %35 = tpu.matmul %34, %12, %cst_13 {dimension_numbers = #tpu.dot_dimension_numbers<[1], [0], [0], [1], [0, 0, 1, 1], [], []>} : vector<256x64xbf16>, vector<64x128xbf16>, vector<256x128xf32> -> vector<256x128xf32>
    %36 = arith.addf %35, %9 : vector<256x128xf32>
    %37 = arith.negf %36 : vector<256x128xf32>
    %38 = math.exp %37 : vector<256x128xf32>
    %cst_14 = arith.constant 1.000000e+00 : f32
    %39 = vector.broadcast %cst_14 : f32 to vector<256x128xf32>
    %40 = arith.addf %39, %38 : vector<256x128xf32>
    %41 = arith.divf %39, %40 : vector<256x128xf32>
    %42 = vector.extract_strided_slice %41 {offsets = [0, 0], sizes = [256, 64], strides = [1, 1]} : vector<256x128xf32> to vector<256x64xf32>
    %43 = vector.extract_strided_slice %41 {offsets = [0, 64], sizes = [256, 64], strides = [1, 1]} : vector<256x128xf32> to vector<256x64xf32>
    %44 = arith.mulf %43, %33 : vector<256x64xf32>
    %45 = arith.truncf %44 : vector<256x64xf32> to vector<256x64xbf16>
    %cst_15 = arith.constant dense<0.000000e+00> : vector<256x64xf32>
    %46 = tpu.matmul %45, %13, %cst_15 {dimension_numbers = #tpu.dot_dimension_numbers<[1], [0], [0], [1], [0, 0, 1, 1], [], []>} : vector<256x64xbf16>, vector<64x64xbf16>, vector<256x64xf32> -> vector<256x64xf32>
    %47 = arith.addf %46, %10 : vector<256x64xf32>
    %48 = math.tanh %47 : vector<256x64xf32>
    %cst_16 = arith.constant 1.000000e+00 : f32
    %49 = vector.broadcast %cst_16 : f32 to vector<256x64xf32>
    %50 = arith.subf %49, %42 : vector<256x64xf32>
    %51 = arith.mulf %50, %33 : vector<256x64xf32>
    %52 = arith.mulf %42, %48 : vector<256x64xf32>
    %53 = arith.addf %51, %52 : vector<256x64xf32>
    %54 = arith.truncf %53 : vector<256x64xf32> to vector<256x64xbf16>
    %cst_17 = arith.constant dense<0.000000e+00> : vector<256x128xf32>
    %55 = tpu.matmul %54, %12, %cst_17 {dimension_numbers = #tpu.dot_dimension_numbers<[1], [0], [0], [1], [0, 0, 1, 1], [], []>} : vector<256x64xbf16>, vector<64x128xbf16>, vector<256x128xf32> -> vector<256x128xf32>
    %56 = arith.addf %55, %9 : vector<256x128xf32>
    %57 = arith.negf %56 : vector<256x128xf32>
    %58 = math.exp %57 : vector<256x128xf32>
    %cst_18 = arith.constant 1.000000e+00 : f32
    %59 = vector.broadcast %cst_18 : f32 to vector<256x128xf32>
    %60 = arith.addf %59, %58 : vector<256x128xf32>
    %61 = arith.divf %59, %60 : vector<256x128xf32>
    %62 = vector.extract_strided_slice %61 {offsets = [0, 0], sizes = [256, 64], strides = [1, 1]} : vector<256x128xf32> to vector<256x64xf32>
    %63 = vector.extract_strided_slice %61 {offsets = [0, 64], sizes = [256, 64], strides = [1, 1]} : vector<256x128xf32> to vector<256x64xf32>
    %64 = arith.mulf %63, %53 : vector<256x64xf32>
    %65 = arith.truncf %64 : vector<256x64xf32> to vector<256x64xbf16>
    %cst_19 = arith.constant dense<0.000000e+00> : vector<256x64xf32>
    %66 = tpu.matmul %65, %13, %cst_19 {dimension_numbers = #tpu.dot_dimension_numbers<[1], [0], [0], [1], [0, 0, 1, 1], [], []>} : vector<256x64xbf16>, vector<64x64xbf16>, vector<256x64xf32> -> vector<256x64xf32>
    %67 = arith.addf %66, %10 : vector<256x64xf32>
    %68 = math.tanh %67 : vector<256x64xf32>
    %cst_20 = arith.constant 1.000000e+00 : f32
    %69 = vector.broadcast %cst_20 : f32 to vector<256x64xf32>
    %70 = arith.subf %69, %62 : vector<256x64xf32>
    %71 = arith.mulf %70, %53 : vector<256x64xf32>
    %72 = arith.mulf %62, %68 : vector<256x64xf32>
    %73 = arith.addf %71, %72 : vector<256x64xf32>
    %74 = arith.truncf %73 : vector<256x64xf32> to vector<256x64xbf16>
    %cst_21 = arith.constant dense<0.000000e+00> : vector<256x128xf32>
    %75 = tpu.matmul %74, %12, %cst_21 {dimension_numbers = #tpu.dot_dimension_numbers<[1], [0], [0], [1], [0, 0, 1, 1], [], []>} : vector<256x64xbf16>, vector<64x128xbf16>, vector<256x128xf32> -> vector<256x128xf32>
    %76 = arith.addf %75, %9 : vector<256x128xf32>
    %77 = arith.negf %76 : vector<256x128xf32>
    %78 = math.exp %77 : vector<256x128xf32>
    %cst_22 = arith.constant 1.000000e+00 : f32
    %79 = vector.broadcast %cst_22 : f32 to vector<256x128xf32>
    %80 = arith.addf %79, %78 : vector<256x128xf32>
    %81 = arith.divf %79, %80 : vector<256x128xf32>
    %82 = vector.extract_strided_slice %81 {offsets = [0, 0], sizes = [256, 64], strides = [1, 1]} : vector<256x128xf32> to vector<256x64xf32>
    %83 = vector.extract_strided_slice %81 {offsets = [0, 64], sizes = [256, 64], strides = [1, 1]} : vector<256x128xf32> to vector<256x64xf32>
    %84 = arith.mulf %83, %73 : vector<256x64xf32>
    %85 = arith.truncf %84 : vector<256x64xf32> to vector<256x64xbf16>
    %cst_23 = arith.constant dense<0.000000e+00> : vector<256x64xf32>
    %86 = tpu.matmul %85, %13, %cst_23 {dimension_numbers = #tpu.dot_dimension_numbers<[1], [0], [0], [1], [0, 0, 1, 1], [], []>} : vector<256x64xbf16>, vector<64x64xbf16>, vector<256x64xf32> -> vector<256x64xf32>
    %87 = arith.addf %86, %10 : vector<256x64xf32>
    %88 = math.tanh %87 : vector<256x64xf32>
    %cst_24 = arith.constant 1.000000e+00 : f32
    %89 = vector.broadcast %cst_24 : f32 to vector<256x64xf32>
    %90 = arith.subf %89, %82 : vector<256x64xf32>
    %91 = arith.mulf %90, %73 : vector<256x64xf32>
    %92 = arith.mulf %82, %88 : vector<256x64xf32>
    %93 = arith.addf %91, %92 : vector<256x64xf32>
    %94 = arith.truncf %93 : vector<256x64xf32> to vector<256x64xbf16>
    %cst_25 = arith.constant dense<0.000000e+00> : vector<256x128xf32>
    %95 = tpu.matmul %94, %12, %cst_25 {dimension_numbers = #tpu.dot_dimension_numbers<[1], [0], [0], [1], [0, 0, 1, 1], [], []>} : vector<256x64xbf16>, vector<64x128xbf16>, vector<256x128xf32> -> vector<256x128xf32>
    %96 = arith.addf %95, %9 : vector<256x128xf32>
    %97 = arith.negf %96 : vector<256x128xf32>
    %98 = math.exp %97 : vector<256x128xf32>
    %cst_26 = arith.constant 1.000000e+00 : f32
    %99 = vector.broadcast %cst_26 : f32 to vector<256x128xf32>
    %100 = arith.addf %99, %98 : vector<256x128xf32>
    %101 = arith.divf %99, %100 : vector<256x128xf32>
    %102 = vector.extract_strided_slice %101 {offsets = [0, 0], sizes = [256, 64], strides = [1, 1]} : vector<256x128xf32> to vector<256x64xf32>
    %103 = vector.extract_strided_slice %101 {offsets = [0, 64], sizes = [256, 64], strides = [1, 1]} : vector<256x128xf32> to vector<256x64xf32>
    %104 = arith.mulf %103, %93 : vector<256x64xf32>
    %105 = arith.truncf %104 : vector<256x64xf32> to vector<256x64xbf16>
    %cst_27 = arith.constant dense<0.000000e+00> : vector<256x64xf32>
    %106 = tpu.matmul %105, %13, %cst_27 {dimension_numbers = #tpu.dot_dimension_numbers<[1], [0], [0], [1], [0, 0, 1, 1], [], []>} : vector<256x64xbf16>, vector<64x64xbf16>, vector<256x64xf32> -> vector<256x64xf32>
    %107 = arith.addf %106, %10 : vector<256x64xf32>
    %108 = math.tanh %107 : vector<256x64xf32>
    %cst_28 = arith.constant 1.000000e+00 : f32
    %109 = vector.broadcast %cst_28 : f32 to vector<256x64xf32>
    %110 = arith.subf %109, %102 : vector<256x64xf32>
    %111 = arith.mulf %110, %93 : vector<256x64xf32>
    %112 = arith.mulf %102, %108 : vector<256x64xf32>
    %113 = arith.addf %111, %112 : vector<256x64xf32>
    %114 = arith.truncf %113 : vector<256x64xf32> to vector<256x64xbf16>
    %c0_29 = arith.constant 0 : index
    %c0_30 = arith.constant 0 : index
    %115 = vector.load %arg6[%c0_29, %c0_30] : memref<64x16xbf16, #tpu.memory_space<vmem>>, vector<64x16xbf16>
    %cst_31 = arith.constant dense<0.000000e+00> : vector<256x16xf32>
    %116 = tpu.matmul %114, %115, %cst_31 {dimension_numbers = #tpu.dot_dimension_numbers<[1], [0], [0], [1], [0, 0, 1, 1], [], []>} : vector<256x64xbf16>, vector<64x16xbf16>, vector<256x16xf32> -> vector<256x16xf32>
    %117 = arith.addf %116, %11 : vector<256x16xf32>
    %cst_32 = arith.constant 5.000000e-01 : f32
    %118 = vector.broadcast %cst_32 : f32 to vector<256x16xf32>
    %119 = arith.mulf %118, %117 : vector<256x16xf32>
    %cst_33 = arith.constant 0.707106769 : f32
    %120 = vector.broadcast %cst_33 : f32 to vector<256x16xf32>
    %121 = arith.mulf %117, %120 : vector<256x16xf32>
    %122 = math.erf %121 : vector<256x16xf32>
    %cst_34 = arith.constant 1.000000e+00 : f32
    %123 = vector.broadcast %cst_34 : f32 to vector<256x16xf32>
    %124 = arith.addf %123, %122 : vector<256x16xf32>
    %125 = arith.mulf %119, %124 : vector<256x16xf32>
    %126 = arith.truncf %125 : vector<256x16xf32> to vector<256x16xbf16>
    %c0_35 = arith.constant 0 : index
    %c0_36 = arith.constant 0 : index
    %127 = vector.load %arg7[%c0_35, %c0_36] : memref<16x128xbf16, #tpu.memory_space<vmem>>, vector<16x128xbf16>
    %cst_37 = arith.constant dense<0.000000e+00> : vector<256x128xf32>
    %128 = tpu.matmul %126, %127, %cst_37 {dimension_numbers = #tpu.dot_dimension_numbers<[1], [0], [0], [1], [0, 0, 1, 1], [], []>} : vector<256x16xbf16>, vector<16x128xbf16>, vector<256x128xf32> -> vector<256x128xf32>
    %c0_38 = arith.constant 0 : index
    %c0_39 = arith.constant 0 : index
    %129 = vector.load %arg8[%c0_38, %c0_39] : memref<1x128xf32, #tpu.memory_space<vmem>>, vector<1x128xf32>
    %130 = vector.broadcast %129 : vector<1x128xf32> to vector<256x128xf32>
    %131 = arith.addf %128, %130 : vector<256x128xf32>
    %c0_40 = arith.constant 0 : index
    %c0_41 = arith.constant 0 : index
    %132 = vector.load %arg9[%c0_40, %c0_41] : memref<256x128xf32, #tpu.memory_space<vmem>>, vector<256x128xf32>
    tpu.vector_store %arg9[%c0_40, %c0_41], %131 {strides = array<i32>} : memref<256x128xf32, #tpu.memory_space<vmem>>, vector<256x128xf32>,
    return
  }
  func.func @transform_0(%arg0: i32) -> (i32, i32) {
    %c0_i32 = arith.constant 0 : i32
    %c0_i32_0 = arith.constant 0 : i32
    return %arg0, %c0_i32 : i32, i32
  }
  func.func @transform_1(%arg0: i32) -> (i32, i32) {
    %c0_i32 = arith.constant 0 : i32
    %c0_i32_0 = arith.constant 0 : i32
    %c0_i32_1 = arith.constant 0 : i32
    return %c0_i32, %c0_i32_0 : i32, i32
  }
  func.func @transform_2(%arg0: i32) -> (i32, i32) {
    %c0_i32 = arith.constant 0 : i32
    %c0_i32_0 = arith.constant 0 : i32
    %c0_i32_1 = arith.constant 0 : i32
    return %c0_i32, %c0_i32_0 : i32, i32
  }
  func.func @transform_3(%arg0: i32) -> (i32, i32) {
    %c0_i32 = arith.constant 0 : i32
    %c0_i32_0 = arith.constant 0 : i32
    %c0_i32_1 = arith.constant 0 : i32
    return %c0_i32, %c0_i32_0 : i32, i32
  }
  func.func @transform_4(%arg0: i32) -> (i32, i32) {
    %c0_i32 = arith.constant 0 : i32
    %c0_i32_0 = arith.constant 0 : i32
    %c0_i32_1 = arith.constant 0 : i32
    return %c0_i32, %c0_i32_0 : i32, i32
  }
  func.func @transform_5(%arg0: i32) -> (i32, i32) {
    %c0_i32 = arith.constant 0 : i32
    %c0_i32_0 = arith.constant 0 : i32
    %c0_i32_1 = arith.constant 0 : i32
    return %c0_i32, %c0_i32_0 : i32, i32
  }
  func.func @transform_6(%arg0: i32) -> (i32, i32) {
    %c0_i32 = arith.constant 0 : i32
    %c0_i32_0 = arith.constant 0 : i32
    %c0_i32_1 = arith.constant 0 : i32
    return %c0_i32, %c0_i32_0 : i32, i32
  }
  func.func @transform_7(%arg0: i32) -> (i32, i32) {
    %c0_i32 = arith.constant 0 : i32
    %c0_i32_0 = arith.constant 0 : i32
    %c0_i32_1 = arith.constant 0 : i32
    return %c0_i32, %c0_i32_0 : i32, i32
  }
  func.func @transform_8(%arg0: i32) -> (i32, i32) {
    %c0_i32 = arith.constant 0 : i32
    %c0_i32_0 = arith.constant 0 : i32
    return %arg0, %c0_i32 : i32, i32
  }
}

</mosaic_0001>

<llo_original>
// kernel: tpu_custom_call.1
$region0: #{tpu_custom_call.1}
  #allocation0 [shape = 'u32[]', space=smem, size = 0x4, offset = 0x4, fixed_abs, tag = 'smem constant byte address 0x4 - core index']
  #allocation1 [shape = 'u32[144,128]{1,0:T(1,128)}', space=vmem, size = 0x12000, scoped, tag = 'internal scratch']
  %s0 = inlined_call_operand.vmem [shape: f32[512,96], index: 0, kind: input, shape index: {}]
  %s1 = inlined_call_operand.vmem [shape: bf16[32,208], index: 1, kind: input, shape index: {}]
  %s2 = inlined_call_operand.vmem [shape: f32[1,208], index: 2, kind: input, shape index: {}]
  %s3 = inlined_call_operand.vmem [shape: bf16[64,128], index: 3, kind: input, shape index: {}]
  %s4 = inlined_call_operand.vmem [shape: bf16[64,64], index: 4, kind: input, shape index: {}]
  %s5 = inlined_call_operand.vmem [shape: bf16[64,16], index: 5, kind: input, shape index: {}]
  %s6 = inlined_call_operand.vmem [shape: bf16[16,128], index: 6, kind: input, shape index: {}]
  %s7 = inlined_call_operand.vmem [shape: f32[1,128], index: 7, kind: input, shape index: {}]
  %s8 = inlined_call_operand.hbm [shape: f32[512,128], index: 8, kind: output, shape index: {}]
  %s9 = sld [smem:[#allocation0]]
  $region65: #{tpu_custom_call.1} parent=0
    _
  %s11 = ssub.s32 1, %s9
  %s12 = scalar_select 0, %s11, %s9
  $region1: #{tpu_custom_call.1} parent=0
    #allocation2 [shape = 'u8[262144]{0}', space=vmem, size = 0x40000, scoped, tag = 'output window, operand 0']
    #allocation3 [shape = 's32[2]{0}', space=sflag, size = 0x8, scoped, tag = 'scoped memory for tpu_custom_call.1']
    %13 = vsyncpa [#allocation3], 0
    %s14 = scalar_lea.sflag [#allocation3], 1
    %15 = vsyncpa %s14, 0
    loop: start=0, step=1, limit=4
    $region2: #{tpu_custom_call.1} parent=1 // loop_pre_header
      _
    $region3: #{tpu_custom_call.1} parent=1 // loop_header
      %s17 = sphi 0, %s21
      %p18 = scmp.ge.s32.totalorder %s17, 4
      %s27 = sphi 0, %s29
      %s30 = sphi 0, %s27
      %s31 = sphi 0, %s30
      %s47 = sphi 0, %s31
      %s51 = sphi 0, %s51
      %s53 = sphi 0, %s51
      %s54 = sphi 0, %s53
      %s68 = sphi 0, %s54
      %s72 = sphi 0, %s72
      %s74 = sphi 0, %s72
      %s75 = sphi 0, %s74
      %s89 = sphi 0, %s75
      %s93 = sphi 0, %s93
      %s95 = sphi 0, %s93
      %s96 = sphi 0, %s95
      %s110 = sphi 0, %s96
      %s114 = sphi 0, %s114
      %s116 = sphi 0, %s114
      %s117 = sphi 0, %s116
      %s131 = sphi 0, %s117
      %s135 = sphi 0, %s135
      %s137 = sphi 0, %s135
      %s138 = sphi 0, %s137
      %s152 = sphi 0, %s138
      %s156 = sphi 0, %s156
      %s158 = sphi 0, %s156
      %s159 = sphi 0, %s158
      %s173 = sphi 0, %s159
      %s177 = sphi 0, %s177
      %s179 = sphi 0, %s177
      %s180 = sphi 0, %s179
      %s194 = sphi 0, %s180
      %s200 = sphi 0, %s202
      %s203 = sphi 0, %s200
      %s204 = sphi 0, %s203
      %s220 = sphi 0, %s204
    $region4: #{tpu_custom_call.1} parent=1 // loop_header_branch
      %20 = sbr.rel (%p18) target = $region8
    $region5: #{tpu_custom_call.1} parent=1 // loop_body
      %s22 = ssub.s32 %s17, 1
      %s23 = ssub.s32 %s17, 2
      %s24 = sadd.s32 %s17, 1
      %s25 = ssub.s32 %s17, %s24
      %p26 = scmp.eq.s32.totalorder %s25, 0
      %s28 = sadd.s32 %s27, 1
      %s29 = scalar_select %p26, %s27, %s28
      %p32 = pneg %p26
      %p33 = scmp.eq.s32.totalorder %s17, 1
      %p34 = por %p32, %p33
      %p35 = scmp.ne.s32.totalorder %s27, %s30
      %p36 = scmp.eq.s32.totalorder %s17, 0
      %p37 = por %p35, %p36
      %p38 = scmp.ne.s32.totalorder %s27, %s30
      %p39 = scmp.eq.s32.totalorder %s22, 1
      %p40 = por %p38, %p39
      %p41 = scmp.ne.s32.totalorder %s30, %s31
      %p42 = scmp.eq.s32.totalorder %s22, 0
      %p43 = por %p41, %p42
      %p44 = scmp.ne.s32.totalorder %s30, %s31
      %p45 = scmp.eq.s32.totalorder %s23, 1
      %p46 = por %p44, %p45
      %p48 = scmp.ne.s32.totalorder %s31, %s47
      %p49 = scmp.eq.s32.totalorder %s23, 0
      %p50 = por %p48, %p49
      %s52 = sadd.s32 %s51, 1
      %p55 = scmp.eq.s32.totalorder %s17, 1
      %p56 = scmp.ne.s32.totalorder %s51, %s53
      %p57 = scmp.eq.s32.totalorder %s17, 0
      %p58 = por %p56, %p57
      %p59 = scmp.ne.s32.totalorder %s51, %s53
      %p60 = scmp.eq.s32.totalorder %s22, 1
      %p61 = por %p59, %p60
      %p62 = scmp.ne.s32.totalorder %s53, %s54
      %p63 = scmp.eq.s32.totalorder %s22, 0
      %p64 = por %p62, %p63
      %p65 = scmp.ne.s32.totalorder %s53, %s54
      %p66 = scmp.eq.s32.totalorder %s23, 1
      %p67 = por %p65, %p66
      %p69 = scmp.ne.s32.totalorder %s54, %s68
      %p70 = scmp.eq.s32.totalorder %s23, 0
      %p71 = por %p69, %p70
      %s73 = sadd.s32 %s72, 1
      %p76 = scmp.eq.s32.totalorder %s17, 1
      %p77 = scmp.ne.s32.totalorder %s72, %s74
      %p78 = scmp.eq.s32.totalorder %s17, 0
      %p79 = por %p77, %p78
      %p80 = scmp.ne.s32.totalorder %s72, %s74
      %p81 = scmp.eq.s32.totalorder %s22, 1
      %p82 = por %p80, %p81
      %p83 = scmp.ne.s32.totalorder %s74, %s75
      %p84 = scmp.eq.s32.totalorder %s22, 0
      %p85 = por %p83, %p84
      %p86 = scmp.ne.s32.totalorder %s74, %s75
      %p87 = scmp.eq.s32.totalorder %s23, 1
      %p88 = por %p86, %p87
      %p90 = scmp.ne.s32.totalorder %s75, %s89
      %p91 = scmp.eq.s32.totalorder %s23, 0
      %p92 = por %p90, %p91
      %s94 = sadd.s32 %s93, 1
      %p97 = scmp.eq.s32.totalorder %s17, 1
      %p98 = scmp.ne.s32.totalorder %s93, %s95
      %p99 = scmp.eq.s32.totalorder %s17, 0
      %p100 = por %p98, %p99
      %p101 = scmp.ne.s32.totalorder %s93, %s95
      %p102 = scmp.eq.s32.totalorder %s22, 1
      %p103 = por %p101, %p102
      %p104 = scmp.ne.s32.totalorder %s95, %s96
      %p105 = scmp.eq.s32.totalorder %s22, 0
      %p106 = por %p104, %p105
      %p107 = scmp.ne.s32.totalorder %s95, %s96
      %p108 = scmp.eq.s32.totalorder %s23, 1
      %p109 = por %p107, %p108
      %p111 = scmp.ne.s32.totalorder %s96, %s110
      %p112 = scmp.eq.s32.totalorder %s23, 0
      %p113 = por %p111, %p112
      %s115 = sadd.s32 %s114, 1
      %p118 = scmp.eq.s32.totalorder %s17, 1
      %p119 = scmp.ne.s32.totalorder %s114, %s116
      %p120 = scmp.eq.s32.totalorder %s17, 0
      %p121 = por %p119, %p120
      %p122 = scmp.ne.s32.totalorder %s114, %s116
      %p123 = scmp.eq.s32.totalorder %s22, 1
      %p124 = por %p122, %p123
      %p125 = scmp.ne.s32.totalorder %s116, %s117
      %p126 = scmp.eq.s32.totalorder %s22, 0
      %p127 = por %p125, %p126
      %p128 = scmp.ne.s32.totalorder %s116, %s117
      %p129 = scmp.eq.s32.totalorder %s23, 1
      %p130 = por %p128, %p129
      %p132 = scmp.ne.s32.totalorder %s117, %s131
      %p133 = scmp.eq.s32.totalorder %s23, 0
      %p134 = por %p132, %p133
      %s136 = sadd.s32 %s135, 1
      %p139 = scmp.eq.s32.totalorder %s17, 1
      %p140 = scmp.ne.s32.totalorder %s135, %s137
      %p141 = scmp.eq.s32.totalorder %s17, 0
      %p142 = por %p140, %p141
      %p143 = scmp.ne.s32.totalorder %s135, %s137
      %p144 = scmp.eq.s32.totalorder %s22, 1
      %p145 = por %p143, %p144
      %p146 = scmp.ne.s32.totalorder %s137, %s138
      %p147 = scmp.eq.s32.totalorder %s22, 0
      %p148 = por %p146, %p147
      %p149 = scmp.ne.s32.totalorder %s137, %s138
      %p150 = scmp.eq.s32.totalorder %s23, 1
      %p151 = por %p149, %p150
      %p153 = scmp.ne.s32.totalorder %s138, %s152
      %p154 = scmp.eq.s32.totalorder %s23, 0
      %p155 = por %p153, %p154
      %s157 = sadd.s32 %s156, 1
      %p160 = scmp.eq.s32.totalorder %s17, 1
      %p161 = scmp.ne.s32.totalorder %s156, %s158
      %p162 = scmp.eq.s32.totalorder %s17, 0
      %p163 = por %p161, %p162
      %p164 = scmp.ne.s32.totalorder %s156, %s158
      %p165 = scmp.eq.s32.totalorder %s22, 1
      %p166 = por %p164, %p165
      %p167 = scmp.ne.s32.totalorder %s158, %s159
      %p168 = scmp.eq.s32.totalorder %s22, 0
      %p169 = por %p167, %p168
      %p170 = scmp.ne.s32.totalorder %s158, %s159
      %p171 = scmp.eq.s32.totalorder %s23, 1
      %p172 = por %p170, %p171
      %p174 = scmp.ne.s32.totalorder %s159, %s173
      %p175 = scmp.eq.s32.totalorder %s23, 0
      %p176 = por %p174, %p175
      %s178 = sadd.s32 %s177, 1
      %p181 = scmp.eq.s32.totalorder %s17, 1
      %p182 = scmp.ne.s32.totalorder %s177, %s179
      %p183 = scmp.eq.s32.totalorder %s17, 0
      %p184 = por %p182, %p183
      %p185 = scmp.ne.s32.totalorder %s177, %s179
      %p186 = scmp.eq.s32.totalorder %s22, 1
      %p187 = por %p185, %p186
      %p188 = scmp.ne.s32.totalorder %s179, %s180
      %p189 = scmp.eq.s32.totalorder %s22, 0
      %p190 = por %p188, %p189
      %p191 = scmp.ne.s32.totalorder %s179, %s180
      %p192 = scmp.eq.s32.totalorder %s23, 1
      %p193 = por %p191, %p192
      %p195 = scmp.ne.s32.totalorder %s180, %s194
      %p196 = scmp.eq.s32.totalorder %s23, 0
      %p197 = por %p195, %p196
      %s198 = ssub.s32 %s17, %s24
      %p199 = scmp.eq.s32.totalorder %s198, 0
      %s201 = sadd.s32 %s200, 1
      %s202 = scalar_select %p199, %s200, %s201
      %p205 = pneg %p199
      %p206 = scmp.eq.s32.totalorder %s17, 1
      %p207 = por %p205, %p206
      %p208 = scmp.ne.s32.totalorder %s200, %s203
      %p209 = scmp.eq.s32.totalorder %s17, 0
      %p210 = por %p208, %p209
      %p211 = scmp.ne.s32.totalorder %s200, %s203
      %p212 = scmp.eq.s32.totalorder %s22, 1
      %p213 = por %p211, %p212
      %p214 = scmp.ne.s32.totalorder %s203, %s204
      %p215 = scmp.eq.s32.totalorder %s22, 0
      %p216 = por %p214, %p215
      %p217 = scmp.ne.s32.totalorder %s203, %s204
      %p218 = scmp.eq.s32.totalorder %s23, 1
      %p219 = por %p217, %p218
      %p221 = scmp.ne.s32.totalorder %s204, %s220
      %p222 = scmp.eq.s32.totalorder %s23, 0
      %p223 = por %p221, %p222
      %p224 = scmp.le.s32.totalorder 1, %s17
      %p225 = scmp.lt.s32.totalorder %s17, 3
      %p226 = pnand %p224, %p225
      %p227 = pneg %p226
      // Predicated region
      $region9: #{tpu_custom_call.1} parent=5 // pred_check
        _
      $region10: #{tpu_custom_call.1} parent=5 // pred_check_branch
        %229 = sbr.rel (%p226) target = $region12
      $region11: #{tpu_custom_call.1} parent=5 // pred_region
        %s230 = ssub.s32 %s17, 1
        // Predicated region
        $region13: #{tpu_custom_call.1} parent=11 // pred_check
          %p231 = pneg %p64
        $region14: #{tpu_custom_call.1} parent=11 // pred_check_branch
          %233 = sbr.rel (%p231) target = $region16
        $region15: #{tpu_custom_call.1} parent=11 // pred_region
          _
        $region16: #{tpu_custom_call.1} parent=11 // pred_fallthru
          _
        // Predicated region
        $region17: #{tpu_custom_call.1} parent=11 // pred_check
          %p234 = pneg %p85
        $region18: #{tpu_custom_call.1} parent=11 // pred_check_branch
          %236 = sbr.rel (%p234) target = $region20
        $region19: #{tpu_custom_call.1} parent=11 // pred_region
          _
        $region20: #{tpu_custom_call.1} parent=11 // pred_fallthru
          _
        // Predicated region
        $region21: #{tpu_custom_call.1} parent=11 // pred_check
          %p237 = pneg %p106
        $region22: #{tpu_custom_call.1} parent=11 // pred_check_branch
          %239 = sbr.rel (%p237) target = $region24
        $region23: #{tpu_custom_call.1} parent=11 // pred_region
          _
        $region24: #{tpu_custom_call.1} parent=11 // pred_fallthru
          _
        // Predicated region
        $region25: #{tpu_custom_call.1} parent=11 // pred_check
          %p240 = pneg %p127
        $region26: #{tpu_custom_call.1} parent=11 // pred_check_branch
          %242 = sbr.rel (%p240) target = $region28
        $region27: #{tpu_custom_call.1} parent=11 // pred_region
          _
        $region28: #{tpu_custom_call.1} parent=11 // pred_fallthru
          _
        // Predicated region
        $region29: #{tpu_custom_call.1} parent=11 // pred_check
          %p243 = pneg %p148
        $region30: #{tpu_custom_call.1} parent=11 // pred_check_branch
          %245 = sbr.rel (%p243) target = $region32
        $region31: #{tpu_custom_call.1} parent=11 // pred_region
          _
        $region32: #{tpu_custom_call.1} parent=11 // pred_fallthru
          _
        // Predicated region
        $region33: #{tpu_custom_call.1} parent=11 // pred_check
          %p246 = pneg %p169
        $region34: #{tpu_custom_call.1} parent=11 // pred_check_branch
          %248 = sbr.rel (%p246) target = $region36
        $region35: #{tpu_custom_call.1} parent=11 // pred_region
          _
        $region36: #{tpu_custom_call.1} parent=11 // pred_fallthru
          _
        // Predicated region
        $region37: #{tpu_custom_call.1} parent=11 // pred_check
          %p249 = pneg %p190
        $region38: #{tpu_custom_call.1} parent=11 // pred_check_branch
          %251 = sbr.rel (%p249) target = $region40
        $region39: #{tpu_custom_call.1} parent=11 // pred_region
          _
        $region40: #{tpu_custom_call.1} parent=11 // pred_fallthru
          _
      $region12: #{tpu_custom_call.1} parent=5 // pred_fallthru
        _
      %p252 = scmp.lt.s32.totalorder %s17, 2
      // Predicated region
      $region41: #{tpu_custom_call.1} parent=5 // pred_check
        %p253 = pneg %p252
      $region42: #{tpu_custom_call.1} parent=5 // pred_check_branch
        %255 = sbr.rel (%p253) target = $region44
      $region43: #{tpu_custom_call.1} parent=5 // pred_region
        // Predicated region
        $region45: #{tpu_custom_call.1} parent=43 // pred_check
          %p256 = pneg %p37
        $region46: #{tpu_custom_call.1} parent=43 // pred_check_branch
          %258 = sbr.rel (%p256) target = $region48
        $region47: #{tpu_custom_call.1} parent=43 // pred_region
          %s259 = smul.u32 32, %s17
          %p260 = scmp.lt.s32.totalorder %s259, 63
          %s261 = scalar_select %p260, %s259, 63
          %s262 = smul.addr %s261, 8
          %s263 = scalar_lea.vmem %s0, %s262
          %s264 = smul.u32 32, %s17
        $region48: #{tpu_custom_call.1} parent=43 // pred_fallthru
          _
      $region44: #{tpu_custom_call.1} parent=5 // pred_fallthru
        _
      %p265 = scmp.le.s32.totalorder 1, %s17
      %p266 = scmp.lt.s32.totalorder %s17, 3
      %p267 = pnand %p265, %p266
      %p268 = pneg %p267
      // Predicated region
      $region49: #{tpu_custom_call.1} parent=5 // pred_check
        _
      $region50: #{tpu_custom_call.1} parent=5 // pred_check_branch
        %270 = sbr.rel (%p267) target = $region52
      $region51: #{tpu_custom_call.1} parent=5 // pred_region
        %s271 = ssub.s32 %s17, 1
        %s272 = smul.u32 32, %s22
        %p273 = scmp.lt.s32.totalorder %s272, 63
        %s274 = scalar_select %p273, %s272, 63
        %s275 = smul.addr %s274, 8
        %s276 = scalar_lea.vmem %s0, %s275
        %p277 = pneg %p43
        %p278 = pneg %p40
        %p279 = pneg %p64
        %p280 = pneg %p61
        %p281 = pneg %p85
        %p282 = pneg %p82
        %p283 = pneg %p106
        %p284 = pneg %p103
        %p285 = pneg %p127
        %p286 = pneg %p124
        %p287 = pneg %p148
        %p288 = pneg %p145
        %p289 = pneg %p169
        %p290 = pneg %p166
        %p291 = pneg %p190
        %p292 = pneg %p187
        %p293 = pneg %p216
        %p294 = pneg %p213
        %s295 = sand.u32 %s203, 1
        %s296 = scalar_lea.sflag [#allocation3], %s295
        %s297 = sand.u32 %s203, 1
        %s298 = smul.addr %s297, 256
        %s299 = scalar_lea.vmem [#allocation2], %s298
        %s300 = smul.u32 32, %s22
        %p301 = scmp.lt.s32.totalorder %s300, 63
        %s302 = scalar_select %p301, %s300, 63
        %s303 = smul.addr %s302, 8
        %s304 = scalar_lea.vmem %s0, %s303
        %s305 = smul.u32 32, %s22
        %s306 = smul.u32 32, %s22
        %v308 = vld [vmem:[%s304] sm:$0xff]
        %v309 = vld [vmem:[%s304 + $0x8] sm:$0xff]
        %v310 = vld [vmem:[%s304 + $0x10] sm:$0xff]
        %v311 = vld [vmem:[%s304 + $0x18] sm:$0xff]
        %v312 = vld [vmem:[%s304 + $0x20] sm:$0xff]
        %v313 = vld [vmem:[%s304 + $0x28] sm:$0xff]
        %v314 = vld [vmem:[%s304 + $0x30] sm:$0xff]
        %v315 = vld [vmem:[%s304 + $0x38] sm:$0xff]
        %v316 = vld [vmem:[%s304 + $0x40] sm:$0xff]
        %v317 = vld [vmem:[%s304 + $0x48] sm:$0xff]
        %v318 = vld [vmem:[%s304 + $0x50] sm:$0xff]
        %v319 = vld [vmem:[%s304 + $0x58] sm:$0xff]
        %v320 = vld [vmem:[%s304 + $0x60] sm:$0xff]
        %v321 = vld [vmem:[%s304 + $0x68] sm:$0xff]
        %v322 = vld [vmem:[%s304 + $0x70] sm:$0xff]
        %v323 = vld [vmem:[%s304 + $0x78] sm:$0xff]
        %v324 = vld [vmem:[%s304 + $0x80] sm:$0xff]
        %v325 = vld [vmem:[%s304 + $0x88] sm:$0xff]
        %v326 = vld [vmem:[%s304 + $0x90] sm:$0xff]
        %v327 = vld [vmem:[%s304 + $0x98] sm:$0xff]
        %v328 = vld [vmem:[%s304 + $0xa0] sm:$0xff]
        %v329 = vld [vmem:[%s304 + $0xa8] sm:$0xff]
        %v330 = vld [vmem:[%s304 + $0xb0] sm:$0xff]
        %v331 = vld [vmem:[%s304 + $0xb8] sm:$0xff]
        %v332 = vld [vmem:[%s304 + $0xc0] sm:$0xff]
        %v333 = vld [vmem:[%s304 + $0xc8] sm:$0xff]
        %v334 = vld [vmem:[%s304 + $0xd0] sm:$0xff]
        %v335 = vld [vmem:[%s304 + $0xd8] sm:$0xff]
        %v336 = vld [vmem:[%s304 + $0xe0] sm:$0xff]
        %v337 = vld [vmem:[%s304 + $0xe8] sm:$0xff]
        %v338 = vld [vmem:[%s304 + $0xf0] sm:$0xff]
        %v339 = vld [vmem:[%s304 + $0xf8] sm:$0xff]
        %v340 = vpack.c.bf16 %v309, %v308
        %v341 = vpack.c.bf16 %v311, %v310
        %v342 = vpack.c.bf16 %v313, %v312
        %v343 = vpack.c.bf16 %v315, %v314
        %v344 = vpack.c.bf16 %v317, %v316
        %v345 = vpack.c.bf16 %v319, %v318
        %v346 = vpack.c.bf16 %v321, %v320
        %v347 = vpack.c.bf16 %v323, %v322
        %v348 = vpack.c.bf16 %v325, %v324
        %v349 = vpack.c.bf16 %v327, %v326
        %v350 = vpack.c.bf16 %v329, %v328
        %v351 = vpack.c.bf16 %v331, %v330
        %v352 = vpack.c.bf16 %v333, %v332
        %v353 = vpack.c.bf16 %v335, %v334
        %v354 = vpack.c.bf16 %v337, %v336
        %v355 = vpack.c.bf16 %v339, %v338
        %v356 = vld [vmem:[%s1] sm:$0xff]
        %v357 = vld [vmem:[%s1 + $0x8] sm:$0xff]
        %v358 = vld [vmem:[%s1 + $0x10] sm:$0xff]
        %v359 = vld [vmem:[%s1 + $0x18] sm:$0xff]
        %v360 = vld [vmem:[%s2] sm:$0x3]
        %v362 = vlaneseq
        %v363 = vshrl.u32 %v362, 7
        %v364 = vsub.s32 0, %v363
        %v365 = vrot.slane %v360, %v364
        %v366 = vlaneseq
        %v367 = vshrl.u32 %v366, 7
        %v368 = vsub.s32 1, %v367
        %v369 = vrot.slane %v360, %v368
        %388 = vrot.lane.b32.xlu0 %v340, 64
        %v389 = vpop.permute.xlu0 %388
        %390 = vrot.lane.b32.xlu0 %v341, 64
        %v391 = vpop.permute.xlu0 %390
        %392 = vrot.lane.b32.xlu0 %v342, 64
        %v393 = vpop.permute.xlu0 %392
        %394 = vrot.lane.b32.xlu0 %v343, 64
        %v395 = vpop.permute.xlu0 %394
        %396 = vrot.lane.b32.xlu0 %v344, 64
        %v397 = vpop.permute.xlu0 %396
        %398 = vrot.lane.b32.xlu0 %v345, 64
        %v399 = vpop.permute.xlu0 %398
        %400 = vrot.lane.b32.xlu0 %v346, 64
        %v401 = vpop.permute.xlu0 %400
        %402 = vrot.lane.b32.xlu0 %v347, 64
        %v403 = vpop.permute.xlu0 %402
        %404 = vrot.lane.b32.xlu0 %v348, 64
        %v405 = vpop.permute.xlu0 %404
        %406 = vrot.lane.b32.xlu0 %v349, 64
        %v407 = vpop.permute.xlu0 %406
        %408 = vrot.lane.b32.xlu0 %v350, 64
        %v409 = vpop.permute.xlu0 %408
        %410 = vrot.lane.b32.xlu0 %v351, 64
        %v411 = vpop.permute.xlu0 %410
        %412 = vrot.lane.b32.xlu0 %v352, 64
        %v413 = vpop.permute.xlu0 %412
        %414 = vrot.lane.b32.xlu0 %v353, 64
        %v415 = vpop.permute.xlu0 %414
        %416 = vrot.lane.b32.xlu0 %v354, 64
        %v417 = vpop.permute.xlu0 %416
        %418 = vrot.lane.b32.xlu0 %v355, 64
        %v419 = vpop.permute.xlu0 %418
        %v424 = vunpack.c.l.b16 %v356
        %v425 = vunpack.c.h.b16 %v356
        %v426 = vunpack.c.l.b16 %v357
        %v427 = vunpack.c.h.b16 %v357
        %v428 = vunpack.c.l.b16 %v358
        %v429 = vunpack.c.h.b16 %v358
        %v430 = vunpack.c.l.b16 %v359
        %v431 = vunpack.c.h.b16 %v359
        %v432 = vpack.c.b16 %v426, %v424
        %v433 = vpack.c.b16 %v427, %v425
        %v434 = vpack.c.b16 %v430, %v428
        %v435 = vpack.c.b16 %v431, %v429
        %vm440 = vcmask 261120
        %v442 = vsel %vm440, %v389, 0
        %v445 = vsel %vm440, %v391, 0
        %v448 = vsel %vm440, %v393, 0
        %v451 = vsel %vm440, %v395, 0
        %v454 = vsel %vm440, %v397, 0
        %v457 = vsel %vm440, %v399, 0
        %v460 = vsel %vm440, %v401, 0
        %v463 = vsel %vm440, %v403, 0
        %v466 = vsel %vm440, %v405, 0
        %v469 = vsel %vm440, %v407, 0
        %v472 = vsel %vm440, %v409, 0
        %v475 = vsel %vm440, %v411, 0
        %v478 = vsel %vm440, %v413, 0
        %v481 = vsel %vm440, %v415, 0
        %v484 = vsel %vm440, %v417, 0
        %v487 = vsel %vm440, %v419, 0
        %489 = vmatprep.subr.bf16.mxu0 %v433
        %490 = vmatpush1.bf16.msra.mxu0 %v432
        %491 = vmatprep.subr.bf16.mxu0 %v435
        %492 = vmatpush1.bf16.msra.mxu0 %v434
        %493 = vmatprep.subr.bf16.mxu0 0
        %494 = vmatpush1.bf16.msra.mxu0 0
        %495 = vmatprep.subr.bf16.mxu0 0
        %496 = vmatpush1.bf16.msra.mxu0 0
        %497 = vmatprep.subr.bf16.mxu0 0
        %498 = vmatpush1.bf16.msra.mxu0 0
        %499 = vmatprep.subr.bf16.mxu0 0
        %500 = vmatpush1.bf16.msra.mxu0 0
        %501 = vmatprep.subr.bf16.mxu0 0
        %502 = vmatpush1.bf16.msra.mxu0 0
        %503 = vmatprep.subr.bf16.mxu0 0
        %504 = vmatpush1.bf16.msra.mxu0 0
        %505 = vmatprep.subr.bf16.mxu0 0
        %506 = vmatpush1.bf16.msra.mxu0 0
        %507 = vmatprep.subr.bf16.mxu0 0
        %508 = vmatpush1.bf16.msra.mxu0 0
        %509 = vmatprep.subr.bf16.mxu0 0
        %510 = vmatpush1.bf16.msra.mxu0 0
        %511 = vmatprep.subr.bf16.mxu0 0
        %512 = vmatpush1.bf16.msra.mxu0 0
        %513 = vmatprep.subr.bf16.mxu0 0
        %514 = vmatpush1.bf16.msra.mxu0 0
        %515 = vmatprep.subr.bf16.mxu0 0
        %516 = vmatpush1.bf16.msra.mxu0 0
        %517 = vmatprep.subr.bf16.mxu0 0
        %518 = vmatpush1.bf16.msra.mxu0 0
        %519 = vmatprep.subr.bf16.mxu0 0
        %520 = vmatpush1.bf16.msra.mxu0 0
        %521 = vmatprep.mubr.bf16.mxu0 0
        %522 = vmatmul.mubr.bf16.gmra.mrb[0].mxu0 %v442
        %v523 = vpop.f32.mrb[0].mxu0
        %v524 = vadd.f32 %v365, %v523
        %v525 = vpop.f32.mrb[0].mxu0
        %v526 = vadd.f32 %v369, %v525
        %v527 = vpop.f32.mrb[0].mxu0
        %v528 = vadd.f32 %v365, %v527
        %v529 = vpop.f32.mrb[0].mxu0
        %v530 = vadd.f32 %v369, %v529
        %531 = vmatprep.mubr.bf16.mxu0 0
        %532 = vmatmul.mubr.bf16.gmra.mrb[0].mxu0 %v445
        %v533 = vpop.f32.mrb[0].mxu0
        %v534 = vadd.f32 %v365, %v533
        %v535 = vpop.f32.mrb[0].mxu0
        %v536 = vadd.f32 %v369, %v535
        %v537 = vpop.f32.mrb[0].mxu0
        %v538 = vadd.f32 %v365, %v537
        %v539 = vpop.f32.mrb[0].mxu0
        %v540 = vadd.f32 %v369, %v539
        %541 = vmatprep.mubr.bf16.mxu0 0
        %542 = vmatmul.mubr.bf16.gmra.mrb[0].mxu0 %v448
        %v543 = vpop.f32.mrb[0].mxu0
        %v544 = vadd.f32 %v365, %v543
        %v545 = vpop.f32.mrb[0].mxu0
        %v546 = vadd.f32 %v369, %v545
        %v547 = vpop.f32.mrb[0].mxu0
        %v548 = vadd.f32 %v365, %v547
        %v549 = vpop.f32.mrb[0].mxu0
        %v550 = vadd.f32 %v369, %v549
        %551 = vmatprep.mubr.bf16.mxu0 0
        %552 = vmatmul.mubr.bf16.gmra.mrb[0].mxu0 %v451
        %v553 = vpop.f32.mrb[0].mxu0
        %v554 = vadd.f32 %v365, %v553
        %v555 = vpop.f32.mrb[0].mxu0
        %v556 = vadd.f32 %v369, %v555
        %v557 = vpop.f32.mrb[0].mxu0
        %v558 = vadd.f32 %v365, %v557
        %v559 = vpop.f32.mrb[0].mxu0
        %v560 = vadd.f32 %v369, %v559
        %561 = vmatprep.mubr.bf16.mxu0 0
        %562 = vmatmul.mubr.bf16.gmra.mrb[0].mxu0 %v454
        %v563 = vpop.f32.mrb[0].mxu0
        %v564 = vadd.f32 %v365, %v563
        %v565 = vpop.f32.mrb[0].mxu0
        %v566 = vadd.f32 %v369, %v565
        %v567 = vpop.f32.mrb[0].mxu0
        %v568 = vadd.f32 %v365, %v567
        %v569 = vpop.f32.mrb[0].mxu0
        %v570 = vadd.f32 %v369, %v569
        %571 = vmatprep.mubr.bf16.mxu0 0
        %572 = vmatmul.mubr.bf16.gmra.mrb[0].mxu0 %v457
        %v573 = vpop.f32.mrb[0].mxu0
        %v574 = vadd.f32 %v365, %v573
        %v575 = vpop.f32.mrb[0].mxu0
        %v576 = vadd.f32 %v369, %v575
        %v577 = vpop.f32.mrb[0].mxu0
        %v578 = vadd.f32 %v365, %v577
        %v579 = vpop.f32.mrb[0].mxu0
        %v580 = vadd.f32 %v369, %v579
        %581 = vmatprep.mubr.bf16.mxu0 0
        %582 = vmatmul.mubr.bf16.gmra.mrb[0].mxu0 %v460
        %v583 = vpop.f32.mrb[0].mxu0
        %v584 = vadd.f32 %v365, %v583
        %v585 = vpop.f32.mrb[0].mxu0
        %v586 = vadd.f32 %v369, %v585
        %v587 = vpop.f32.mrb[0].mxu0
        %v588 = vadd.f32 %v365, %v587
        %v589 = vpop.f32.mrb[0].mxu0
        %v590 = vadd.f32 %v369, %v589
        %591 = vmatprep.mubr.bf16.mxu0 0
        %592 = vmatmul.mubr.bf16.gmra.mrb[0].mxu0 %v463
        %v593 = vpop.f32.mrb[0].mxu0
        %v594 = vadd.f32 %v365, %v593
        %v595 = vpop.f32.mrb[0].mxu0
        %v596 = vadd.f32 %v369, %v595
        %v597 = vpop.f32.mrb[0].mxu0
        %v598 = vadd.f32 %v365, %v597
        %v599 = vpop.f32.mrb[0].mxu0
        %v600 = vadd.f32 %v369, %v599
        %601 = vmatprep.mubr.bf16.mxu0 0
        %602 = vmatmul.mubr.bf16.gmra.mrb[0].mxu0 %v466
        %v603 = vpop.f32.mrb[0].mxu0
        %v604 = vadd.f32 %v365, %v603
        %v605 = vpop.f32.mrb[0].mxu0
        %v606 = vadd.f32 %v369, %v605
        %v607 = vpop.f32.mrb[0].mxu0
        %v608 = vadd.f32 %v365, %v607
        %v609 = vpop.f32.mrb[0].mxu0
        %v610 = vadd.f32 %v369, %v609
        %611 = vmatprep.mubr.bf16.mxu0 0
        %612 = vmatmul.mubr.bf16.gmra.mrb[0].mxu0 %v469
        %v613 = vpop.f32.mrb[0].mxu0
        %v614 = vadd.f32 %v365, %v613
        %v615 = vpop.f32.mrb[0].mxu0
        %v616 = vadd.f32 %v369, %v615
        %v617 = vpop.f32.mrb[0].mxu0
        %v618 = vadd.f32 %v365, %v617
        %v619 = vpop.f32.mrb[0].mxu0
        %v620 = vadd.f32 %v369, %v619
        %621 = vmatprep.mubr.bf16.mxu0 0
        %622 = vmatmul.mubr.bf16.gmra.mrb[0].mxu0 %v472
        %v623 = vpop.f32.mrb[0].mxu0
        %v624 = vadd.f32 %v365, %v623
        %v625 = vpop.f32.mrb[0].mxu0
        %v626 = vadd.f32 %v369, %v625
        %v627 = vpop.f32.mrb[0].mxu0
        %v628 = vadd.f32 %v365, %v627
        %v629 = vpop.f32.mrb[0].mxu0
        %v630 = vadd.f32 %v369, %v629
        %631 = vmatprep.mubr.bf16.mxu0 0
        %632 = vmatmul.mubr.bf16.gmra.mrb[0].mxu0 %v475
        %v633 = vpop.f32.mrb[0].mxu0
        %v634 = vadd.f32 %v365, %v633
        %v635 = vpop.f32.mrb[0].mxu0
        %v636 = vadd.f32 %v369, %v635
        %v637 = vpop.f32.mrb[0].mxu0
        %v638 = vadd.f32 %v365, %v637
        %v639 = vpop.f32.mrb[0].mxu0
        %v640 = vadd.f32 %v369, %v639
        %641 = vmatprep.mubr.bf16.mxu0 0
        %642 = vmatmul.mubr.bf16.gmra.mrb[0].mxu0 %v478
        %v643 = vpop.f32.mrb[0].mxu0
        %v644 = vadd.f32 %v365, %v643
        %v645 = vpop.f32.mrb[0].mxu0
        %v646 = vadd.f32 %v369, %v645
        %v647 = vpop.f32.mrb[0].mxu0
        %v648 = vadd.f32 %v365, %v647
        %v649 = vpop.f32.mrb[0].mxu0
        %v650 = vadd.f32 %v369, %v649
        %651 = vmatprep.mubr.bf16.mxu0 0
        %652 = vmatmul.mubr.bf16.gmra.mrb[0].mxu0 %v481
        %v653 = vpop.f32.mrb[0].mxu0
        %v654 = vadd.f32 %v365, %v653
        %v655 = vpop.f32.mrb[0].mxu0
        %v656 = vadd.f32 %v369, %v655
        %v657 = vpop.f32.mrb[0].mxu0
        %v658 = vadd.f32 %v365, %v657
        %v659 = vpop.f32.mrb[0].mxu0
        %v660 = vadd.f32 %v369, %v659
        %661 = vmatprep.mubr.bf16.mxu0 0
        %662 = vmatmul.mubr.bf16.gmra.mrb[0].mxu0 %v484
        %v663 = vpop.f32.mrb[0].mxu0
        %v664 = vadd.f32 %v365, %v663
        %v665 = vpop.f32.mrb[0].mxu0
        %v666 = vadd.f32 %v369, %v665
        %v667 = vpop.f32.mrb[0].mxu0
        %v668 = vadd.f32 %v365, %v667
        %v669 = vpop.f32.mrb[0].mxu0
        %v670 = vadd.f32 %v369, %v669
        %671 = vmatprep.mubr.bf16.mxu0 0
        %672 = vmatmul.mubr.bf16.gmra.mrb[0].mxu0 %v487
        %v673 = vpop.f32.mrb[0].mxu0
        %v674 = vadd.f32 %v365, %v673
        %v675 = vpop.f32.mrb[0].mxu0
        %v676 = vadd.f32 %v369, %v675
        %v677 = vpop.f32.mrb[0].mxu0
        %v678 = vadd.f32 %v365, %v677
        %v679 = vpop.f32.mrb[0].mxu0
        %v680 = vadd.f32 %v369, %v679
        %681 = vdwg.mxu0
        %v682 = vld [vmem:[%s3] sm:$0xf]
        %v683 = vld [vmem:[%s3 + $0x4] sm:$0xf]
        %v684 = vld [vmem:[%s3 + $0x8] sm:$0xf]
        %v685 = vld [vmem:[%s3 + $0xc] sm:$0xf]
        %v686 = vld [vmem:[%s3 + $0x10] sm:$0xf]
        %v687 = vld [vmem:[%s3 + $0x14] sm:$0xf]
        %v688 = vld [vmem:[%s3 + $0x18] sm:$0xf]
        %v689 = vld [vmem:[%s3 + $0x1c] sm:$0xf]
        %v690 = vld [vmem:[%s4] sm:$0xf]
        %v691 = vld [vmem:[%s4 + $0x4] sm:$0xf]
        %v692 = vld [vmem:[%s4 + $0x8] sm:$0xf]
        %v693 = vld [vmem:[%s4 + $0xc] sm:$0xf]
        %v694 = vld [vmem:[%s4 + $0x10] sm:$0xf]
        %v695 = vld [vmem:[%s4 + $0x14] sm:$0xf]
        %v696 = vld [vmem:[%s4 + $0x18] sm:$0xf]
        %v697 = vld [vmem:[%s4 + $0x1c] sm:$0xf]
        %v706 = vunpack.c.l.b16 %v682
        %v707 = vunpack.c.l.b16 %v683
        %v708 = vunpack.c.l.b16 %v684
        %v709 = vunpack.c.l.b16 %v685
        %v710 = vunpack.c.l.b16 %v686
        %v711 = vunpack.c.l.b16 %v687
        %v712 = vunpack.c.l.b16 %v688
        %v713 = vunpack.c.l.b16 %v689
        %v714 = vpack.c.b16 %v707, %v706
        %v715 = vpack.c.b16 %v709, %v708
        %v716 = vpack.c.b16 %v711, %v710
        %v717 = vpack.c.b16 %v713, %v712
        %vm722 = vcmask 523264
        %v724 = vsel %vm722, %v340, 0
        %v727 = vsel %vm722, %v341, 0
        %v730 = vsel %vm722, %v342, 0
        %v733 = vsel %vm722, %v343, 0
        %v736 = vsel %vm722, %v344, 0
        %v739 = vsel %vm722, %v345, 0
        %v742 = vsel %vm722, %v346, 0
        %v745 = vsel %vm722, %v347, 0
        %v748 = vsel %vm722, %v348, 0
        %v751 = vsel %vm722, %v349, 0
        %v754 = vsel %vm722, %v350, 0
        %v757 = vsel %vm722, %v351, 0
        %v760 = vsel %vm722, %v352, 0
        %v763 = vsel %vm722, %v353, 0
        %v766 = vsel %vm722, %v354, 0
        %v769 = vsel %vm722, %v355, 0
        %771 = vmatprep.subr.bf16.mxu0 0
        %772 = vmatpush1.bf16.msra.mxu0 %v714
        %773 = vmatprep.subr.bf16.mxu0 0
        %774 = vmatpush1.bf16.msra.mxu0 %v715
        %775 = vmatprep.subr.bf16.mxu0 0
        %776 = vmatpush1.bf16.msra.mxu0 %v716
        %777 = vmatprep.subr.bf16.mxu0 0
        %778 = vmatpush1.bf16.msra.mxu0 %v717
        %779 = vmatprep.subr.bf16.mxu0 0
        %780 = vmatpush1.bf16.msra.mxu0 0
        %781 = vmatprep.subr.bf16.mxu0 0
        %782 = vmatpush1.bf16.msra.mxu0 0
        %783 = vmatprep.subr.bf16.mxu0 0
        %784 = vmatpush1.bf16.msra.mxu0 0
        %785 = vmatprep.subr.bf16.mxu0 0
        %786 = vmatpush1.bf16.msra.mxu0 0
        %787 = vmatprep.subr.bf16.mxu0 0
        %788 = vmatpush1.bf16.msra.mxu0 0
        %789 = vmatprep.subr.bf16.mxu0 0
        %790 = vmatpush1.bf16.msra.mxu0 0
        %791 = vmatprep.subr.bf16.mxu0 0
        %792 = vmatpush1.bf16.msra.mxu0 0
        %793 = vmatprep.subr.bf16.mxu0 0
        %794 = vmatpush1.bf16.msra.mxu0 0
        %795 = vmatprep.subr.bf16.mxu0 0
        %796 = vmatpush1.bf16.msra.mxu0 0
        %797 = vmatprep.subr.bf16.mxu0 0
        %798 = vmatpush1.bf16.msra.mxu0 0
        %799 = vmatprep.subr.bf16.mxu0 0
        %800 = vmatpush1.bf16.msra.mxu0 0
        %801 = vmatprep.subr.bf16.mxu0 0
        %802 = vmatpush1.bf16.msra.mxu0 0
        %803 = vmatprep.mubr.bf16.mxu0 0
        %804 = vmatmul.mubr.bf16.gmra.mrb[0].mxu0 %v724
        %v805 = vpop.f32.mrb[0].mxu0
        %v806 = vadd.f32 %v524, %v805
        %v807 = vpop.f32.mrb[0].mxu0
        %v808 = vpop.f32.mrb[0].mxu0
        %v809 = vadd.f32 %v528, %v808
        %v810 = vpop.f32.mrb[0].mxu0
        %811 = vmatprep.mubr.bf16.mxu0 0
        %812 = vmatmul.mubr.bf16.gmra.mrb[0].mxu0 %v727
        %v813 = vpop.f32.mrb[0].mxu0
        %v814 = vadd.f32 %v534, %v813
        %v815 = vpop.f32.mrb[0].mxu0
        %v816 = vpop.f32.mrb[0].mxu0
        %v817 = vadd.f32 %v538, %v816
        %v818 = vpop.f32.mrb[0].mxu0
        %819 = vmatprep.mubr.bf16.mxu0 0
        %820 = vmatmul.mubr.bf16.gmra.mrb[0].mxu0 %v730
        %v821 = vpop.f32.mrb[0].mxu0
        %v822 = vadd.f32 %v544, %v821
        %v823 = vpop.f32.mrb[0].mxu0
        %v824 = vpop.f32.mrb[0].mxu0
        %v825 = vadd.f32 %v548, %v824
        %v826 = vpop.f32.mrb[0].mxu0
        %827 = vmatprep.mubr.bf16.mxu0 0
        %828 = vmatmul.mubr.bf16.gmra.mrb[0].mxu0 %v733
        %v829 = vpop.f32.mrb[0].mxu0
        %v830 = vadd.f32 %v554, %v829
        %v831 = vpop.f32.mrb[0].mxu0
        %v832 = vpop.f32.mrb[0].mxu0
        %v833 = vadd.f32 %v558, %v832
        %v834 = vpop.f32.mrb[0].mxu0
        %835 = vmatprep.mubr.bf16.mxu0 0
        %836 = vmatmul.mubr.bf16.gmra.mrb[0].mxu0 %v736
        %v837 = vpop.f32.mrb[0].mxu0
        %v838 = vadd.f32 %v564, %v837
        %v839 = vpop.f32.mrb[0].mxu0
        %v840 = vpop.f32.mrb[0].mxu0
        %v841 = vadd.f32 %v568, %v840
        %v842 = vpop.f32.mrb[0].mxu0
        %843 = vmatprep.mubr.bf16.mxu0 0
        %844 = vmatmul.mubr.bf16.gmra.mrb[0].mxu0 %v739
        %v845 = vpop.f32.mrb[0].mxu0
        %v846 = vadd.f32 %v574, %v845
        %v847 = vpop.f32.mrb[0].mxu0
        %v848 = vpop.f32.mrb[0].mxu0
        %v849 = vadd.f32 %v578, %v848
        %v850 = vpop.f32.mrb[0].mxu0
        %851 = vmatprep.mubr.bf16.mxu0 0
        %852 = vmatmul.mubr.bf16.gmra.mrb[0].mxu0 %v742
        %v853 = vpop.f32.mrb[0].mxu0
        %v854 = vadd.f32 %v584, %v853
        %v855 = vpop.f32.mrb[0].mxu0
        %v856 = vpop.f32.mrb[0].mxu0
        %v857 = vadd.f32 %v588, %v856
        %v858 = vpop.f32.mrb[0].mxu0
        %859 = vmatprep.mubr.bf16.mxu0 0
        %860 = vmatmul.mubr.bf16.gmra.mrb[0].mxu0 %v745
        %v861 = vpop.f32.mrb[0].mxu0
        %v862 = vadd.f32 %v594, %v861
        %v863 = vpop.f32.mrb[0].mxu0
        %v864 = vpop.f32.mrb[0].mxu0
        %v865 = vadd.f32 %v598, %v864
        %v866 = vpop.f32.mrb[0].mxu0
        %867 = vmatprep.mubr.bf16.mxu0 0
        %868 = vmatmul.mubr.bf16.gmra.mrb[0].mxu0 %v748
        %v869 = vpop.f32.mrb[0].mxu0
        %v870 = vadd.f32 %v604, %v869
        %v871 = vpop.f32.mrb[0].mxu0
        %v872 = vpop.f32.mrb[0].mxu0
        %v873 = vadd.f32 %v608, %v872
        %v874 = vpop.f32.mrb[0].mxu0
        %875 = vmatprep.mubr.bf16.mxu0 0
        %876 = vmatmul.mubr.bf16.gmra.mrb[0].mxu0 %v751
        %v877 = vpop.f32.mrb[0].mxu0
        %v878 = vadd.f32 %v614, %v877
        %v879 = vpop.f32.mrb[0].mxu0
        %v880 = vpop.f32.mrb[0].mxu0
        %v881 = vadd.f32 %v618, %v880
        %v882 = vpop.f32.mrb[0].mxu0
        %883 = vmatprep.mubr.bf16.mxu0 0
        %884 = vmatmul.mubr.bf16.gmra.mrb[0].mxu0 %v754
        %v885 = vpop.f32.mrb[0].mxu0
        %v886 = vadd.f32 %v624, %v885
        %v887 = vpop.f32.mrb[0].mxu0
        %v888 = vpop.f32.mrb[0].mxu0
        %v889 = vadd.f32 %v628, %v888
        %v890 = vpop.f32.mrb[0].mxu0
        %891 = vmatprep.mubr.bf16.mxu0 0
        %892 = vmatmul.mubr.bf16.gmra.mrb[0].mxu0 %v757
        %v893 = vpop.f32.mrb[0].mxu0
        %v894 = vadd.f32 %v634, %v893
        %v895 = vpop.f32.mrb[0].mxu0
        %v896 = vpop.f32.mrb[0].mxu0
        %v897 = vadd.f32 %v638, %v896
        %v898 = vpop.f32.mrb[0].mxu0
        %899 = vmatprep.mubr.bf16.mxu0 0
        %900 = vmatmul.mubr.bf16.gmra.mrb[0].mxu0 %v760
        %v901 = vpop.f32.mrb[0].mxu0
        %v902 = vadd.f32 %v644, %v901
        %v903 = vpop.f32.mrb[0].mxu0
        %v904 = vpop.f32.mrb[0].mxu0
        %v905 = vadd.f32 %v648, %v904
        %v906 = vpop.f32.mrb[0].mxu0
        %907 = vmatprep.mubr.bf16.mxu0 0
        %908 = vmatmul.mubr.bf16.gmra.mrb[0].mxu0 %v763
        %v909 = vpop.f32.mrb[0].mxu0
        %v910 = vadd.f32 %v654, %v909
        %v911 = vpop.f32.mrb[0].mxu0
        %v912 = vpop.f32.mrb[0].mxu0
        %v913 = vadd.f32 %v658, %v912
        %v914 = vpop.f32.mrb[0].mxu0
        %915 = vmatprep.mubr.bf16.mxu0 0
        %916 = vmatmul.mubr.bf16.gmra.mrb[0].mxu0 %v766
        %v917 = vpop.f32.mrb[0].mxu0
        %v918 = vadd.f32 %v664, %v917
        %v919 = vpop.f32.mrb[0].mxu0
        %v920 = vpop.f32.mrb[0].mxu0
        %v921 = vadd.f32 %v668, %v920
        %v922 = vpop.f32.mrb[0].mxu0
        %923 = vmatprep.mubr.bf16.mxu0 0
        %924 = vmatmul.mubr.bf16.gmra.mrb[0].mxu0 %v769
        %v925 = vpop.f32.mrb[0].mxu0
        %v926 = vadd.f32 %v674, %v925
        %v927 = vpop.f32.mrb[0].mxu0
        %v928 = vpop.f32.mrb[0].mxu0
        %v929 = vadd.f32 %v678, %v928
        %v930 = vpop.f32.mrb[0].mxu0
        %931 = vdwg.mxu0
        %v932 = vxor.u32 %v806, 2147483648
        %v933 = vxor.u32 %v809, 2147483648
        %v934 = vxor.u32 %v814, 2147483648
        %v935 = vxor.u32 %v817, 2147483648
        %v936 = vxor.u32 %v822, 2147483648
        %v937 = vxor.u32 %v825, 2147483648
        %v938 = vxor.u32 %v830, 2147483648
        %v939 = vxor.u32 %v833, 2147483648
        %v940 = vxor.u32 %v838, 2147483648
        %v941 = vxor.u32 %v841, 2147483648
        %v942 = vxor.u32 %v846, 2147483648
        %v943 = vxor.u32 %v849, 2147483648
        %v944 = vxor.u32 %v854, 2147483648
        %v945 = vxor.u32 %v857, 2147483648
        %v946 = vxor.u32 %v862, 2147483648
        %v947 = vxor.u32 %v865, 2147483648
        %v948 = vxor.u32 %v870, 2147483648
        %v949 = vxor.u32 %v873, 2147483648
        %v950 = vxor.u32 %v878, 2147483648
        %v951 = vxor.u32 %v881, 2147483648
        %v952 = vxor.u32 %v886, 2147483648
        %v953 = vxor.u32 %v889, 2147483648
        %v954 = vxor.u32 %v894, 2147483648
        %v955 = vxor.u32 %v897, 2147483648
        %v956 = vxor.u32 %v902, 2147483648
        %v957 = vxor.u32 %v905, 2147483648
        %v958 = vxor.u32 %v910, 2147483648
        %v959 = vxor.u32 %v913, 2147483648
        %v960 = vxor.u32 %v918, 2147483648
        %v961 = vxor.u32 %v921, 2147483648
        %v962 = vxor.u32 %v926, 2147483648
        %v963 = vxor.u32 %v929, 2147483648
        %v964 = vmul.f32 %v932, 1.442695
        %v965 = vpow.pop %v964
        %v966 = vmul.f32 %v933, 1.442695
        %v967 = vpow.pop %v966
        %v968 = vmul.f32 %v934, 1.442695
        %v969 = vpow.pop %v968
        %v970 = vmul.f32 %v935, 1.442695
        %v971 = vpow.pop %v970
        %v972 = vmul.f32 %v936, 1.442695
        %v973 = vpow.pop %v972
        %v974 = vmul.f32 %v937, 1.442695
        %v975 = vpow.pop %v974
        %v976 = vmul.f32 %v938, 1.442695
        %v977 = vpow.pop %v976
        %v978 = vmul.f32 %v939, 1.442695
        %v979 = vpow.pop %v978
        %v980 = vmul.f32 %v940, 1.442695
        %v981 = vpow.pop %v980
        %v982 = vmul.f32 %v941, 1.442695
        %v983 = vpow.pop %v982
        %v984 = vmul.f32 %v942, 1.442695
        %v985 = vpow.pop %v984
        %v986 = vmul.f32 %v943, 1.442695
        %v987 = vpow.pop %v986
        %v988 = vmul.f32 %v944, 1.442695
        %v989 = vpow.pop %v988
        %v990 = vmul.f32 %v945, 1.442695
        %v991 = vpow.pop %v990
        %v992 = vmul.f32 %v946, 1.442695
        %v993 = vpow.pop %v992
        %v994 = vmul.f32 %v947, 1.442695
        %v995 = vpow.pop %v994
        %v996 = vmul.f32 %v948, 1.442695
        %v997 = vpow.pop %v996
        %v998 = vmul.f32 %v949, 1.442695
        %v999 = vpow.pop %v998
        %v1000 = vmul.f32 %v950, 1.442695
        %v1001 = vpow.pop %v1000
        %v1002 = vmul.f32 %v951, 1.442695
        %v1003 = vpow.pop %v1002
        %v1004 = vmul.f32 %v952, 1.442695
        %v1005 = vpow.pop %v1004
        %v1006 = vmul.f32 %v953, 1.442695
        %v1007 = vpow.pop %v1006
        %v1008 = vmul.f32 %v954, 1.442695
        %v1009 = vpow.pop %v1008
        %v1010 = vmul.f32 %v955, 1.442695
        %v1011 = vpow.pop %v1010
        %v1012 = vmul.f32 %v956, 1.442695
        %v1013 = vpow.pop %v1012
        %v1014 = vmul.f32 %v957, 1.442695
        %v1015 = vpow.pop %v1014
        %v1016 = vmul.f32 %v958, 1.442695
        %v1017 = vpow.pop %v1016
        %v1018 = vmul.f32 %v959, 1.442695
        %v1019 = vpow.pop %v1018
        %v1020 = vmul.f32 %v960, 1.442695
        %v1021 = vpow.pop %v1020
        %v1022 = vmul.f32 %v961, 1.442695
        %v1023 = vpow.pop %v1022
        %v1024 = vmul.f32 %v962, 1.442695
        %v1025 = vpow.pop %v1024
        %v1026 = vmul.f32 %v963, 1.442695
        %v1027 = vpow.pop %v1026
        %v1028 = vadd.f32 %v965, 1.0
        %v1029 = vadd.f32 %v967, 1.0
        %v1030 = vadd.f32 %v969, 1.0
        %v1031 = vadd.f32 %v971, 1.0
        %v1032 = vadd.f32 %v973, 1.0
        %v1033 = vadd.f32 %v975, 1.0
        %v1034 = vadd.f32 %v977, 1.0
        %v1035 = vadd.f32 %v979, 1.0
        %v1036 = vadd.f32 %v981, 1.0
        %v1037 = vadd.f32 %v983, 1.0
        %v1038 = vadd.f32 %v985, 1.0
        %v1039 = vadd.f32 %v987, 1.0
        %v1040 = vadd.f32 %v989, 1.0
        %v1041 = vadd.f32 %v991, 1.0
        %v1042 = vadd.f32 %v993, 1.0
        %v1043 = vadd.f32 %v995, 1.0
        %v1044 = vadd.f32 %v997, 1.0
        %v1045 = vadd.f32 %v999, 1.0
        %v1046 = vadd.f32 %v1001, 1.0
        %v1047 = vadd.f32 %v1003, 1.0
        %v1048 = vadd.f32 %v1005, 1.0
        %v1049 = vadd.f32 %v1007, 1.0
        %v1050 = vadd.f32 %v1009, 1.0
        %v1051 = vadd.f32 %v1011, 1.0
        %v1052 = vadd.f32 %v1013, 1.0
        %v1053 = vadd.f32 %v1015, 1.0
        %v1054 = vadd.f32 %v1017, 1.0
        %v1055 = vadd.f32 %v1019, 1.0
        %v1056 = vadd.f32 %v1021, 1.0
        %v1057 = vadd.f32 %v1023, 1.0
        %v1058 = vadd.f32 %v1025, 1.0
        %v1059 = vadd.f32 %v1027, 1.0
        %v1060 = vrcp.pop %v1028
        %v1061 = vmul.f32 1.0, %v1060
        %v1062 = vrcp.pop %v1029
        %v1063 = vmul.f32 1.0, %v1062
        %v1064 = vrcp.pop %v1030
        %v1065 = vmul.f32 1.0, %v1064
        %v1066 = vrcp.pop %v1031
        %v1067 = vmul.f32 1.0, %v1066
        %v1068 = vrcp.pop %v1032
        %v1069 = vmul.f32 1.0, %v1068
        %v1070 = vrcp.pop %v1033
        %v1071 = vmul.f32 1.0, %v1070
        %v1072 = vrcp.pop %v1034
        %v1073 = vmul.f32 1.0, %v1072
        %v1074 = vrcp.pop %v1035
        %v1075 = vmul.f32 1.0, %v1074
        %v1076 = vrcp.pop %v1036
        %v1077 = vmul.f32 1.0, %v1076
        %v1078 = vrcp.pop %v1037
        %v1079 = vmul.f32 1.0, %v1078
        %v1080 = vrcp.pop %v1038
        %v1081 = vmul.f32 1.0, %v1080
        %v1082 = vrcp.pop %v1039
        %v1083 = vmul.f32 1.0, %v1082
        %v1084 = vrcp.pop %v1040
        %v1085 = vmul.f32 1.0, %v1084
        %v1086 = vrcp.pop %v1041
        %v1087 = vmul.f32 1.0, %v1086
        %v1088 = vrcp.pop %v1042
        %v1089 = vmul.f32 1.0, %v1088
        %v1090 = vrcp.pop %v1043
        %v1091 = vmul.f32 1.0, %v1090
        %v1092 = vrcp.pop %v1044
        %v1093 = vmul.f32 1.0, %v1092
        %v1094 = vrcp.pop %v1045
        %v1095 = vmul.f32 1.0, %v1094
        %v1096 = vrcp.pop %v1046
        %v1097 = vmul.f32 1.0, %v1096
        %v1098 = vrcp.pop %v1047
        %v1099 = vmul.f32 1.0, %v1098
        %v1100 = vrcp.pop %v1048
        %v1101 = vmul.f32 1.0, %v1100
        %v1102 = vrcp.pop %v1049
        %v1103 = vmul.f32 1.0, %v1102
        %v1104 = vrcp.pop %v1050
        %v1105 = vmul.f32 1.0, %v1104
        %v1106 = vrcp.pop %v1051
        %v1107 = vmul.f32 1.0, %v1106
        %v1108 = vrcp.pop %v1052
        %v1109 = vmul.f32 1.0, %v1108
        %v1110 = vrcp.pop %v1053
        %v1111 = vmul.f32 1.0, %v1110
        %v1112 = vrcp.pop %v1054
        %v1113 = vmul.f32 1.0, %v1112
        %v1114 = vrcp.pop %v1055
        %v1115 = vmul.f32 1.0, %v1114
        %v1116 = vrcp.pop %v1056
        %v1117 = vmul.f32 1.0, %v1116
        %v1118 = vrcp.pop %v1057
        %v1119 = vmul.f32 1.0, %v1118
        %v1120 = vrcp.pop %v1058
        %v1121 = vmul.f32 1.0, %v1120
        %v1122 = vrcp.pop %v1059
        %v1123 = vmul.f32 1.0, %v1122
        %1156 = vrot.lane.b32.xlu0 %v308, 64
        %v1157 = vpop.permute.xlu0 %1156
        %1158 = vrot.lane.b32.xlu0 %v309, 64
        %v1159 = vpop.permute.xlu0 %1158
        %1160 = vrot.lane.b32.xlu0 %v310, 64
        %v1161 = vpop.permute.xlu0 %1160
        %1162 = vrot.lane.b32.xlu0 %v311, 64
        %v1163 = vpop.permute.xlu0 %1162
        %1164 = vrot.lane.b32.xlu0 %v312, 64
        %v1165 = vpop.permute.xlu0 %1164
        %1166 = vrot.lane.b32.xlu0 %v313, 64
        %v1167 = vpop.permute.xlu0 %1166
        %1168 = vrot.lane.b32.xlu0 %v314, 64
        %v1169 = vpop.permute.xlu0 %1168
        %1170 = vrot.lane.b32.xlu0 %v315, 64
        %v1171 = vpop.permute.xlu0 %1170
        %1172 = vrot.lane.b32.xlu0 %v316, 64
        %v1173 = vpop.permute.xlu0 %1172
        %1174 = vrot.lane.b32.xlu0 %v317, 64
        %v1175 = vpop.permute.xlu0 %1174
        %1176 = vrot.lane.b32.xlu0 %v318, 64
        %v1177 = vpop.permute.xlu0 %1176
        %1178 = vrot.lane.b32.xlu0 %v319, 64
        %v1179 = vpop.permute.xlu0 %1178
        %1180 = vrot.lane.b32.xlu0 %v320, 64
        %v1181 = vpop.permute.xlu0 %1180
        %1182 = vrot.lane.b32.xlu0 %v321, 64
        %v1183 = vpop.permute.xlu0 %1182
        %1184 = vrot.lane.b32.xlu0 %v322, 64
        %v1185 = vpop.permute.xlu0 %1184
        %1186 = vrot.lane.b32.xlu0 %v323, 64
        %v1187 = vpop.permute.xlu0 %1186
        %1188 = vrot.lane.b32.xlu0 %v324, 64
        %v1189 = vpop.permute.xlu0 %1188
        %1190 = vrot.lane.b32.xlu0 %v325, 64
        %v1191 = vpop.permute.xlu0 %1190
        %1192 = vrot.lane.b32.xlu0 %v326, 64
        %v1193 = vpop.permute.xlu0 %1192
        %1194 = vrot.lane.b32.xlu0 %v327, 64
        %v1195 = vpop.permute.xlu0 %1194
        %1196 = vrot.lane.b32.xlu0 %v328, 64
        %v1197 = vpop.permute.xlu0 %1196
        %1198 = vrot.lane.b32.xlu0 %v329, 64
        %v1199 = vpop.permute.xlu0 %1198
        %1200 = vrot.lane.b32.xlu0 %v330, 64
        %v1201 = vpop.permute.xlu0 %1200
        %1202 = vrot.lane.b32.xlu0 %v331, 64
        %v1203 = vpop.permute.xlu0 %1202
        %1204 = vrot.lane.b32.xlu0 %v332, 64
        %v1205 = vpop.permute.xlu0 %1204
        %1206 = vrot.lane.b32.xlu0 %v333, 64
        %v1207 = vpop.permute.xlu0 %1206
        %1208 = vrot.lane.b32.xlu0 %v334, 64
        %v1209 = vpop.permute.xlu0 %1208
        %1210 = vrot.lane.b32.xlu0 %v335, 64
        %v1211 = vpop.permute.xlu0 %1210
        %1212 = vrot.lane.b32.xlu0 %v336, 64
        %v1213 = vpop.permute.xlu0 %1212
        %1214 = vrot.lane.b32.xlu0 %v337, 64
        %v1215 = vpop.permute.xlu0 %1214
        %1216 = vrot.lane.b32.xlu0 %v338, 64
        %v1217 = vpop.permute.xlu0 %1216
        %1218 = vrot.lane.b32.xlu0 %v339, 64
        %v1219 = vpop.permute.xlu0 %1218
        %v1252 = vmul.f32 %v1061, %v1157
        %v1253 = vmul.f32 %v1063, %v1159
        %v1254 = vmul.f32 %v1065, %v1161
        %v1255 = vmul.f32 %v1067, %v1163
        %v1256 = vmul.f32 %v1069, %v1165
        %v1257 = vmul.f32 %v1071, %v1167
        %v1258 = vmul.f32 %v1073, %v1169
        %v1259 = vmul.f32 %v1075, %v1171
        %v1260 = vmul.f32 %v1077, %v1173
        %v1261 = vmul.f32 %v1079, %v1175
        %v1262 = vmul.f32 %v1081, %v1177
        %v1263 = vmul.f32 %v1083, %v1179
        %v1264 = vmul.f32 %v1085, %v1181
        %v1265 = vmul.f32 %v1087, %v1183
        %v1266 = vmul.f32 %v1089, %v1185
        %v1267 = vmul.f32 %v1091, %v1187
        %v1268 = vmul.f32 %v1093, %v1189
        %v1269 = vmul.f32 %v1095, %v1191
        %v1270 = vmul.f32 %v1097, %v1193
        %v1271 = vmul.f32 %v1099, %v1195
        %v1272 = vmul.f32 %v1101, %v1197
        %v1273 = vmul.f32 %v1103, %v1199
        %v1274 = vmul.f32 %v1105, %v1201
        %v1275 = vmul.f32 %v1107, %v1203
        %v1276 = vmul.f32 %v1109, %v1205
        %v1277 = vmul.f32 %v1111, %v1207
        %v1278 = vmul.f32 %v1113, %v1209
        %v1279 = vmul.f32 %v1115, %v1211
        %v1280 = vmul.f32 %v1117, %v1213
        %v1281 = vmul.f32 %v1119, %v1215
        %v1282 = vmul.f32 %v1121, %v1217
        %v1283 = vmul.f32 %v1123, %v1219
        %v1284 = vpack.c.bf16 %v1253, %v1252
        %v1285 = vpack.c.bf16 %v1255, %v1254
        %v1286 = vpack.c.bf16 %v1257, %v1256
        %v1287 = vpack.c.bf16 %v1259, %v1258
        %v1288 = vpack.c.bf16 %v1261, %v1260
        %v1289 = vpack.c.bf16 %v1263, %v1262
        %v1290 = vpack.c.bf16 %v1265, %v1264
        %v1291 = vpack.c.bf16 %v1267, %v1266
        %v1292 = vpack.c.bf16 %v1269, %v1268
        %v1293 = vpack.c.bf16 %v1271, %v1270
        %v1294 = vpack.c.bf16 %v1273, %v1272
        %v1295 = vpack.c.bf16 %v1275, %v1274
        %v1296 = vpack.c.bf16 %v1277, %v1276
        %v1297 = vpack.c.bf16 %v1279, %v1278
        %v1298 = vpack.c.bf16 %v1281, %v1280
        %v1299 = vpack.c.bf16 %v1283, %v1282
        %1316 = vrot.lane.b32.xlu0 %v1284, 64
        %v1317 = vpop.permute.xlu0 %1316
        %1318 = vrot.lane.b32.xlu0 %v1285, 64
        %v1319 = vpop.permute.xlu0 %1318
        %1320 = vrot.lane.b32.xlu0 %v1286, 64
        %v1321 = vpop.permute.xlu0 %1320
        %1322 = vrot.lane.b32.xlu0 %v1287, 64
        %v1323 = vpop.permute.xlu0 %1322
        %1324 = vrot.lane.b32.xlu0 %v1288, 64
        %v1325 = vpop.permute.xlu0 %1324
        %1326 = vrot.lane.b32.xlu0 %v1289, 64
        %v1327 = vpop.permute.xlu0 %1326
        %1328 = vrot.lane.b32.xlu0 %v1290, 64
        %v1329 = vpop.permute.xlu0 %1328
        %1330 = vrot.lane.b32.xlu0 %v1291, 64
        %v1331 = vpop.permute.xlu0 %1330
        %1332 = vrot.lane.b32.xlu0 %v1292, 64
        %v1333 = vpop.permute.xlu0 %1332
        %1334 = vrot.lane.b32.xlu0 %v1293, 64
        %v1335 = vpop.permute.xlu0 %1334
        %1336 = vrot.lane.b32.xlu0 %v1294, 64
        %v1337 = vpop.permute.xlu0 %1336
        %1338 = vrot.lane.b32.xlu0 %v1295, 64
        %v1339 = vpop.permute.xlu0 %1338
        %1340 = vrot.lane.b32.xlu0 %v1296, 64
        %v1341 = vpop.permute.xlu0 %1340
        %1342 = vrot.lane.b32.xlu0 %v1297, 64
        %v1343 = vpop.permute.xlu0 %1342
        %1344 = vrot.lane.b32.xlu0 %v1298, 64
        %v1345 = vpop.permute.xlu0 %1344
        %1346 = vrot.lane.b32.xlu0 %v1299, 64
        %v1347 = vpop.permute.xlu0 %1346
        %v1356 = vunpack.c.l.b16 %v690
        %v1357 = vunpack.c.l.b16 %v691
        %v1358 = vunpack.c.l.b16 %v692
        %v1359 = vunpack.c.l.b16 %v693
        %v1360 = vunpack.c.l.b16 %v694
        %v1361 = vunpack.c.l.b16 %v695
        %v1362 = vunpack.c.l.b16 %v696
        %v1363 = vunpack.c.l.b16 %v697
        %v1364 = vpack.c.b16 %v1357, %v1356
        %v1365 = vpack.c.b16 %v1359, %v1358
        %v1366 = vpack.c.b16 %v1361, %v1360
        %v1367 = vpack.c.b16 %v1363, %v1362
        %v1373 = vsel %vm722, %v1317, 0
        %v1376 = vsel %vm722, %v1319, 0
        %v1379 = vsel %vm722, %v1321, 0
        %v1382 = vsel %vm722, %v1323, 0
        %v1385 = vsel %vm722, %v1325, 0
        %v1388 = vsel %vm722, %v1327, 0
        %v1391 = vsel %vm722, %v1329, 0
        %v1394 = vsel %vm722, %v1331, 0
        %v1397 = vsel %vm722, %v1333, 0
        %v1400 = vsel %vm722, %v1335, 0
        %v1403 = vsel %vm722, %v1337, 0
        %v1406 = vsel %vm722, %v1339, 0
        %v1409 = vsel %vm722, %v1341, 0
        %v1412 = vsel %vm722, %v1343, 0
        %v1415 = vsel %vm722, %v1345, 0
        %v1418 = vsel %vm722, %v1347, 0
        %1420 = vmatprep.subr.bf16.mxu0 0
        %1421 = vmatpush1.bf16.msra.mxu0 %v1364
        %1422 = vmatprep.subr.bf16.mxu0 0
        %1423 = vmatpush1.bf16.msra.mxu0 %v1365
        %1424 = vmatprep.subr.bf16.mxu0 0
        %1425 = vmatpush1.bf16.msra.mxu0 %v1366
        %1426 = vmatprep.subr.bf16.mxu0 0
        %1427 = vmatpush1.bf16.msra.mxu0 %v1367
        %1428 = vmatprep.subr.bf16.mxu0 0
        %1429 = vmatpush1.bf16.msra.mxu0 0
        %1430 = vmatprep.subr.bf16.mxu0 0
        %1431 = vmatpush1.bf16.msra.mxu0 0
        %1432 = vmatprep.subr.bf16.mxu0 0
        %1433 = vmatpush1.bf16.msra.mxu0 0
        %1434 = vmatprep.subr.bf16.mxu0 0
        %1435 = vmatpush1.bf16.msra.mxu0 0
        %1436 = vmatprep.subr.bf16.mxu0 0
        %1437 = vmatpush1.bf16.msra.mxu0 0
        %1438 = vmatprep.subr.bf16.mxu0 0
        %1439 = vmatpush1.bf16.msra.mxu0 0
        %1440 = vmatprep.subr.bf16.mxu0 0
        %1441 = vmatpush1.bf16.msra.mxu0 0
        %1442 = vmatprep.subr.bf16.mxu0 0
        %1443 = vmatpush1.bf16.msra.mxu0 0
        %1444 = vmatprep.subr.bf16.mxu0 0
        %1445 = vmatpush1.bf16.msra.mxu0 0
        %1446 = vmatprep.subr.bf16.mxu0 0
        %1447 = vmatpush1.bf16.msra.mxu0 0
        %1448 = vmatprep.subr.bf16.mxu0 0
        %1449 = vmatpush1.bf16.msra.mxu0 0
        %1450 = vmatprep.subr.bf16.mxu0 0
        %1451 = vmatpush1.bf16.msra.mxu0 0
        %1452 = vmatprep.mubr.bf16.mxu0 0
        %1453 = vmatmul.mubr.bf16.gmra.mrb[0].mxu0 %v1373
        %v1454 = vpop.f32.mrb[0].mxu0
        %v1455 = vadd.f32 %v526, %v1454
        %v1456 = vpop.f32.mrb[0].mxu0
        %v1457 = vpop.f32.mrb[0].mxu0
        %v1458 = vadd.f32 %v530, %v1457
        %v1459 = vpop.f32.mrb[0].mxu0
        %1460 = vmatprep.mubr.bf16.mxu0 0
        %1461 = vmatmul.mubr.bf16.gmra.mrb[0].mxu0 %v1376
        %v1462 = vpop.f32.mrb[0].mxu0
        %v1463 = vadd.f32 %v536, %v1462
        %v1464 = vpop.f32.mrb[0].mxu0
        %v1465 = vpop.f32.mrb[0].mxu0
        %v1466 = vadd.f32 %v540, %v1465
        %v1467 = vpop.f32.mrb[0].mxu0
        %1468 = vmatprep.mubr.bf16.mxu0 0
        %1469 = vmatmul.mubr.bf16.gmra.mrb[0].mxu0 %v1379
        %v1470 = vpop.f32.mrb[0].mxu0
        %v1471 = vadd.f32 %v546, %v1470
        %v1472 = vpop.f32.mrb[0].mxu0
        %v1473 = vpop.f32.mrb[0].mxu0
        %v1474 = vadd.f32 %v550, %v1473
        %v1475 = vpop.f32.mrb[0].mxu0
        %1476 = vmatprep.mubr.bf16.mxu0 0
        %1477 = vmatmul.mubr.bf16.gmra.mrb[0].mxu0 %v1382
        %v1478 = vpop.f32.mrb[0].mxu0
        %v1479 = vadd.f32 %v556, %v1478
        %v1480 = vpop.f32.mrb[0].mxu0
        %v1481 = vpop.f32.mrb[0].mxu0
        %v1482 = vadd.f32 %v560, %v1481
        %v1483 = vpop.f32.mrb[0].mxu0
        %1484 = vmatprep.mubr.bf16.mxu0 0
        %1485 = vmatmul.mubr.bf16.gmra.mrb[0].mxu0 %v1385
        %v1486 = vpop.f32.mrb[0].mxu0
        %v1487 = vadd.f32 %v566, %v1486
        %v1488 = vpop.f32.mrb[0].mxu0
        %v1489 = vpop.f32.mrb[0].mxu0
        %v1490 = vadd.f32 %v570, %v1489
        %v1491 = vpop.f32.mrb[0].mxu0
        %1492 = vmatprep.mubr.bf16.mxu0 0
        %1493 = vmatmul.mubr.bf16.gmra.mrb[0].mxu0 %v1388
        %v1494 = vpop.f32.mrb[0].mxu0
        %v1495 = vadd.f32 %v576, %v1494
        %v1496 = vpop.f32.mrb[0].mxu0
        %v1497 = vpop.f32.mrb[0].mxu0
        %v1498 = vadd.f32 %v580, %v1497
        %v1499 = vpop.f32.mrb[0].mxu0
        %1500 = vmatprep.mubr.bf16.mxu0 0
        %1501 = vmatmul.mubr.bf16.gmra.mrb[0].mxu0 %v1391
        %v1502 = vpop.f32.mrb[0].mxu0
        %v1503 = vadd.f32 %v586, %v1502
        %v1504 = vpop.f32.mrb[0].mxu0
        %v1505 = vpop.f32.mrb[0].mxu0
        %v1506 = vadd.f32 %v590, %v1505
        %v1507 = vpop.f32.mrb[0].mxu0
        %1508 = vmatprep.mubr.bf16.mxu0 0
        %1509 = vmatmul.mubr.bf16.gmra.mrb[0].mxu0 %v1394
        %v1510 = vpop.f32.mrb[0].mxu0
        %v1511 = vadd.f32 %v596, %v1510
        %v1512 = vpop.f32.mrb[0].mxu0
        %v1513 = vpop.f32.mrb[0].mxu0
        %v1514 = vadd.f32 %v600, %v1513
        %v1515 = vpop.f32.mrb[0].mxu0
        %1516 = vmatprep.mubr.bf16.mxu0 0
        %1517 = vmatmul.mubr.bf16.gmra.mrb[0].mxu0 %v1397
        %v1518 = vpop.f32.mrb[0].mxu0
        %v1519 = vadd.f32 %v606, %v1518
        %v1520 = vpop.f32.mrb[0].mxu0
        %v1521 = vpop.f32.mrb[0].mxu0
        %v1522 = vadd.f32 %v610, %v1521
        %v1523 = vpop.f32.mrb[0].mxu0
        %1524 = vmatprep.mubr.bf16.mxu0 0
        %1525 = vmatmul.mubr.bf16.gmra.mrb[0].mxu0 %v1400
        %v1526 = vpop.f32.mrb[0].mxu0
        %v1527 = vadd.f32 %v616, %v1526
        %v1528 = vpop.f32.mrb[0].mxu0
        %v1529 = vpop.f32.mrb[0].mxu0
        %v1530 = vadd.f32 %v620, %v1529
        %v1531 = vpop.f32.mrb[0].mxu0
        %1532 = vmatprep.mubr.bf16.mxu0 0
        %1533 = vmatmul.mubr.bf16.gmra.mrb[0].mxu0 %v1403
        %v1534 = vpop.f32.mrb[0].mxu0
        %v1535 = vadd.f32 %v626, %v1534
        %v1536 = vpop.f32.mrb[0].mxu0
        %v1537 = vpop.f32.mrb[0].mxu0
        %v1538 = vadd.f32 %v630, %v1537
        %v1539 = vpop.f32.mrb[0].mxu0
        %1540 = vmatprep.mubr.bf16.mxu0 0
        %1541 = vmatmul.mubr.bf16.gmra.mrb[0].mxu0 %v1406
        %v1542 = vpop.f32.mrb[0].mxu0
        %v1543 = vadd.f32 %v636, %v1542
        %v1544 = vpop.f32.mrb[0].mxu0
        %v1545 = vpop.f32.mrb[0].mxu0
        %v1546 = vadd.f32 %v640, %v1545
        %v1547 = vpop.f32.mrb[0].mxu0
        %1548 = vmatprep.mubr.bf16.mxu0 0
        %1549 = vmatmul.mubr.bf16.gmra.mrb[0].mxu0 %v1409
        %v1550 = vpop.f32.mrb[0].mxu0
        %v1551 = vadd.f32 %v646, %v1550
        %v1552 = vpop.f32.mrb[0].mxu0
        %v1553 = vpop.f32.mrb[0].mxu0
        %v1554 = vadd.f32 %v650, %v1553
        %v1555 = vpop.f32.mrb[0].mxu0
        %1556 = vmatprep.mubr.bf16.mxu0 0
        %1557 = vmatmul.mubr.bf16.gmra.mrb[0].mxu0 %v1412
        %v1558 = vpop.f32.mrb[0].mxu0
        %v1559 = vadd.f32 %v656, %v1558
        %v1560 = vpop.f32.mrb[0].mxu0
        %v1561 = vpop.f32.mrb[0].mxu0
        %v1562 = vadd.f32 %v660, %v1561
        %v1563 = vpop.f32.mrb[0].mxu0
        %1564 = vmatprep.mubr.bf16.mxu0 0
        %1565 = vmatmul.mubr.bf16.gmra.mrb[0].mxu0 %v1415
        %v1566 = vpop.f32.mrb[0].mxu0
        %v1567 = vadd.f32 %v666, %v1566
        %v1568 = vpop.f32.mrb[0].mxu0
        %v1569 = vpop.f32.mrb[0].mxu0
        %v1570 = vadd.f32 %v670, %v1569
        %v1571 = vpop.f32.mrb[0].mxu0
        %1572 = vmatprep.mubr.bf16.mxu0 0
        %1573 = vmatmul.mubr.bf16.gmra.mrb[0].mxu0 %v1418
        %v1574 = vpop.f32.mrb[0].mxu0
        %v1575 = vadd.f32 %v676, %v1574
        %v1576 = vpop.f32.mrb[0].mxu0
        %v1577 = vpop.f32.mrb[0].mxu0
        %v1578 = vadd.f32 %v680, %v1577
        %v1579 = vpop.f32.mrb[0].mxu0
        %1580 = vdwg.mxu0
        %v1581 = vtanh.pop %v1455
        %v1582 = vtanh.pop %v1458
        %v1583 = vtanh.pop %v1463
        %v1584 = vtanh.pop %v1466
        %v1585 = vtanh.pop %v1471
        %v1586 = vtanh.pop %v1474
        %v1587 = vtanh.pop %v1479
        %v1588 = vtanh.pop %v1482
        %v1589 = vtanh.pop %v1487
        %v1590 = vtanh.pop %v1490
        %v1591 = vtanh.pop %v1495
        %v1592 = vtanh.pop %v1498
        %v1593 = vtanh.pop %v1503
        %v1594 = vtanh.pop %v1506
        %v1595 = vtanh.pop %v1511
        %v1596 = vtanh.pop %v1514
        %v1597 = vtanh.pop %v1519
        %v1598 = vtanh.pop %v1522
        %v1599 = vtanh.pop %v1527
        %v1600 = vtanh.pop %v1530
        %v1601 = vtanh.pop %v1535
        %v1602 = vtanh.pop %v1538
        %v1603 = vtanh.pop %v1543
        %v1604 = vtanh.pop %v1546
        %v1605 = vtanh.pop %v1551
        %v1606 = vtanh.pop %v1554
        %v1607 = vtanh.pop %v1559
        %v1608 = vtanh.pop %v1562
        %v1609 = vtanh.pop %v1567
        %v1610 = vtanh.pop %v1570
        %v1611 = vtanh.pop %v1575
        %v1612 = vtanh.pop %v1578
        %v1613 = vsub.f32 1.0, %v1061
        %v1614 = vsub.f32 1.0, %v1063
        %v1615 = vsub.f32 1.0, %v1065
        %v1616 = vsub.f32 1.0, %v1067
        %v1617 = vsub.f32 1.0, %v1069
        %v1618 = vsub.f32 1.0, %v1071
        %v1619 = vsub.f32 1.0, %v1073
        %v1620 = vsub.f32 1.0, %v1075
        %v1621 = vsub.f32 1.0, %v1077
        %v1622 = vsub.f32 1.0, %v1079
        %v1623 = vsub.f32 1.0, %v1081
        %v1624 = vsub.f32 1.0, %v1083
        %v1625 = vsub.f32 1.0, %v1085
        %v1626 = vsub.f32 1.0, %v1087
        %v1627 = vsub.f32 1.0, %v1089
        %v1628 = vsub.f32 1.0, %v1091
        %v1629 = vsub.f32 1.0, %v1093
        %v1630 = vsub.f32 1.0, %v1095
        %v1631 = vsub.f32 1.0, %v1097
        %v1632 = vsub.f32 1.0, %v1099
        %v1633 = vsub.f32 1.0, %v1101
        %v1634 = vsub.f32 1.0, %v1103
        %v1635 = vsub.f32 1.0, %v1105
        %v1636 = vsub.f32 1.0, %v1107
        %v1637 = vsub.f32 1.0, %v1109
        %v1638 = vsub.f32 1.0, %v1111
        %v1639 = vsub.f32 1.0, %v1113
        %v1640 = vsub.f32 1.0, %v1115
        %v1641 = vsub.f32 1.0, %v1117
        %v1642 = vsub.f32 1.0, %v1119
        %v1643 = vsub.f32 1.0, %v1121
        %v1644 = vsub.f32 1.0, %v1123
        %v1645 = vmul.f32 %v1613, %v308
        %v1646 = vmul.f32 %v1614, %v309
        %v1647 = vmul.f32 %v1615, %v310
        %v1648 = vmul.f32 %v1616, %v311
        %v1649 = vmul.f32 %v1617, %v312
        %v1650 = vmul.f32 %v1618, %v313
        %v1651 = vmul.f32 %v1619, %v314
        %v1652 = vmul.f32 %v1620, %v315
        %v1653 = vmul.f32 %v1621, %v316
        %v1654 = vmul.f32 %v1622, %v317
        %v1655 = vmul.f32 %v1623, %v318
        %v1656 = vmul.f32 %v1624, %v319
        %v1657 = vmul.f32 %v1625, %v320
        %v1658 = vmul.f32 %v1626, %v321
        %v1659 = vmul.f32 %v1627, %v322
        %v1660 = vmul.f32 %v1628, %v323
        %v1661 = vmul.f32 %v1629, %v324
        %v1662 = vmul.f32 %v1630, %v325
        %v1663 = vmul.f32 %v1631, %v326
        %v1664 = vmul.f32 %v1632, %v327
        %v1665 = vmul.f32 %v1633, %v328
        %v1666 = vmul.f32 %v1634, %v329
        %v1667 = vmul.f32 %v1635, %v330
        %v1668 = vmul.f32 %v1636, %v331
        %v1669 = vmul.f32 %v1637, %v332
        %v1670 = vmul.f32 %v1638, %v333
        %v1671 = vmul.f32 %v1639, %v334
        %v1672 = vmul.f32 %v1640, %v335
        %v1673 = vmul.f32 %v1641, %v336
        %v1674 = vmul.f32 %v1642, %v337
        %v1675 = vmul.f32 %v1643, %v338
        %v1676 = vmul.f32 %v1644, %v339
        %v1677 = vmul.f32 %v1061, %v1581
        %v1678 = vmul.f32 %v1063, %v1582
        %v1679 = vmul.f32 %v1065, %v1583
        %v1680 = vmul.f32 %v1067, %v1584
        %v1681 = vmul.f32 %v1069, %v1585
        %v1682 = vmul.f32 %v1071, %v1586
        %v1683 = vmul.f32 %v1073, %v1587
        %v1684 = vmul.f32 %v1075, %v1588
        %v1685 = vmul.f32 %v1077, %v1589
        %v1686 = vmul.f32 %v1079, %v1590
        %v1687 = vmul.f32 %v1081, %v1591
        %v1688 = vmul.f32 %v1083, %v1592
        %v1689 = vmul.f32 %v1085, %v1593
        %v1690 = vmul.f32 %v1087, %v1594
        %v1691 = vmul.f32 %v1089, %v1595
        %v1692 = vmul.f32 %v1091, %v1596
        %v1693 = vmul.f32 %v1093, %v1597
        %v1694 = vmul.f32 %v1095, %v1598
        %v1695 = vmul.f32 %v1097, %v1599
        %v1696 = vmul.f32 %v1099, %v1600
        %v1697 = vmul.f32 %v1101, %v1601
        %v1698 = vmul.f32 %v1103, %v1602
        %v1699 = vmul.f32 %v1105, %v1603
        %v1700 = vmul.f32 %v1107, %v1604
        %v1701 = vmul.f32 %v1109, %v1605
        %v1702 = vmul.f32 %v1111, %v1606
        %v1703 = vmul.f32 %v1113, %v1607
        %v1704 = vmul.f32 %v1115, %v1608
        %v1705 = vmul.f32 %v1117, %v1609
        %v1706 = vmul.f32 %v1119, %v1610
        %v1707 = vmul.f32 %v1121, %v1611
        %v1708 = vmul.f32 %v1123, %v1612
        %v1709 = vadd.f32 %v1645, %v1677
        %v1710 = vadd.f32 %v1646, %v1678
        %v1711 = vadd.f32 %v1647, %v1679
        %v1712 = vadd.f32 %v1648, %v1680
        %v1713 = vadd.f32 %v1649, %v1681
        %v1714 = vadd.f32 %v1650, %v1682
        %v1715 = vadd.f32 %v1651, %v1683
        %v1716 = vadd.f32 %v1652, %v1684
        %v1717 = vadd.f32 %v1653, %v1685
        %v1718 = vadd.f32 %v1654, %v1686
        %v1719 = vadd.f32 %v1655, %v1687
        %v1720 = vadd.f32 %v1656, %v1688
        %v1721 = vadd.f32 %v1657, %v1689
        %v1722 = vadd.f32 %v1658, %v1690
        %v1723 = vadd.f32 %v1659, %v1691
        %v1724 = vadd.f32 %v1660, %v1692
        %v1725 = vadd.f32 %v1661, %v1693
        %v1726 = vadd.f32 %v1662, %v1694
        %v1727 = vadd.f32 %v1663, %v1695
        %v1728 = vadd.f32 %v1664, %v1696
        %v1729 = vadd.f32 %v1665, %v1697
        %v1730 = vadd.f32 %v1666, %v1698
        %v1731 = vadd.f32 %v1667, %v1699
        %v1732 = vadd.f32 %v1668, %v1700
        %v1733 = vadd.f32 %v1669, %v1701
        %v1734 = vadd.f32 %v1670, %v1702
        %v1735 = vadd.f32 %v1671, %v1703
        %v1736 = vadd.f32 %v1672, %v1704
        %v1737 = vadd.f32 %v1673, %v1705
        %v1738 = vadd.f32 %v1674, %v1706
        %v1739 = vadd.f32 %v1675, %v1707
        %v1740 = vadd.f32 %v1676, %v1708
        %v1741 = vpack.c.bf16 %v1710, %v1709
        %v1742 = vpack.c.bf16 %v1712, %v1711
        %v1743 = vpack.c.bf16 %v1714, %v1713
        %v1744 = vpack.c.bf16 %v1716, %v1715
        %v1745 = vpack.c.bf16 %v1718, %v1717
        %v1746 = vpack.c.bf16 %v1720, %v1719
        %v1747 = vpack.c.bf16 %v1722, %v1721
        %v1748 = vpack.c.bf16 %v1724, %v1723
        %v1749 = vpack.c.bf16 %v1726, %v1725
        %v1750 = vpack.c.bf16 %v1728, %v1727
        %v1751 = vpack.c.bf16 %v1730, %v1729
        %v1752 = vpack.c.bf16 %v1732, %v1731
        %v1753 = vpack.c.bf16 %v1734, %v1733
        %v1754 = vpack.c.bf16 %v1736, %v1735
        %v1755 = vpack.c.bf16 %v1738, %v1737
        %v1756 = vpack.c.bf16 %v1740, %v1739
        %v1758 = vsel %vm722, %v1741, 0
        %v1761 = vsel %vm722, %v1742, 0
        %v1764 = vsel %vm722, %v1743, 0
        %v1767 = vsel %vm722, %v1744, 0
        %v1770 = vsel %vm722, %v1745, 0
        %v1773 = vsel %vm722, %v1746, 0
        %v1776 = vsel %vm722, %v1747, 0
        %v1779 = vsel %vm722, %v1748, 0
        %v1782 = vsel %vm722, %v1749, 0
        %v1785 = vsel %vm722, %v1750, 0
        %v1788 = vsel %vm722, %v1751, 0
        %v1791 = vsel %vm722, %v1752, 0
        %v1794 = vsel %vm722, %v1753, 0
        %v1797 = vsel %vm722, %v1754, 0
        %v1800 = vsel %vm722, %v1755, 0
        %v1803 = vsel %vm722, %v1756, 0
        %1805 = vmatprep.subr.bf16.mxu0 0
        %1806 = vmatpush1.bf16.msra.mxu0 %v714
        %1807 = vmatprep.subr.bf16.mxu0 0
        %1808 = vmatpush1.bf16.msra.mxu0 %v715
        %1809 = vmatprep.subr.bf16.mxu0 0
        %1810 = vmatpush1.bf16.msra.mxu0 %v716
        %1811 = vmatprep.subr.bf16.mxu0 0
        %1812 = vmatpush1.bf16.msra.mxu0 %v717
        %1813 = vmatprep.subr.bf16.mxu0 0
        %1814 = vmatpush1.bf16.msra.mxu0 0
        %1815 = vmatprep.subr.bf16.mxu0 0
        %1816 = vmatpush1.bf16.msra.mxu0 0
        %1817 = vmatprep.subr.bf16.mxu0 0
        %1818 = vmatpush1.bf16.msra.mxu0 0
        %1819 = vmatprep.subr.bf16.mxu0 0
        %1820 = vmatpush1.bf16.msra.mxu0 0
        %1821 = vmatprep.subr.bf16.mxu0 0
        %1822 = vmatpush1.bf16.msra.mxu0 0
        %1823 = vmatprep.subr.bf16.mxu0 0
        %1824 = vmatpush1.bf16.msra.mxu0 0
        %1825 = vmatprep.subr.bf16.mxu0 0
        %1826 = vmatpush1.bf16.msra.mxu0 0
        %1827 = vmatprep.subr.bf16.mxu0 0
        %1828 = vmatpush1.bf16.msra.mxu0 0
        %1829 = vmatprep.subr.bf16.mxu0 0
        %1830 = vmatpush1.bf16.msra.mxu0 0
        %1831 = vmatprep.subr.bf16.mxu0 0
        %1832 = vmatpush1.bf16.msra.mxu0 0
        %1833 = vmatprep.subr.bf16.mxu0 0
        %1834 = vmatpush1.bf16.msra.mxu0 0
        %1835 = vmatprep.subr.bf16.mxu0 0
        %1836 = vmatpush1.bf16.msra.mxu0 0
        %1837 = vmatprep.mubr.bf16.mxu0 0
        %1838 = vmatmul.mubr.bf16.gmra.mrb[0].mxu0 %v1758
        %v1839 = vpop.f32.mrb[0].mxu0
        %v1840 = vadd.f32 %v524, %v1839
        %v1841 = vpop.f32.mrb[0].mxu0
        %v1842 = vpop.f32.mrb[0].mxu0
        %v1843 = vadd.f32 %v528, %v1842
        %v1844 = vpop.f32.mrb[0].mxu0
        %1845 = vmatprep.mubr.bf16.mxu0 0
        %1846 = vmatmul.mubr.bf16.gmra.mrb[0].mxu0 %v1761
        %v1847 = vpop.f32.mrb[0].mxu0
        %v1848 = vadd.f32 %v534, %v1847
        %v1849 = vpop.f32.mrb[0].mxu0
        %v1850 = vpop.f32.mrb[0].mxu0
        %v1851 = vadd.f32 %v538, %v1850
        %v1852 = vpop.f32.mrb[0].mxu0
        %1853 = vmatprep.mubr.bf16.mxu0 0
        %1854 = vmatmul.mubr.bf16.gmra.mrb[0].mxu0 %v1764
        %v1855 = vpop.f32.mrb[0].mxu0
        %v1856 = vadd.f32 %v544, %v1855
        %v1857 = vpop.f32.mrb[0].mxu0
        %v1858 = vpop.f32.mrb[0].mxu0
        %v1859 = vadd.f32 %v548, %v1858
        %v1860 = vpop.f32.mrb[0].mxu0
        %1861 = vmatprep.mubr.bf16.mxu0 0
        %1862 = vmatmul.mubr.bf16.gmra.mrb[0].mxu0 %v1767
        %v1863 = vpop.f32.mrb[0].mxu0
        %v1864 = vadd.f32 %v554, %v1863
        %v1865 = vpop.f32.mrb[0].mxu0
        %v1866 = vpop.f32.mrb[0].mxu0
        %v1867 = vadd.f32 %v558, %v1866
        %v1868 = vpop.f32.mrb[0].mxu0
        %1869 = vmatprep.mubr.bf16.mxu0 0
        %1870 = vmatmul.mubr.bf16.gmra.mrb[0].mxu0 %v1770
        %v1871 = vpop.f32.mrb[0].mxu0
        %v1872 = vadd.f32 %v564, %v1871
        %v1873 = vpop.f32.mrb[0].mxu0
        %v1874 = vpop.f32.mrb[0].mxu0
        %v1875 = vadd.f32 %v568, %v1874
        %v1876 = vpop.f32.mrb[0].mxu0
        %1877 = vmatprep.mubr.bf16.mxu0 0
        %1878 = vmatmul.mubr.bf16.gmra.mrb[0].mxu0 %v1773
        %v1879 = vpop.f32.mrb[0].mxu0
        %v1880 = vadd.f32 %v574, %v1879
        %v1881 = vpop.f32.mrb[0].mxu0
        %v1882 = vpop.f32.mrb[0].mxu0
        %v1883 = vadd.f32 %v578, %v1882
        %v1884 = vpop.f32.mrb[0].mxu0
        %1885 = vmatprep.mubr.bf16.mxu0 0
        %1886 = vmatmul.mubr.bf16.gmra.mrb[0].mxu0 %v1776
        %v1887 = vpop.f32.mrb[0].mxu0
        %v1888 = vadd.f32 %v584, %v1887
        %v1889 = vpop.f32.mrb[0].mxu0
        %v1890 = vpop.f32.mrb[0].mxu0
        %v1891 = vadd.f32 %v588, %v1890
        %v1892 = vpop.f32.mrb[0].mxu0
        %1893 = vmatprep.mubr.bf16.mxu0 0
        %1894 = vmatmul.mubr.bf16.gmra.mrb[0].mxu0 %v1779
        %v1895 = vpop.f32.mrb[0].mxu0
        %v1896 = vadd.f32 %v594, %v1895
        %v1897 = vpop.f32.mrb[0].mxu0
        %v1898 = vpop.f32.mrb[0].mxu0
        %v1899 = vadd.f32 %v598, %v1898
        %v1900 = vpop.f32.mrb[0].mxu0
        %1901 = vmatprep.mubr.bf16.mxu0 0
        %1902 = vmatmul.mubr.bf16.gmra.mrb[0].mxu0 %v1782
        %v1903 = vpop.f32.mrb[0].mxu0
        %v1904 = vadd.f32 %v604, %v1903
        %v1905 = vpop.f32.mrb[0].mxu0
        %v1906 = vpop.f32.mrb[0].mxu0
        %v1907 = vadd.f32 %v608, %v1906
        %v1908 = vpop.f32.mrb[0].mxu0
        %1909 = vmatprep.mubr.bf16.mxu0 0
        %1910 = vmatmul.mubr.bf16.gmra.mrb[0].mxu0 %v1785
        %v1911 = vpop.f32.mrb[0].mxu0
        %v1912 = vadd.f32 %v614, %v1911
        %v1913 = vpop.f32.mrb[0].mxu0
        %v1914 = vpop.f32.mrb[0].mxu0
        %v1915 = vadd.f32 %v618, %v1914
        %v1916 = vpop.f32.mrb[0].mxu0
        %1917 = vmatprep.mubr.bf16.mxu0 0
        %1918 = vmatmul.mubr.bf16.gmra.mrb[0].mxu0 %v1788
        %v1919 = vpop.f32.mrb[0].mxu0
        %v1920 = vadd.f32 %v624, %v1919
        %v1921 = vpop.f32.mrb[0].mxu0
        %v1922 = vpop.f32.mrb[0].mxu0
        %v1923 = vadd.f32 %v628, %v1922
        %v1924 = vpop.f32.mrb[0].mxu0
        %1925 = vmatprep.mubr.bf16.mxu0 0
        %1926 = vmatmul.mubr.bf16.gmra.mrb[0].mxu0 %v1791
        %v1927 = vpop.f32.mrb[0].mxu0
        %v1928 = vadd.f32 %v634, %v1927
        %v1929 = vpop.f32.mrb[0].mxu0
        %v1930 = vpop.f32.mrb[0].mxu0
        %v1931 = vadd.f32 %v638, %v1930
        %v1932 = vpop.f32.mrb[0].mxu0
        %1933 = vmatprep.mubr.bf16.mxu0 0
        %1934 = vmatmul.mubr.bf16.gmra.mrb[0].mxu0 %v1794
        %v1935 = vpop.f32.mrb[0].mxu0
        %v1936 = vadd.f32 %v644, %v1935
        %v1937 = vpop.f32.mrb[0].mxu0
        %v1938 = vpop.f32.mrb[0].mxu0
        %v1939 = vadd.f32 %v648, %v1938
        %v1940 = vpop.f32.mrb[0].mxu0
        %1941 = vmatprep.mubr.bf16.mxu0 0
        %1942 = vmatmul.mubr.bf16.gmra.mrb[0].mxu0 %v1797
        %v1943 = vpop.f32.mrb[0].mxu0
        %v1944 = vadd.f32 %v654, %v1943
        %v1945 = vpop.f32.mrb[0].mxu0
        %v1946 = vpop.f32.mrb[0].mxu0
        %v1947 = vadd.f32 %v658, %v1946
        %v1948 = vpop.f32.mrb[0].mxu0
        %1949 = vmatprep.mubr.bf16.mxu0 0
        %1950 = vmatmul.mubr.bf16.gmra.mrb[0].mxu0 %v1800
        %v1951 = vpop.f32.mrb[0].mxu0
        %v1952 = vadd.f32 %v664, %v1951
        %v1953 = vpop.f32.mrb[0].mxu0
        %v1954 = vpop.f32.mrb[0].mxu0
        %v1955 = vadd.f32 %v668, %v1954
        %v1956 = vpop.f32.mrb[0].mxu0
        %1957 = vmatprep.mubr.bf16.mxu0 0
        %1958 = vmatmul.mubr.bf16.gmra.mrb[0].mxu0 %v1803
        %v1959 = vpop.f32.mrb[0].mxu0
        %v1960 = vadd.f32 %v674, %v1959
        %v1961 = vpop.f32.mrb[0].mxu0
        %v1962 = vpop.f32.mrb[0].mxu0
        %v1963 = vadd.f32 %v678, %v1962
        %v1964 = vpop.f32.mrb[0].mxu0
        %1965 = vdwg.mxu0
        %v1966 = vxor.u32 %v1840, 2147483648
        %v1967 = vxor.u32 %v1843, 2147483648
        %v1968 = vxor.u32 %v1848, 2147483648
        %v1969 = vxor.u32 %v1851, 2147483648
        %v1970 = vxor.u32 %v1856, 2147483648
        %v1971 = vxor.u32 %v1859, 2147483648
        %v1972 = vxor.u32 %v1864, 2147483648
        %v1973 = vxor.u32 %v1867, 2147483648
        %v1974 = vxor.u32 %v1872, 2147483648
        %v1975 = vxor.u32 %v1875, 2147483648
        %v1976 = vxor.u32 %v1880, 2147483648
        %v1977 = vxor.u32 %v1883, 2147483648
        %v1978 = vxor.u32 %v1888, 2147483648
        %v1979 = vxor.u32 %v1891, 2147483648
        %v1980 = vxor.u32 %v1896, 2147483648
        %v1981 = vxor.u32 %v1899, 2147483648
        %v1982 = vxor.u32 %v1904, 2147483648
        %v1983 = vxor.u32 %v1907, 2147483648
        %v1984 = vxor.u32 %v1912, 2147483648
        %v1985 = vxor.u32 %v1915, 2147483648
        %v1986 = vxor.u32 %v1920, 2147483648
        %v1987 = vxor.u32 %v1923, 2147483648
        %v1988 = vxor.u32 %v1928, 2147483648
        %v1989 = vxor.u32 %v1931, 2147483648
        %v1990 = vxor.u32 %v1936, 2147483648
        %v1991 = vxor.u32 %v1939, 2147483648
        %v1992 = vxor.u32 %v1944, 2147483648
        %v1993 = vxor.u32 %v1947, 2147483648
        %v1994 = vxor.u32 %v1952, 2147483648
        %v1995 = vxor.u32 %v1955, 2147483648
        %v1996 = vxor.u32 %v1960, 2147483648
        %v1997 = vxor.u32 %v1963, 2147483648
        %v1998 = vmul.f32 %v1966, 1.442695
        %v1999 = vpow.pop %v1998
        %v2000 = vmul.f32 %v1967, 1.442695
        %v2001 = vpow.pop %v2000
        %v2002 = vmul.f32 %v1968, 1.442695
        %v2003 = vpow.pop %v2002
        %v2004 = vmul.f32 %v1969, 1.442695
        %v2005 = vpow.pop %v2004
        %v2006 = vmul.f32 %v1970, 1.442695
        %v2007 = vpow.pop %v2006
        %v2008 = vmul.f32 %v1971, 1.442695
        %v2009 = vpow.pop %v2008
        %v2010 = vmul.f32 %v1972, 1.442695
        %v2011 = vpow.pop %v2010
        %v2012 = vmul.f32 %v1973, 1.442695
        %v2013 = vpow.pop %v2012
        %v2014 = vmul.f32 %v1974, 1.442695
        %v2015 = vpow.pop %v2014
        %v2016 = vmul.f32 %v1975, 1.442695
        %v2017 = vpow.pop %v2016
        %v2018 = vmul.f32 %v1976, 1.442695
        %v2019 = vpow.pop %v2018
        %v2020 = vmul.f32 %v1977, 1.442695
        %v2021 = vpow.pop %v2020
        %v2022 = vmul.f32 %v1978, 1.442695
        %v2023 = vpow.pop %v2022
        %v2024 = vmul.f32 %v1979, 1.442695
        %v2025 = vpow.pop %v2024
        %v2026 = vmul.f32 %v1980, 1.442695
        %v2027 = vpow.pop %v2026
        %v2028 = vmul.f32 %v1981, 1.442695
        %v2029 = vpow.pop %v2028
        %v2030 = vmul.f32 %v1982, 1.442695
        %v2031 = vpow.pop %v2030
        %v2032 = vmul.f32 %v1983, 1.442695
        %v2033 = vpow.pop %v2032
        %v2034 = vmul.f32 %v1984, 1.442695
        %v2035 = vpow.pop %v2034
        %v2036 = vmul.f32 %v1985, 1.442695
        %v2037 = vpow.pop %v2036
        %v2038 = vmul.f32 %v1986, 1.442695
        %v2039 = vpow.pop %v2038
        %v2040 = vmul.f32 %v1987, 1.442695
        %v2041 = vpow.pop %v2040
        %v2042 = vmul.f32 %v1988, 1.442695
        %v2043 = vpow.pop %v2042
        %v2044 = vmul.f32 %v1989, 1.442695
        %v2045 = vpow.pop %v2044
        %v2046 = vmul.f32 %v1990, 1.442695
        %v2047 = vpow.pop %v2046
        %v2048 = vmul.f32 %v1991, 1.442695
        %v2049 = vpow.pop %v2048
        %v2050 = vmul.f32 %v1992, 1.442695
        %v2051 = vpow.pop %v2050
        %v2052 = vmul.f32 %v1993, 1.442695
        %v2053 = vpow.pop %v2052
        %v2054 = vmul.f32 %v1994, 1.442695
        %v2055 = vpow.pop %v2054
        %v2056 = vmul.f32 %v1995, 1.442695
        %v2057 = vpow.pop %v2056
        %v2058 = vmul.f32 %v1996, 1.442695
        %v2059 = vpow.pop %v2058
        %v2060 = vmul.f32 %v1997, 1.442695
        %v2061 = vpow.pop %v2060
        %v2062 = vadd.f32 %v1999, 1.0
        %v2063 = vadd.f32 %v2001, 1.0
        %v2064 = vadd.f32 %v2003, 1.0
        %v2065 = vadd.f32 %v2005, 1.0
        %v2066 = vadd.f32 %v2007, 1.0
        %v2067 = vadd.f32 %v2009, 1.0
        %v2068 = vadd.f32 %v2011, 1.0
        %v2069 = vadd.f32 %v2013, 1.0
        %v2070 = vadd.f32 %v2015, 1.0
        %v2071 = vadd.f32 %v2017, 1.0
        %v2072 = vadd.f32 %v2019, 1.0
        %v2073 = vadd.f32 %v2021, 1.0
        %v2074 = vadd.f32 %v2023, 1.0
        %v2075 = vadd.f32 %v2025, 1.0
        %v2076 = vadd.f32 %v2027, 1.0
        %v2077 = vadd.f32 %v2029, 1.0
        %v2078 = vadd.f32 %v2031, 1.0
        %v2079 = vadd.f32 %v2033, 1.0
        %v2080 = vadd.f32 %v2035, 1.0
        %v2081 = vadd.f32 %v2037, 1.0
        %v2082 = vadd.f32 %v2039, 1.0
        %v2083 = vadd.f32 %v2041, 1.0
        %v2084 = vadd.f32 %v2043, 1.0
        %v2085 = vadd.f32 %v2045, 1.0
        %v2086 = vadd.f32 %v2047, 1.0
        %v2087 = vadd.f32 %v2049, 1.0
        %v2088 = vadd.f32 %v2051, 1.0
        %v2089 = vadd.f32 %v2053, 1.0
        %v2090 = vadd.f32 %v2055, 1.0
        %v2091 = vadd.f32 %v2057, 1.0
        %v2092 = vadd.f32 %v2059, 1.0
        %v2093 = vadd.f32 %v2061, 1.0
        %v2094 = vrcp.pop %v2062
        %v2095 = vmul.f32 1.0, %v2094
        %v2096 = vrcp.pop %v2063
        %v2097 = vmul.f32 1.0, %v2096
        %v2098 = vrcp.pop %v2064
        %v2099 = vmul.f32 1.0, %v2098
        %v2100 = vrcp.pop %v2065
        %v2101 = vmul.f32 1.0, %v2100
        %v2102 = vrcp.pop %v2066
        %v2103 = vmul.f32 1.0, %v2102
        %v2104 = vrcp.pop %v2067
        %v2105 = vmul.f32 1.0, %v2104
        %v2106 = vrcp.pop %v2068
        %v2107 = vmul.f32 1.0, %v2106
        %v2108 = vrcp.pop %v2069
        %v2109 = vmul.f32 1.0, %v2108
        %v2110 = vrcp.pop %v2070
        %v2111 = vmul.f32 1.0, %v2110
        %v2112 = vrcp.pop %v2071
        %v2113 = vmul.f32 1.0, %v2112
        %v2114 = vrcp.pop %v2072
        %v2115 = vmul.f32 1.0, %v2114
        %v2116 = vrcp.pop %v2073
        %v2117 = vmul.f32 1.0, %v2116
        %v2118 = vrcp.pop %v2074
        %v2119 = vmul.f32 1.0, %v2118
        %v2120 = vrcp.pop %v2075
        %v2121 = vmul.f32 1.0, %v2120
        %v2122 = vrcp.pop %v2076
        %v2123 = vmul.f32 1.0, %v2122
        %v2124 = vrcp.pop %v2077
        %v2125 = vmul.f32 1.0, %v2124
        %v2126 = vrcp.pop %v2078
        %v2127 = vmul.f32 1.0, %v2126
        %v2128 = vrcp.pop %v2079
        %v2129 = vmul.f32 1.0, %v2128
        %v2130 = vrcp.pop %v2080
        %v2131 = vmul.f32 1.0, %v2130
        %v2132 = vrcp.pop %v2081
        %v2133 = vmul.f32 1.0, %v2132
        %v2134 = vrcp.pop %v2082
        %v2135 = vmul.f32 1.0, %v2134
        %v2136 = vrcp.pop %v2083
        %v2137 = vmul.f32 1.0, %v2136
        %v2138 = vrcp.pop %v2084
        %v2139 = vmul.f32 1.0, %v2138
        %v2140 = vrcp.pop %v2085
        %v2141 = vmul.f32 1.0, %v2140
        %v2142 = vrcp.pop %v2086
        %v2143 = vmul.f32 1.0, %v2142
        %v2144 = vrcp.pop %v2087
        %v2145 = vmul.f32 1.0, %v2144
        %v2146 = vrcp.pop %v2088
        %v2147 = vmul.f32 1.0, %v2146
        %v2148 = vrcp.pop %v2089
        %v2149 = vmul.f32 1.0, %v2148
        %v2150 = vrcp.pop %v2090
        %v2151 = vmul.f32 1.0, %v2150
        %v2152 = vrcp.pop %v2091
        %v2153 = vmul.f32 1.0, %v2152
        %v2154 = vrcp.pop %v2092
        %v2155 = vmul.f32 1.0, %v2154
        %v2156 = vrcp.pop %v2093
        %v2157 = vmul.f32 1.0, %v2156
        %2190 = vrot.lane.b32.xlu0 %v1709, 64
        %v2191 = vpop.permute.xlu0 %2190
        %2192 = vrot.lane.b32.xlu0 %v1710, 64
        %v2193 = vpop.permute.xlu0 %2192
        %2194 = vrot.lane.b32.xlu0 %v1711, 64
        %v2195 = vpop.permute.xlu0 %2194
        %2196 = vrot.lane.b32.xlu0 %v1712, 64
        %v2197 = vpop.permute.xlu0 %2196
        %2198 = vrot.lane.b32.xlu0 %v1713, 64
        %v2199 = vpop.permute.xlu0 %2198
        %2200 = vrot.lane.b32.xlu0 %v1714, 64
        %v2201 = vpop.permute.xlu0 %2200
        %2202 = vrot.lane.b32.xlu0 %v1715, 64
        %v2203 = vpop.permute.xlu0 %2202
        %2204 = vrot.lane.b32.xlu0 %v1716, 64
        %v2205 = vpop.permute.xlu0 %2204
        %2206 = vrot.lane.b32.xlu0 %v1717, 64
        %v2207 = vpop.permute.xlu0 %2206
        %2208 = vrot.lane.b32.xlu0 %v1718, 64
        %v2209 = vpop.permute.xlu0 %2208
        %2210 = vrot.lane.b32.xlu0 %v1719, 64
        %v2211 = vpop.permute.xlu0 %2210
        %2212 = vrot.lane.b32.xlu0 %v1720, 64
        %v2213 = vpop.permute.xlu0 %2212
        %2214 = vrot.lane.b32.xlu0 %v1721, 64
        %v2215 = vpop.permute.xlu0 %2214
        %2216 = vrot.lane.b32.xlu0 %v1722, 64
        %v2217 = vpop.permute.xlu0 %2216
        %2218 = vrot.lane.b32.xlu0 %v1723, 64
        %v2219 = vpop.permute.xlu0 %2218
        %2220 = vrot.lane.b32.xlu0 %v1724, 64
        %v2221 = vpop.permute.xlu0 %2220
        %2222 = vrot.lane.b32.xlu0 %v1725, 64
        %v2223 = vpop.permute.xlu0 %2222
        %2224 = vrot.lane.b32.xlu0 %v1726, 64
        %v2225 = vpop.permute.xlu0 %2224
        %2226 = vrot.lane.b32.xlu0 %v1727, 64
        %v2227 = vpop.permute.xlu0 %2226
        %2228 = vrot.lane.b32.xlu0 %v1728, 64
        %v2229 = vpop.permute.xlu0 %2228
        %2230 = vrot.lane.b32.xlu0 %v1729, 64
        %v2231 = vpop.permute.xlu0 %2230
        %2232 = vrot.lane.b32.xlu0 %v1730, 64
        %v2233 = vpop.permute.xlu0 %2232
        %2234 = vrot.lane.b32.xlu0 %v1731, 64
        %v2235 = vpop.permute.xlu0 %2234
        %2236 = vrot.lane.b32.xlu0 %v1732, 64
        %v2237 = vpop.permute.xlu0 %2236
        %2238 = vrot.lane.b32.xlu0 %v1733, 64
        %v2239 = vpop.permute.xlu0 %2238
        %2240 = vrot.lane.b32.xlu0 %v1734, 64
        %v2241 = vpop.permute.xlu0 %2240
        %2242 = vrot.lane.b32.xlu0 %v1735, 64
        %v2243 = vpop.permute.xlu0 %2242
        %2244 = vrot.lane.b32.xlu0 %v1736, 64
        %v2245 = vpop.permute.xlu0 %2244
        %2246 = vrot.lane.b32.xlu0 %v1737, 64
        %v2247 = vpop.permute.xlu0 %2246
        %2248 = vrot.lane.b32.xlu0 %v1738, 64
        %v2249 = vpop.permute.xlu0 %2248
        %2250 = vrot.lane.b32.xlu0 %v1739, 64
        %v2251 = vpop.permute.xlu0 %2250
        %2252 = vrot.lane.b32.xlu0 %v1740, 64
        %v2253 = vpop.permute.xlu0 %2252
        %v2286 = vmul.f32 %v2095, %v2191
        %v2287 = vmul.f32 %v2097, %v2193
        %v2288 = vmul.f32 %v2099, %v2195
        %v2289 = vmul.f32 %v2101, %v2197
        %v2290 = vmul.f32 %v2103, %v2199
        %v2291 = vmul.f32 %v2105, %v2201
        %v2292 = vmul.f32 %v2107, %v2203
        %v2293 = vmul.f32 %v2109, %v2205
        %v2294 = vmul.f32 %v2111, %v2207
        %v2295 = vmul.f32 %v2113, %v2209
        %v2296 = vmul.f32 %v2115, %v2211
        %v2297 = vmul.f32 %v2117, %v2213
        %v2298 = vmul.f32 %v2119, %v2215
        %v2299 = vmul.f32 %v2121, %v2217
        %v2300 = vmul.f32 %v2123, %v2219
        %v2301 = vmul.f32 %v2125, %v2221
        %v2302 = vmul.f32 %v2127, %v2223
        %v2303 = vmul.f32 %v2129, %v2225
        %v2304 = vmul.f32 %v2131, %v2227
        %v2305 = vmul.f32 %v2133, %v2229
        %v2306 = vmul.f32 %v2135, %v2231
        %v2307 = vmul.f32 %v2137, %v2233
        %v2308 = vmul.f32 %v2139, %v2235
        %v2309 = vmul.f32 %v2141, %v2237
        %v2310 = vmul.f32 %v2143, %v2239
        %v2311 = vmul.f32 %v2145, %v2241
        %v2312 = vmul.f32 %v2147, %v2243
        %v2313 = vmul.f32 %v2149, %v2245
        %v2314 = vmul.f32 %v2151, %v2247
        %v2315 = vmul.f32 %v2153, %v2249
        %v2316 = vmul.f32 %v2155, %v2251
        %v2317 = vmul.f32 %v2157, %v2253
        %v2318 = vpack.c.bf16 %v2287, %v2286
        %v2319 = vpack.c.bf16 %v2289, %v2288
        %v2320 = vpack.c.bf16 %v2291, %v2290
        %v2321 = vpack.c.bf16 %v2293, %v2292
        %v2322 = vpack.c.bf16 %v2295, %v2294
        %v2323 = vpack.c.bf16 %v2297, %v2296
        %v2324 = vpack.c.bf16 %v2299, %v2298
        %v2325 = vpack.c.bf16 %v2301, %v2300
        %v2326 = vpack.c.bf16 %v2303, %v2302
        %v2327 = vpack.c.bf16 %v2305, %v2304
        %v2328 = vpack.c.bf16 %v2307, %v2306
        %v2329 = vpack.c.bf16 %v2309, %v2308
        %v2330 = vpack.c.bf16 %v2311, %v2310
        %v2331 = vpack.c.bf16 %v2313, %v2312
        %v2332 = vpack.c.bf16 %v2315, %v2314
        %v2333 = vpack.c.bf16 %v2317, %v2316
        %2350 = vrot.lane.b32.xlu0 %v2318, 64
        %v2351 = vpop.permute.xlu0 %2350
        %2352 = vrot.lane.b32.xlu0 %v2319, 64
        %v2353 = vpop.permute.xlu0 %2352
        %2354 = vrot.lane.b32.xlu0 %v2320, 64
        %v2355 = vpop.permute.xlu0 %2354
        %2356 = vrot.lane.b32.xlu0 %v2321, 64
        %v2357 = vpop.permute.xlu0 %2356
        %2358 = vrot.lane.b32.xlu0 %v2322, 64
        %v2359 = vpop.permute.xlu0 %2358
        %2360 = vrot.lane.b32.xlu0 %v2323, 64
        %v2361 = vpop.permute.xlu0 %2360
        %2362 = vrot.lane.b32.xlu0 %v2324, 64
        %v2363 = vpop.permute.xlu0 %2362
        %2364 = vrot.lane.b32.xlu0 %v2325, 64
        %v2365 = vpop.permute.xlu0 %2364
        %2366 = vrot.lane.b32.xlu0 %v2326, 64
        %v2367 = vpop.permute.xlu0 %2366
        %2368 = vrot.lane.b32.xlu0 %v2327, 64
        %v2369 = vpop.permute.xlu0 %2368
        %2370 = vrot.lane.b32.xlu0 %v2328, 64
        %v2371 = vpop.permute.xlu0 %2370
        %2372 = vrot.lane.b32.xlu0 %v2329, 64
        %v2373 = vpop.permute.xlu0 %2372
        %2374 = vrot.lane.b32.xlu0 %v2330, 64
        %v2375 = vpop.permute.xlu0 %2374
        %2376 = vrot.lane.b32.xlu0 %v2331, 64
        %v2377 = vpop.permute.xlu0 %2376
        %2378 = vrot.lane.b32.xlu0 %v2332, 64
        %v2379 = vpop.permute.xlu0 %2378
        %2380 = vrot.lane.b32.xlu0 %v2333, 64
        %v2381 = vpop.permute.xlu0 %2380
        %v2383 = vsel %vm722, %v2351, 0
        %v2386 = vsel %vm722, %v2353, 0
        %v2389 = vsel %vm722, %v2355, 0
        %v2392 = vsel %vm722, %v2357, 0
        %v2395 = vsel %vm722, %v2359, 0
        %v2398 = vsel %vm722, %v2361, 0
        %v2401 = vsel %vm722, %v2363, 0
        %v2404 = vsel %vm722, %v2365, 0
        %v2407 = vsel %vm722, %v2367, 0
        %v2410 = vsel %vm722, %v2369, 0
        %v2413 = vsel %vm722, %v2371, 0
        %v2416 = vsel %vm722, %v2373, 0
        %v2419 = vsel %vm722, %v2375, 0
        %v2422 = vsel %vm722, %v2377, 0
        %v2425 = vsel %vm722, %v2379, 0
        %v2428 = vsel %vm722, %v2381, 0
        %2430 = vmatprep.subr.bf16.mxu0 0
        %2431 = vmatpush1.bf16.msra.mxu0 %v1364
        %2432 = vmatprep.subr.bf16.mxu0 0
        %2433 = vmatpush1.bf16.msra.mxu0 %v1365
        %2434 = vmatprep.subr.bf16.mxu0 0
        %2435 = vmatpush1.bf16.msra.mxu0 %v1366
        %2436 = vmatprep.subr.bf16.mxu0 0
        %2437 = vmatpush1.bf16.msra.mxu0 %v1367
        %2438 = vmatprep.subr.bf16.mxu0 0
        %2439 = vmatpush1.bf16.msra.mxu0 0
        %2440 = vmatprep.subr.bf16.mxu0 0
        %2441 = vmatpush1.bf16.msra.mxu0 0
        %2442 = vmatprep.subr.bf16.mxu0 0
        %2443 = vmatpush1.bf16.msra.mxu0 0
        %2444 = vmatprep.subr.bf16.mxu0 0
        %2445 = vmatpush1.bf16.msra.mxu0 0
        %2446 = vmatprep.subr.bf16.mxu0 0
        %2447 = vmatpush1.bf16.msra.mxu0 0
        %2448 = vmatprep.subr.bf16.mxu0 0
        %2449 = vmatpush1.bf16.msra.mxu0 0
        %2450 = vmatprep.subr.bf16.mxu0 0
        %2451 = vmatpush1.bf16.msra.mxu0 0
        %2452 = vmatprep.subr.bf16.mxu0 0
        %2453 = vmatpush1.bf16.msra.mxu0 0
        %2454 = vmatprep.subr.bf16.mxu0 0
        %2455 = vmatpush1.bf16.msra.mxu0 0
        %2456 = vmatprep.subr.bf16.mxu0 0
        %2457 = vmatpush1.bf16.msra.mxu0 0
        %2458 = vmatprep.subr.bf16.mxu0 0
        %2459 = vmatpush1.bf16.msra.mxu0 0
        %2460 = vmatprep.subr.bf16.mxu0 0
        %2461 = vmatpush1.bf16.msra.mxu0 0
        %2462 = vmatprep.mubr.bf16.mxu0 0
        %2463 = vmatmul.mubr.bf16.gmra.mrb[0].mxu0 %v2383
        %v2464 = vpop.f32.mrb[0].mxu0
        %v2465 = vadd.f32 %v526, %v2464
        %v2466 = vpop.f32.mrb[0].mxu0
        %v2467 = vpop.f32.mrb[0].mxu0
        %v2468 = vadd.f32 %v530, %v2467
        %v2469 = vpop.f32.mrb[0].mxu0
        %2470 = vmatprep.mubr.bf16.mxu0 0
        %2471 = vmatmul.mubr.bf16.gmra.mrb[0].mxu0 %v2386
        %v2472 = vpop.f32.mrb[0].mxu0
        %v2473 = vadd.f32 %v536, %v2472
        %v2474 = vpop.f32.mrb[0].mxu0
        %v2475 = vpop.f32.mrb[0].mxu0
        %v2476 = vadd.f32 %v540, %v2475
        %v2477 = vpop.f32.mrb[0].mxu0
        %2478 = vmatprep.mubr.bf16.mxu0 0
        %2479 = vmatmul.mubr.bf16.gmra.mrb[0].mxu0 %v2389
        %v2480 = vpop.f32.mrb[0].mxu0
        %v2481 = vadd.f32 %v546, %v2480
        %v2482 = vpop.f32.mrb[0].mxu0
        %v2483 = vpop.f32.mrb[0].mxu0
        %v2484 = vadd.f32 %v550, %v2483
        %v2485 = vpop.f32.mrb[0].mxu0
        %2486 = vmatprep.mubr.bf16.mxu0 0
        %2487 = vmatmul.mubr.bf16.gmra.mrb[0].mxu0 %v2392
        %v2488 = vpop.f32.mrb[0].mxu0
        %v2489 = vadd.f32 %v556, %v2488
        %v2490 = vpop.f32.mrb[0].mxu0
        %v2491 = vpop.f32.mrb[0].mxu0
        %v2492 = vadd.f32 %v560, %v2491
        %v2493 = vpop.f32.mrb[0].mxu0
        %2494 = vmatprep.mubr.bf16.mxu0 0
        %2495 = vmatmul.mubr.bf16.gmra.mrb[0].mxu0 %v2395
        %v2496 = vpop.f32.mrb[0].mxu0
        %v2497 = vadd.f32 %v566, %v2496
        %v2498 = vpop.f32.mrb[0].mxu0
        %v2499 = vpop.f32.mrb[0].mxu0
        %v2500 = vadd.f32 %v570, %v2499
        %v2501 = vpop.f32.mrb[0].mxu0
        %2502 = vmatprep.mubr.bf16.mxu0 0
        %2503 = vmatmul.mubr.bf16.gmra.mrb[0].mxu0 %v2398
        %v2504 = vpop.f32.mrb[0].mxu0
        %v2505 = vadd.f32 %v576, %v2504
        %v2506 = vpop.f32.mrb[0].mxu0
        %v2507 = vpop.f32.mrb[0].mxu0
        %v2508 = vadd.f32 %v580, %v2507
        %v2509 = vpop.f32.mrb[0].mxu0
        %2510 = vmatprep.mubr.bf16.mxu0 0
        %2511 = vmatmul.mubr.bf16.gmra.mrb[0].mxu0 %v2401
        %v2512 = vpop.f32.mrb[0].mxu0
        %v2513 = vadd.f32 %v586, %v2512
        %v2514 = vpop.f32.mrb[0].mxu0
        %v2515 = vpop.f32.mrb[0].mxu0
        %v2516 = vadd.f32 %v590, %v2515
        %v2517 = vpop.f32.mrb[0].mxu0
        %2518 = vmatprep.mubr.bf16.mxu0 0
        %2519 = vmatmul.mubr.bf16.gmra.mrb[0].mxu0 %v2404
        %v2520 = vpop.f32.mrb[0].mxu0
        %v2521 = vadd.f32 %v596, %v2520
        %v2522 = vpop.f32.mrb[0].mxu0
        %v2523 = vpop.f32.mrb[0].mxu0
        %v2524 = vadd.f32 %v600, %v2523
        %v2525 = vpop.f32.mrb[0].mxu0
        %2526 = vmatprep.mubr.bf16.mxu0 0
        %2527 = vmatmul.mubr.bf16.gmra.mrb[0].mxu0 %v2407
        %v2528 = vpop.f32.mrb[0].mxu0
        %v2529 = vadd.f32 %v606, %v2528
        %v2530 = vpop.f32.mrb[0].mxu0
        %v2531 = vpop.f32.mrb[0].mxu0
        %v2532 = vadd.f32 %v610, %v2531
        %v2533 = vpop.f32.mrb[0].mxu0
        %2534 = vmatprep.mubr.bf16.mxu0 0
        %2535 = vmatmul.mubr.bf16.gmra.mrb[0].mxu0 %v2410
        %v2536 = vpop.f32.mrb[0].mxu0
        %v2537 = vadd.f32 %v616, %v2536
        %v2538 = vpop.f32.mrb[0].mxu0
        %v2539 = vpop.f32.mrb[0].mxu0
        %v2540 = vadd.f32 %v620, %v2539
        %v2541 = vpop.f32.mrb[0].mxu0
        %2542 = vmatprep.mubr.bf16.mxu0 0
        %2543 = vmatmul.mubr.bf16.gmra.mrb[0].mxu0 %v2413
        %v2544 = vpop.f32.mrb[0].mxu0
        %v2545 = vadd.f32 %v626, %v2544
        %v2546 = vpop.f32.mrb[0].mxu0
        %v2547 = vpop.f32.mrb[0].mxu0
        %v2548 = vadd.f32 %v630, %v2547
        %v2549 = vpop.f32.mrb[0].mxu0
        %2550 = vmatprep.mubr.bf16.mxu0 0
        %2551 = vmatmul.mubr.bf16.gmra.mrb[0].mxu0 %v2416
        %v2552 = vpop.f32.mrb[0].mxu0
        %v2553 = vadd.f32 %v636, %v2552
        %v2554 = vpop.f32.mrb[0].mxu0
        %v2555 = vpop.f32.mrb[0].mxu0
        %v2556 = vadd.f32 %v640, %v2555
        %v2557 = vpop.f32.mrb[0].mxu0
        %2558 = vmatprep.mubr.bf16.mxu0 0
        %2559 = vmatmul.mubr.bf16.gmra.mrb[0].mxu0 %v2419
        %v2560 = vpop.f32.mrb[0].mxu0
        %v2561 = vadd.f32 %v646, %v2560
        %v2562 = vpop.f32.mrb[0].mxu0
        %v2563 = vpop.f32.mrb[0].mxu0
        %v2564 = vadd.f32 %v650, %v2563
        %v2565 = vpop.f32.mrb[0].mxu0
        %2566 = vmatprep.mubr.bf16.mxu0 0
        %2567 = vmatmul.mubr.bf16.gmra.mrb[0].mxu0 %v2422
        %v2568 = vpop.f32.mrb[0].mxu0
        %v2569 = vadd.f32 %v656, %v2568
        %v2570 = vpop.f32.mrb[0].mxu0
        %v2571 = vpop.f32.mrb[0].mxu0
        %v2572 = vadd.f32 %v660, %v2571
        %v2573 = vpop.f32.mrb[0].mxu0
        %2574 = vmatprep.mubr.bf16.mxu0 0
        %2575 = vmatmul.mubr.bf16.gmra.mrb[0].mxu0 %v2425
        %v2576 = vpop.f32.mrb[0].mxu0
        %v2577 = vadd.f32 %v666, %v2576
        %v2578 = vpop.f32.mrb[0].mxu0
        %v2579 = vpop.f32.mrb[0].mxu0
        %v2580 = vadd.f32 %v670, %v2579
        %v2581 = vpop.f32.mrb[0].mxu0
        %2582 = vmatprep.mubr.bf16.mxu0 0
        %2583 = vmatmul.mubr.bf16.gmra.mrb[0].mxu0 %v2428
        %v2584 = vpop.f32.mrb[0].mxu0
        %v2585 = vadd.f32 %v676, %v2584
        %v2586 = vpop.f32.mrb[0].mxu0
        %v2587 = vpop.f32.mrb[0].mxu0
        %v2588 = vadd.f32 %v680, %v2587
        %v2589 = vpop.f32.mrb[0].mxu0
        %2590 = vdwg.mxu0
        %v2591 = vtanh.pop %v2465
        %v2592 = vtanh.pop %v2468
        %v2593 = vtanh.pop %v2473
        %v2594 = vtanh.pop %v2476
        %v2595 = vtanh.pop %v2481
        %v2596 = vtanh.pop %v2484
        %v2597 = vtanh.pop %v2489
        %v2598 = vtanh.pop %v2492
        %v2599 = vtanh.pop %v2497
        %v2600 = vtanh.pop %v2500
        %v2601 = vtanh.pop %v2505
        %v2602 = vtanh.pop %v2508
        %v2603 = vtanh.pop %v2513
        %v2604 = vtanh.pop %v2516
        %v2605 = vtanh.pop %v2521
        %v2606 = vtanh.pop %v2524
        %v2607 = vtanh.pop %v2529
        %v2608 = vtanh.pop %v2532
        %v2609 = vtanh.pop %v2537
        %v2610 = vtanh.pop %v2540
        %v2611 = vtanh.pop %v2545
        %v2612 = vtanh.pop %v2548
        %v2613 = vtanh.pop %v2553
        %v2614 = vtanh.pop %v2556
        %v2615 = vtanh.pop %v2561
        %v2616 = vtanh.pop %v2564
        %v2617 = vtanh.pop %v2569
        %v2618 = vtanh.pop %v2572
        %v2619 = vtanh.pop %v2577
        %v2620 = vtanh.pop %v2580
        %v2621 = vtanh.pop %v2585
        %v2622 = vtanh.pop %v2588
        %v2623 = vsub.f32 1.0, %v2095
        %v2624 = vsub.f32 1.0, %v2097
        %v2625 = vsub.f32 1.0, %v2099
        %v2626 = vsub.f32 1.0, %v2101
        %v2627 = vsub.f32 1.0, %v2103
        %v2628 = vsub.f32 1.0, %v2105
        %v2629 = vsub.f32 1.0, %v2107
        %v2630 = vsub.f32 1.0, %v2109
        %v2631 = vsub.f32 1.0, %v2111
        %v2632 = vsub.f32 1.0, %v2113
        %v2633 = vsub.f32 1.0, %v2115
        %v2634 = vsub.f32 1.0, %v2117
        %v2635 = vsub.f32 1.0, %v2119
        %v2636 = vsub.f32 1.0, %v2121
        %v2637 = vsub.f32 1.0, %v2123
        %v2638 = vsub.f32 1.0, %v2125
        %v2639 = vsub.f32 1.0, %v2127
        %v2640 = vsub.f32 1.0, %v2129
        %v2641 = vsub.f32 1.0, %v2131
        %v2642 = vsub.f32 1.0, %v2133
        %v2643 = vsub.f32 1.0, %v2135
        %v2644 = vsub.f32 1.0, %v2137
        %v2645 = vsub.f32 1.0, %v2139
        %v2646 = vsub.f32 1.0, %v2141
        %v2647 = vsub.f32 1.0, %v2143
        %v2648 = vsub.f32 1.0, %v2145
        %v2649 = vsub.f32 1.0, %v2147
        %v2650 = vsub.f32 1.0, %v2149
        %v2651 = vsub.f32 1.0, %v2151
        %v2652 = vsub.f32 1.0, %v2153
        %v2653 = vsub.f32 1.0, %v2155
        %v2654 = vsub.f32 1.0, %v2157
        %v2655 = vmul.f32 %v2623, %v1709
        %v2656 = vmul.f32 %v2624, %v1710
        %v2657 = vmul.f32 %v2625, %v1711
        %v2658 = vmul.f32 %v2626, %v1712
        %v2659 = vmul.f32 %v2627, %v1713
        %v2660 = vmul.f32 %v2628, %v1714
        %v2661 = vmul.f32 %v2629, %v1715
        %v2662 = vmul.f32 %v2630, %v1716
        %v2663 = vmul.f32 %v2631, %v1717
        %v2664 = vmul.f32 %v2632, %v1718
        %v2665 = vmul.f32 %v2633, %v1719
        %v2666 = vmul.f32 %v2634, %v1720
        %v2667 = vmul.f32 %v2635, %v1721
        %v2668 = vmul.f32 %v2636, %v1722
        %v2669 = vmul.f32 %v2637, %v1723
        %v2670 = vmul.f32 %v2638, %v1724
        %v2671 = vmul.f32 %v2639, %v1725
        %v2672 = vmul.f32 %v2640, %v1726
        %v2673 = vmul.f32 %v2641, %v1727
        %v2674 = vmul.f32 %v2642, %v1728
        %v2675 = vmul.f32 %v2643, %v1729
        %v2676 = vmul.f32 %v2644, %v1730
        %v2677 = vmul.f32 %v2645, %v1731
        %v2678 = vmul.f32 %v2646, %v1732
        %v2679 = vmul.f32 %v2647, %v1733
        %v2680 = vmul.f32 %v2648, %v1734
        %v2681 = vmul.f32 %v2649, %v1735
        %v2682 = vmul.f32 %v2650, %v1736
        %v2683 = vmul.f32 %v2651, %v1737
        %v2684 = vmul.f32 %v2652, %v1738
        %v2685 = vmul.f32 %v2653, %v1739
        %v2686 = vmul.f32 %v2654, %v1740
        %v2687 = vmul.f32 %v2095, %v2591
        %v2688 = vmul.f32 %v2097, %v2592
        %v2689 = vmul.f32 %v2099, %v2593
        %v2690 = vmul.f32 %v2101, %v2594
        %v2691 = vmul.f32 %v2103, %v2595
        %v2692 = vmul.f32 %v2105, %v2596
        %v2693 = vmul.f32 %v2107, %v2597
        %v2694 = vmul.f32 %v2109, %v2598
        %v2695 = vmul.f32 %v2111, %v2599
        %v2696 = vmul.f32 %v2113, %v2600
        %v2697 = vmul.f32 %v2115, %v2601
        %v2698 = vmul.f32 %v2117, %v2602
        %v2699 = vmul.f32 %v2119, %v2603
        %v2700 = vmul.f32 %v2121, %v2604
        %v2701 = vmul.f32 %v2123, %v2605
        %v2702 = vmul.f32 %v2125, %v2606
        %v2703 = vmul.f32 %v2127, %v2607
        %v2704 = vmul.f32 %v2129, %v2608
        %v2705 = vmul.f32 %v2131, %v2609
        %v2706 = vmul.f32 %v2133, %v2610
        %v2707 = vmul.f32 %v2135, %v2611
        %v2708 = vmul.f32 %v2137, %v2612
        %v2709 = vmul.f32 %v2139, %v2613
        %v2710 = vmul.f32 %v2141, %v2614
        %v2711 = vmul.f32 %v2143, %v2615
        %v2712 = vmul.f32 %v2145, %v2616
        %v2713 = vmul.f32 %v2147, %v2617
        %v2714 = vmul.f32 %v2149, %v2618
        %v2715 = vmul.f32 %v2151, %v2619
        %v2716 = vmul.f32 %v2153, %v2620
        %v2717 = vmul.f32 %v2155, %v2621
        %v2718 = vmul.f32 %v2157, %v2622
        %v2719 = vadd.f32 %v2655, %v2687
        %v2720 = vadd.f32 %v2656, %v2688
        %v2721 = vadd.f32 %v2657, %v2689
        %v2722 = vadd.f32 %v2658, %v2690
        %v2723 = vadd.f32 %v2659, %v2691
        %v2724 = vadd.f32 %v2660, %v2692
        %v2725 = vadd.f32 %v2661, %v2693
        %v2726 = vadd.f32 %v2662, %v2694
        %v2727 = vadd.f32 %v2663, %v2695
        %v2728 = vadd.f32 %v2664, %v2696
        %v2729 = vadd.f32 %v2665, %v2697
        %v2730 = vadd.f32 %v2666, %v2698
        %v2731 = vadd.f32 %v2667, %v2699
        %v2732 = vadd.f32 %v2668, %v2700
        %v2733 = vadd.f32 %v2669, %v2701
        %v2734 = vadd.f32 %v2670, %v2702
        %v2735 = vadd.f32 %v2671, %v2703
        %v2736 = vadd.f32 %v2672, %v2704
        %v2737 = vadd.f32 %v2673, %v2705
        %v2738 = vadd.f32 %v2674, %v2706
        %v2739 = vadd.f32 %v2675, %v2707
        %v2740 = vadd.f32 %v2676, %v2708
        %v2741 = vadd.f32 %v2677, %v2709
        %v2742 = vadd.f32 %v2678, %v2710
        %v2743 = vadd.f32 %v2679, %v2711
        %v2744 = vadd.f32 %v2680, %v2712
        %v2745 = vadd.f32 %v2681, %v2713
        %v2746 = vadd.f32 %v2682, %v2714
        %v2747 = vadd.f32 %v2683, %v2715
        %v2748 = vadd.f32 %v2684, %v2716
        %v2749 = vadd.f32 %v2685, %v2717
        %v2750 = vadd.f32 %v2686, %v2718
        %v2751 = vpack.c.bf16 %v2720, %v2719
        %v2752 = vpack.c.bf16 %v2722, %v2721
        %v2753 = vpack.c.bf16 %v2724, %v2723
        %v2754 = vpack.c.bf16 %v2726, %v2725
        %v2755 = vpack.c.bf16 %v2728, %v2727
        %v2756 = vpack.c.bf16 %v2730, %v2729
        %v2757 = vpack.c.bf16 %v2732, %v2731
        %v2758 = vpack.c.bf16 %v2734, %v2733
        %v2759 = vpack.c.bf16 %v2736, %v2735
        %v2760 = vpack.c.bf16 %v2738, %v2737
        %v2761 = vpack.c.bf16 %v2740, %v2739
        %v2762 = vpack.c.bf16 %v2742, %v2741
        %v2763 = vpack.c.bf16 %v2744, %v2743
        %v2764 = vpack.c.bf16 %v2746, %v2745
        %v2765 = vpack.c.bf16 %v2748, %v2747
        %v2766 = vpack.c.bf16 %v2750, %v2749
        %v2768 = vsel %vm722, %v2751, 0
        %v2771 = vsel %vm722, %v2752, 0
        %v2774 = vsel %vm722, %v2753, 0
        %v2777 = vsel %vm722, %v2754, 0
        %v2780 = vsel %vm722, %v2755, 0
        %v2783 = vsel %vm722, %v2756, 0
        %v2786 = vsel %vm722, %v2757, 0
        %v2789 = vsel %vm722, %v2758, 0
        %v2792 = vsel %vm722, %v2759, 0
        %v2795 = vsel %vm722, %v2760, 0
        %v2798 = vsel %vm722, %v2761, 0
        %v2801 = vsel %vm722, %v2762, 0
        %v2804 = vsel %vm722, %v2763, 0
        %v2807 = vsel %vm722, %v2764, 0
        %v2810 = vsel %vm722, %v2765, 0
        %v2813 = vsel %vm722, %v2766, 0
        %2815 = vmatprep.subr.bf16.mxu0 0
        %2816 = vmatpush1.bf16.msra.mxu0 %v714
        %2817 = vmatprep.subr.bf16.mxu0 0
        %2818 = vmatpush1.bf16.msra.mxu0 %v715
        %2819 = vmatprep.subr.bf16.mxu0 0
        %2820 = vmatpush1.bf16.msra.mxu0 %v716
        %2821 = vmatprep.subr.bf16.mxu0 0
        %2822 = vmatpush1.bf16.msra.mxu0 %v717
        %2823 = vmatprep.subr.bf16.mxu0 0
        %2824 = vmatpush1.bf16.msra.mxu0 0
        %2825 = vmatprep.subr.bf16.mxu0 0
        %2826 = vmatpush1.bf16.msra.mxu0 0
        %2827 = vmatprep.subr.bf16.mxu0 0
        %2828 = vmatpush1.bf16.msra.mxu0 0
        %2829 = vmatprep.subr.bf16.mxu0 0
        %2830 = vmatpush1.bf16.msra.mxu0 0
        %2831 = vmatprep.subr.bf16.mxu0 0
        %2832 = vmatpush1.bf16.msra.mxu0 0
        %2833 = vmatprep.subr.bf16.mxu0 0
        %2834 = vmatpush1.bf16.msra.mxu0 0
        %2835 = vmatprep.subr.bf16.mxu0 0
        %2836 = vmatpush1.bf16.msra.mxu0 0
        %2837 = vmatprep.subr.bf16.mxu0 0
        %2838 = vmatpush1.bf16.msra.mxu0 0
        %2839 = vmatprep.subr.bf16.mxu0 0
        %2840 = vmatpush1.bf16.msra.mxu0 0
        %2841 = vmatprep.subr.bf16.mxu0 0
        %2842 = vmatpush1.bf16.msra.mxu0 0
        %2843 = vmatprep.subr.bf16.mxu0 0
        %2844 = vmatpush1.bf16.msra.mxu0 0
        %2845 = vmatprep.subr.bf16.mxu0 0
        %2846 = vmatpush1.bf16.msra.mxu0 0
        %2847 = vmatprep.mubr.bf16.mxu0 0
        %2848 = vmatmul.mubr.bf16.gmra.mrb[0].mxu0 %v2768
        %v2849 = vpop.f32.mrb[0].mxu0
        %v2850 = vadd.f32 %v524, %v2849
        %v2851 = vpop.f32.mrb[0].mxu0
        %v2852 = vpop.f32.mrb[0].mxu0
        %v2853 = vadd.f32 %v528, %v2852
        %v2854 = vpop.f32.mrb[0].mxu0
        %2855 = vmatprep.mubr.bf16.mxu0 0
        %2856 = vmatmul.mubr.bf16.gmra.mrb[0].mxu0 %v2771
        %v2857 = vpop.f32.mrb[0].mxu0
        %v2858 = vadd.f32 %v534, %v2857
        %v2859 = vpop.f32.mrb[0].mxu0
        %v2860 = vpop.f32.mrb[0].mxu0
        %v2861 = vadd.f32 %v538, %v2860
        %v2862 = vpop.f32.mrb[0].mxu0
        %2863 = vmatprep.mubr.bf16.mxu0 0
        %2864 = vmatmul.mubr.bf16.gmra.mrb[0].mxu0 %v2774
        %v2865 = vpop.f32.mrb[0].mxu0
        %v2866 = vadd.f32 %v544, %v2865
        %v2867 = vpop.f32.mrb[0].mxu0
        %v2868 = vpop.f32.mrb[0].mxu0
        %v2869 = vadd.f32 %v548, %v2868
        %v2870 = vpop.f32.mrb[0].mxu0
        %2871 = vmatprep.mubr.bf16.mxu0 0
        %2872 = vmatmul.mubr.bf16.gmra.mrb[0].mxu0 %v2777
        %v2873 = vpop.f32.mrb[0].mxu0
        %v2874 = vadd.f32 %v554, %v2873
        %v2875 = vpop.f32.mrb[0].mxu0
        %v2876 = vpop.f32.mrb[0].mxu0
        %v2877 = vadd.f32 %v558, %v2876
        %v2878 = vpop.f32.mrb[0].mxu0
        %2879 = vmatprep.mubr.bf16.mxu0 0
        %2880 = vmatmul.mubr.bf16.gmra.mrb[0].mxu0 %v2780
        %v2881 = vpop.f32.mrb[0].mxu0
        %v2882 = vadd.f32 %v564, %v2881
        %v2883 = vpop.f32.mrb[0].mxu0
        %v2884 = vpop.f32.mrb[0].mxu0
        %v2885 = vadd.f32 %v568, %v2884
        %v2886 = vpop.f32.mrb[0].mxu0
        %2887 = vmatprep.mubr.bf16.mxu0 0
        %2888 = vmatmul.mubr.bf16.gmra.mrb[0].mxu0 %v2783
        %v2889 = vpop.f32.mrb[0].mxu0
        %v2890 = vadd.f32 %v574, %v2889
        %v2891 = vpop.f32.mrb[0].mxu0
        %v2892 = vpop.f32.mrb[0].mxu0
        %v2893 = vadd.f32 %v578, %v2892
        %v2894 = vpop.f32.mrb[0].mxu0
        %2895 = vmatprep.mubr.bf16.mxu0 0
        %2896 = vmatmul.mubr.bf16.gmra.mrb[0].mxu0 %v2786
        %v2897 = vpop.f32.mrb[0].mxu0
        %v2898 = vadd.f32 %v584, %v2897
        %v2899 = vpop.f32.mrb[0].mxu0
        %v2900 = vpop.f32.mrb[0].mxu0
        %v2901 = vadd.f32 %v588, %v2900
        %v2902 = vpop.f32.mrb[0].mxu0
        %2903 = vmatprep.mubr.bf16.mxu0 0
        %2904 = vmatmul.mubr.bf16.gmra.mrb[0].mxu0 %v2789
        %v2905 = vpop.f32.mrb[0].mxu0
        %v2906 = vadd.f32 %v594, %v2905
        %v2907 = vpop.f32.mrb[0].mxu0
        %v2908 = vpop.f32.mrb[0].mxu0
        %v2909 = vadd.f32 %v598, %v2908
        %v2910 = vpop.f32.mrb[0].mxu0
        %2911 = vmatprep.mubr.bf16.mxu0 0
        %2912 = vmatmul.mubr.bf16.gmra.mrb[0].mxu0 %v2792
        %v2913 = vpop.f32.mrb[0].mxu0
        %v2914 = vadd.f32 %v604, %v2913
        %v2915 = vpop.f32.mrb[0].mxu0
        %v2916 = vpop.f32.mrb[0].mxu0
        %v2917 = vadd.f32 %v608, %v2916
        %v2918 = vpop.f32.mrb[0].mxu0
        %2919 = vmatprep.mubr.bf16.mxu0 0
        %2920 = vmatmul.mubr.bf16.gmra.mrb[0].mxu0 %v2795
        %v2921 = vpop.f32.mrb[0].mxu0
        %v2922 = vadd.f32 %v614, %v2921
        %v2923 = vpop.f32.mrb[0].mxu0
        %v2924 = vpop.f32.mrb[0].mxu0
        %v2925 = vadd.f32 %v618, %v2924
        %v2926 = vpop.f32.mrb[0].mxu0
        %2927 = vmatprep.mubr.bf16.mxu0 0
        %2928 = vmatmul.mubr.bf16.gmra.mrb[0].mxu0 %v2798
        %v2929 = vpop.f32.mrb[0].mxu0
        %v2930 = vadd.f32 %v624, %v2929
        %v2931 = vpop.f32.mrb[0].mxu0
        %v2932 = vpop.f32.mrb[0].mxu0
        %v2933 = vadd.f32 %v628, %v2932
        %v2934 = vpop.f32.mrb[0].mxu0
        %2935 = vmatprep.mubr.bf16.mxu0 0
        %2936 = vmatmul.mubr.bf16.gmra.mrb[0].mxu0 %v2801
        %v2937 = vpop.f32.mrb[0].mxu0
        %v2938 = vadd.f32 %v634, %v2937
        %v2939 = vpop.f32.mrb[0].mxu0
        %v2940 = vpop.f32.mrb[0].mxu0
        %v2941 = vadd.f32 %v638, %v2940
        %v2942 = vpop.f32.mrb[0].mxu0
        %2943 = vmatprep.mubr.bf16.mxu0 0
        %2944 = vmatmul.mubr.bf16.gmra.mrb[0].mxu0 %v2804
        %v2945 = vpop.f32.mrb[0].mxu0
        %v2946 = vadd.f32 %v644, %v2945
        %v2947 = vpop.f32.mrb[0].mxu0
        %v2948 = vpop.f32.mrb[0].mxu0
        %v2949 = vadd.f32 %v648, %v2948
        %v2950 = vpop.f32.mrb[0].mxu0
        %2951 = vmatprep.mubr.bf16.mxu0 0
        %2952 = vmatmul.mubr.bf16.gmra.mrb[0].mxu0 %v2807
        %v2953 = vpop.f32.mrb[0].mxu0
        %v2954 = vadd.f32 %v654, %v2953
        %v2955 = vpop.f32.mrb[0].mxu0
        %v2956 = vpop.f32.mrb[0].mxu0
        %v2957 = vadd.f32 %v658, %v2956
        %v2958 = vpop.f32.mrb[0].mxu0
        %2959 = vmatprep.mubr.bf16.mxu0 0
        %2960 = vmatmul.mubr.bf16.gmra.mrb[0].mxu0 %v2810
        %v2961 = vpop.f32.mrb[0].mxu0
        %v2962 = vadd.f32 %v664, %v2961
        %v2963 = vpop.f32.mrb[0].mxu0
        %v2964 = vpop.f32.mrb[0].mxu0
        %v2965 = vadd.f32 %v668, %v2964
        %v2966 = vpop.f32.mrb[0].mxu0
        %2967 = vmatprep.mubr.bf16.mxu0 0
        %2968 = vmatmul.mubr.bf16.gmra.mrb[0].mxu0 %v2813
        %v2969 = vpop.f32.mrb[0].mxu0
        %v2970 = vadd.f32 %v674, %v2969
        %v2971 = vpop.f32.mrb[0].mxu0
        %v2972 = vpop.f32.mrb[0].mxu0
        %v2973 = vadd.f32 %v678, %v2972
        %v2974 = vpop.f32.mrb[0].mxu0
        %2975 = vdwg.mxu0
        %v2976 = vxor.u32 %v2850, 2147483648
        %v2977 = vxor.u32 %v2853, 2147483648
        %v2978 = vxor.u32 %v2858, 2147483648
        %v2979 = vxor.u32 %v2861, 2147483648
        %v2980 = vxor.u32 %v2866, 2147483648
        %v2981 = vxor.u32 %v2869, 2147483648
        %v2982 = vxor.u32 %v2874, 2147483648
        %v2983 = vxor.u32 %v2877, 2147483648
        %v2984 = vxor.u32 %v2882, 2147483648
        %v2985 = vxor.u32 %v2885, 2147483648
        %v2986 = vxor.u32 %v2890, 2147483648
        %v2987 = vxor.u32 %v2893, 2147483648
        %v2988 = vxor.u32 %v2898, 2147483648
        %v2989 = vxor.u32 %v2901, 2147483648
        %v2990 = vxor.u32 %v2906, 2147483648
        %v2991 = vxor.u32 %v2909, 2147483648
        %v2992 = vxor.u32 %v2914, 2147483648
        %v2993 = vxor.u32 %v2917, 2147483648
        %v2994 = vxor.u32 %v2922, 2147483648
        %v2995 = vxor.u32 %v2925, 2147483648
        %v2996 = vxor.u32 %v2930, 2147483648
        %v2997 = vxor.u32 %v2933, 2147483648
        %v2998 = vxor.u32 %v2938, 2147483648
        %v2999 = vxor.u32 %v2941, 2147483648
        %v3000 = vxor.u32 %v2946, 2147483648
        %v3001 = vxor.u32 %v2949, 2147483648
        %v3002 = vxor.u32 %v2954, 2147483648
        %v3003 = vxor.u32 %v2957, 2147483648
        %v3004 = vxor.u32 %v2962, 2147483648
        %v3005 = vxor.u32 %v2965, 2147483648
        %v3006 = vxor.u32 %v2970, 2147483648
        %v3007 = vxor.u32 %v2973, 2147483648
        %v3008 = vmul.f32 %v2976, 1.442695
        %v3009 = vpow.pop %v3008
        %v3010 = vmul.f32 %v2977, 1.442695
        %v3011 = vpow.pop %v3010
        %v3012 = vmul.f32 %v2978, 1.442695
        %v3013 = vpow.pop %v3012
        %v3014 = vmul.f32 %v2979, 1.442695
        %v3015 = vpow.pop %v3014
        %v3016 = vmul.f32 %v2980, 1.442695
        %v3017 = vpow.pop %v3016
        %v3018 = vmul.f32 %v2981, 1.442695
        %v3019 = vpow.pop %v3018
        %v3020 = vmul.f32 %v2982, 1.442695
        %v3021 = vpow.pop %v3020
        %v3022 = vmul.f32 %v2983, 1.442695
        %v3023 = vpow.pop %v3022
        %v3024 = vmul.f32 %v2984, 1.442695
        %v3025 = vpow.pop %v3024
        %v3026 = vmul.f32 %v2985, 1.442695
        %v3027 = vpow.pop %v3026
        %v3028 = vmul.f32 %v2986, 1.442695
        %v3029 = vpow.pop %v3028
        %v3030 = vmul.f32 %v2987, 1.442695
        %v3031 = vpow.pop %v3030
        %v3032 = vmul.f32 %v2988, 1.442695
        %v3033 = vpow.pop %v3032
        %v3034 = vmul.f32 %v2989, 1.442695
        %v3035 = vpow.pop %v3034
        %v3036 = vmul.f32 %v2990, 1.442695
        %v3037 = vpow.pop %v3036
        %v3038 = vmul.f32 %v2991, 1.442695
        %v3039 = vpow.pop %v3038
        %v3040 = vmul.f32 %v2992, 1.442695
        %v3041 = vpow.pop %v3040
        %v3042 = vmul.f32 %v2993, 1.442695
        %v3043 = vpow.pop %v3042
        %v3044 = vmul.f32 %v2994, 1.442695
        %v3045 = vpow.pop %v3044
        %v3046 = vmul.f32 %v2995, 1.442695
        %v3047 = vpow.pop %v3046
        %v3048 = vmul.f32 %v2996, 1.442695
        %v3049 = vpow.pop %v3048
        %v3050 = vmul.f32 %v2997, 1.442695
        %v3051 = vpow.pop %v3050
        %v3052 = vmul.f32 %v2998, 1.442695
        %v3053 = vpow.pop %v3052
        %v3054 = vmul.f32 %v2999, 1.442695
        %v3055 = vpow.pop %v3054
        %v3056 = vmul.f32 %v3000, 1.442695
        %v3057 = vpow.pop %v3056
        %v3058 = vmul.f32 %v3001, 1.442695
        %v3059 = vpow.pop %v3058
        %v3060 = vmul.f32 %v3002, 1.442695
        %v3061 = vpow.pop %v3060
        %v3062 = vmul.f32 %v3003, 1.442695
        %v3063 = vpow.pop %v3062
        %v3064 = vmul.f32 %v3004, 1.442695
        %v3065 = vpow.pop %v3064
        %v3066 = vmul.f32 %v3005, 1.442695
        %v3067 = vpow.pop %v3066
        %v3068 = vmul.f32 %v3006, 1.442695
        %v3069 = vpow.pop %v3068
        %v3070 = vmul.f32 %v3007, 1.442695
        %v3071 = vpow.pop %v3070
        %v3072 = vadd.f32 %v3009, 1.0
        %v3073 = vadd.f32 %v3011, 1.0
        %v3074 = vadd.f32 %v3013, 1.0
        %v3075 = vadd.f32 %v3015, 1.0
        %v3076 = vadd.f32 %v3017, 1.0
        %v3077 = vadd.f32 %v3019, 1.0
        %v3078 = vadd.f32 %v3021, 1.0
        %v3079 = vadd.f32 %v3023, 1.0
        %v3080 = vadd.f32 %v3025, 1.0
        %v3081 = vadd.f32 %v3027, 1.0
        %v3082 = vadd.f32 %v3029, 1.0
        %v3083 = vadd.f32 %v3031, 1.0
        %v3084 = vadd.f32 %v3033, 1.0
        %v3085 = vadd.f32 %v3035, 1.0
        %v3086 = vadd.f32 %v3037, 1.0
        %v3087 = vadd.f32 %v3039, 1.0
        %v3088 = vadd.f32 %v3041, 1.0
        %v3089 = vadd.f32 %v3043, 1.0
        %v3090 = vadd.f32 %v3045, 1.0
        %v3091 = vadd.f32 %v3047, 1.0
        %v3092 = vadd.f32 %v3049, 1.0
        %v3093 = vadd.f32 %v3051, 1.0
        %v3094 = vadd.f32 %v3053, 1.0
        %v3095 = vadd.f32 %v3055, 1.0
        %v3096 = vadd.f32 %v3057, 1.0
        %v3097 = vadd.f32 %v3059, 1.0
        %v3098 = vadd.f32 %v3061, 1.0
        %v3099 = vadd.f32 %v3063, 1.0
        %v3100 = vadd.f32 %v3065, 1.0
        %v3101 = vadd.f32 %v3067, 1.0
        %v3102 = vadd.f32 %v3069, 1.0
        %v3103 = vadd.f32 %v3071, 1.0
        %v3104 = vrcp.pop %v3072
        %v3105 = vmul.f32 1.0, %v3104
        %v3106 = vrcp.pop %v3073
        %v3107 = vmul.f32 1.0, %v3106
        %v3108 = vrcp.pop %v3074
        %v3109 = vmul.f32 1.0, %v3108
        %v3110 = vrcp.pop %v3075
        %v3111 = vmul.f32 1.0, %v3110
        %v3112 = vrcp.pop %v3076
        %v3113 = vmul.f32 1.0, %v3112
        %v3114 = vrcp.pop %v3077
        %v3115 = vmul.f32 1.0, %v3114
        %v3116 = vrcp.pop %v3078
        %v3117 = vmul.f32 1.0, %v3116
        %v3118 = vrcp.pop %v3079
        %v3119 = vmul.f32 1.0, %v3118
        %v3120 = vrcp.pop %v3080
        %v3121 = vmul.f32 1.0, %v3120
        %v3122 = vrcp.pop %v3081
        %v3123 = vmul.f32 1.0, %v3122
        %v3124 = vrcp.pop %v3082
        %v3125 = vmul.f32 1.0, %v3124
        %v3126 = vrcp.pop %v3083
        %v3127 = vmul.f32 1.0, %v3126
        %v3128 = vrcp.pop %v3084
        %v3129 = vmul.f32 1.0, %v3128
        %v3130 = vrcp.pop %v3085
        %v3131 = vmul.f32 1.0, %v3130
        %v3132 = vrcp.pop %v3086
        %v3133 = vmul.f32 1.0, %v3132
        %v3134 = vrcp.pop %v3087
        %v3135 = vmul.f32 1.0, %v3134
        %v3136 = vrcp.pop %v3088
        %v3137 = vmul.f32 1.0, %v3136
        %v3138 = vrcp.pop %v3089
        %v3139 = vmul.f32 1.0, %v3138
        %v3140 = vrcp.pop %v3090
        %v3141 = vmul.f32 1.0, %v3140
        %v3142 = vrcp.pop %v3091
        %v3143 = vmul.f32 1.0, %v3142
        %v3144 = vrcp.pop %v3092
        %v3145 = vmul.f32 1.0, %v3144
        %v3146 = vrcp.pop %v3093
        %v3147 = vmul.f32 1.0, %v3146
        %v3148 = vrcp.pop %v3094
        %v3149 = vmul.f32 1.0, %v3148
        %v3150 = vrcp.pop %v3095
        %v3151 = vmul.f32 1.0, %v3150
        %v3152 = vrcp.pop %v3096
        %v3153 = vmul.f32 1.0, %v3152
        %v3154 = vrcp.pop %v3097
        %v3155 = vmul.f32 1.0, %v3154
        %v3156 = vrcp.pop %v3098
        %v3157 = vmul.f32 1.0, %v3156
        %v3158 = vrcp.pop %v3099
        %v3159 = vmul.f32 1.0, %v3158
        %v3160 = vrcp.pop %v3100
        %v3161 = vmul.f32 1.0, %v3160
        %v3162 = vrcp.pop %v3101
        %v3163 = vmul.f32 1.0, %v3162
        %v3164 = vrcp.pop %v3102
        %v3165 = vmul.f32 1.0, %v3164
        %v3166 = vrcp.pop %v3103
        %v3167 = vmul.f32 1.0, %v3166
        %3200 = vrot.lane.b32.xlu0 %v2719, 64
        %v3201 = vpop.permute.xlu0 %3200
        %3202 = vrot.lane.b32.xlu0 %v2720, 64
        %v3203 = vpop.permute.xlu0 %3202
        %3204 = vrot.lane.b32.xlu0 %v2721, 64
        %v3205 = vpop.permute.xlu0 %3204
        %3206 = vrot.lane.b32.xlu0 %v2722, 64
        %v3207 = vpop.permute.xlu0 %3206
        %3208 = vrot.lane.b32.xlu0 %v2723, 64
        %v3209 = vpop.permute.xlu0 %3208
        %3210 = vrot.lane.b32.xlu0 %v2724, 64
        %v3211 = vpop.permute.xlu0 %3210
        %3212 = vrot.lane.b32.xlu0 %v2725, 64
        %v3213 = vpop.permute.xlu0 %3212
        %3214 = vrot.lane.b32.xlu0 %v2726, 64
        %v3215 = vpop.permute.xlu0 %3214
        %3216 = vrot.lane.b32.xlu0 %v2727, 64
        %v3217 = vpop.permute.xlu0 %3216
        %3218 = vrot.lane.b32.xlu0 %v2728, 64
        %v3219 = vpop.permute.xlu0 %3218
        %3220 = vrot.lane.b32.xlu0 %v2729, 64
        %v3221 = vpop.permute.xlu0 %3220
        %3222 = vrot.lane.b32.xlu0 %v2730, 64
        %v3223 = vpop.permute.xlu0 %3222
        %3224 = vrot.lane.b32.xlu0 %v2731, 64
        %v3225 = vpop.permute.xlu0 %3224
        %3226 = vrot.lane.b32.xlu0 %v2732, 64
        %v3227 = vpop.permute.xlu0 %3226
        %3228 = vrot.lane.b32.xlu0 %v2733, 64
        %v3229 = vpop.permute.xlu0 %3228
        %3230 = vrot.lane.b32.xlu0 %v2734, 64
        %v3231 = vpop.permute.xlu0 %3230
        %3232 = vrot.lane.b32.xlu0 %v2735, 64
        %v3233 = vpop.permute.xlu0 %3232
        %3234 = vrot.lane.b32.xlu0 %v2736, 64
        %v3235 = vpop.permute.xlu0 %3234
        %3236 = vrot.lane.b32.xlu0 %v2737, 64
        %v3237 = vpop.permute.xlu0 %3236
        %3238 = vrot.lane.b32.xlu0 %v2738, 64
        %v3239 = vpop.permute.xlu0 %3238
        %3240 = vrot.lane.b32.xlu0 %v2739, 64
        %v3241 = vpop.permute.xlu0 %3240
        %3242 = vrot.lane.b32.xlu0 %v2740, 64
        %v3243 = vpop.permute.xlu0 %3242
        %3244 = vrot.lane.b32.xlu0 %v2741, 64
        %v3245 = vpop.permute.xlu0 %3244
        %3246 = vrot.lane.b32.xlu0 %v2742, 64
        %v3247 = vpop.permute.xlu0 %3246
        %3248 = vrot.lane.b32.xlu0 %v2743, 64
        %v3249 = vpop.permute.xlu0 %3248
        %3250 = vrot.lane.b32.xlu0 %v2744, 64
        %v3251 = vpop.permute.xlu0 %3250
        %3252 = vrot.lane.b32.xlu0 %v2745, 64
        %v3253 = vpop.permute.xlu0 %3252
        %3254 = vrot.lane.b32.xlu0 %v2746, 64
        %v3255 = vpop.permute.xlu0 %3254
        %3256 = vrot.lane.b32.xlu0 %v2747, 64
        %v3257 = vpop.permute.xlu0 %3256
        %3258 = vrot.lane.b32.xlu0 %v2748, 64
        %v3259 = vpop.permute.xlu0 %3258
        %3260 = vrot.lane.b32.xlu0 %v2749, 64
        %v3261 = vpop.permute.xlu0 %3260
        %3262 = vrot.lane.b32.xlu0 %v2750, 64
        %v3263 = vpop.permute.xlu0 %3262
        %v3296 = vmul.f32 %v3105, %v3201
        %v3297 = vmul.f32 %v3107, %v3203
        %v3298 = vmul.f32 %v3109, %v3205
        %v3299 = vmul.f32 %v3111, %v3207
        %v3300 = vmul.f32 %v3113, %v3209
        %v3301 = vmul.f32 %v3115, %v3211
        %v3302 = vmul.f32 %v3117, %v3213
        %v3303 = vmul.f32 %v3119, %v3215
        %v3304 = vmul.f32 %v3121, %v3217
        %v3305 = vmul.f32 %v3123, %v3219
        %v3306 = vmul.f32 %v3125, %v3221
        %v3307 = vmul.f32 %v3127, %v3223
        %v3308 = vmul.f32 %v3129, %v3225
        %v3309 = vmul.f32 %v3131, %v3227
        %v3310 = vmul.f32 %v3133, %v3229
        %v3311 = vmul.f32 %v3135, %v3231
        %v3312 = vmul.f32 %v3137, %v3233
        %v3313 = vmul.f32 %v3139, %v3235
        %v3314 = vmul.f32 %v3141, %v3237
        %v3315 = vmul.f32 %v3143, %v3239
        %v3316 = vmul.f32 %v3145, %v3241
        %v3317 = vmul.f32 %v3147, %v3243
        %v3318 = vmul.f32 %v3149, %v3245
        %v3319 = vmul.f32 %v3151, %v3247
        %v3320 = vmul.f32 %v3153, %v3249
        %v3321 = vmul.f32 %v3155, %v3251
        %v3322 = vmul.f32 %v3157, %v3253
        %v3323 = vmul.f32 %v3159, %v3255
        %v3324 = vmul.f32 %v3161, %v3257
        %v3325 = vmul.f32 %v3163, %v3259
        %v3326 = vmul.f32 %v3165, %v3261
        %v3327 = vmul.f32 %v3167, %v3263
        %v3328 = vpack.c.bf16 %v3297, %v3296
        %v3329 = vpack.c.bf16 %v3299, %v3298
        %v3330 = vpack.c.bf16 %v3301, %v3300
        %v3331 = vpack.c.bf16 %v3303, %v3302
        %v3332 = vpack.c.bf16 %v3305, %v3304
        %v3333 = vpack.c.bf16 %v3307, %v3306
        %v3334 = vpack.c.bf16 %v3309, %v3308
        %v3335 = vpack.c.bf16 %v3311, %v3310
        %v3336 = vpack.c.bf16 %v3313, %v3312
        %v3337 = vpack.c.bf16 %v3315, %v3314
        %v3338 = vpack.c.bf16 %v3317, %v3316
        %v3339 = vpack.c.bf16 %v3319, %v3318
        %v3340 = vpack.c.bf16 %v3321, %v3320
        %v3341 = vpack.c.bf16 %v3323, %v3322
        %v3342 = vpack.c.bf16 %v3325, %v3324
        %v3343 = vpack.c.bf16 %v3327, %v3326
        %3360 = vrot.lane.b32.xlu0 %v3328, 64
        %v3361 = vpop.permute.xlu0 %3360
        %3362 = vrot.lane.b32.xlu0 %v3329, 64
        %v3363 = vpop.permute.xlu0 %3362
        %3364 = vrot.lane.b32.xlu0 %v3330, 64
        %v3365 = vpop.permute.xlu0 %3364
        %3366 = vrot.lane.b32.xlu0 %v3331, 64
        %v3367 = vpop.permute.xlu0 %3366
        %3368 = vrot.lane.b32.xlu0 %v3332, 64
        %v3369 = vpop.permute.xlu0 %3368
        %3370 = vrot.lane.b32.xlu0 %v3333, 64
        %v3371 = vpop.permute.xlu0 %3370
        %3372 = vrot.lane.b32.xlu0 %v3334, 64
        %v3373 = vpop.permute.xlu0 %3372
        %3374 = vrot.lane.b32.xlu0 %v3335, 64
        %v3375 = vpop.permute.xlu0 %3374
        %3376 = vrot.lane.b32.xlu0 %v3336, 64
        %v3377 = vpop.permute.xlu0 %3376
        %3378 = vrot.lane.b32.xlu0 %v3337, 64
        %v3379 = vpop.permute.xlu0 %3378
        %3380 = vrot.lane.b32.xlu0 %v3338, 64
        %v3381 = vpop.permute.xlu0 %3380
        %3382 = vrot.lane.b32.xlu0 %v3339, 64
        %v3383 = vpop.permute.xlu0 %3382
        %3384 = vrot.lane.b32.xlu0 %v3340, 64
        %v3385 = vpop.permute.xlu0 %3384
        %3386 = vrot.lane.b32.xlu0 %v3341, 64
        %v3387 = vpop.permute.xlu0 %3386
        %3388 = vrot.lane.b32.xlu0 %v3342, 64
        %v3389 = vpop.permute.xlu0 %3388
        %3390 = vrot.lane.b32.xlu0 %v3343, 64
        %v3391 = vpop.permute.xlu0 %3390
        %v3393 = vsel %vm722, %v3361, 0
        %v3396 = vsel %vm722, %v3363, 0
        %v3399 = vsel %vm722, %v3365, 0
        %v3402 = vsel %vm722, %v3367, 0
        %v3405 = vsel %vm722, %v3369, 0
        %v3408 = vsel %vm722, %v3371, 0
        %v3411 = vsel %vm722, %v3373, 0
        %v3414 = vsel %vm722, %v3375, 0
        %v3417 = vsel %vm722, %v3377, 0
        %v3420 = vsel %vm722, %v3379, 0
        %v3423 = vsel %vm722, %v3381, 0
        %v3426 = vsel %vm722, %v3383, 0
        %v3429 = vsel %vm722, %v3385, 0
        %v3432 = vsel %vm722, %v3387, 0
        %v3435 = vsel %vm722, %v3389, 0
        %v3438 = vsel %vm722, %v3391, 0
        %3440 = vmatprep.subr.bf16.mxu0 0
        %3441 = vmatpush1.bf16.msra.mxu0 %v1364
        %3442 = vmatprep.subr.bf16.mxu0 0
        %3443 = vmatpush1.bf16.msra.mxu0 %v1365
        %3444 = vmatprep.subr.bf16.mxu0 0
        %3445 = vmatpush1.bf16.msra.mxu0 %v1366
        %3446 = vmatprep.subr.bf16.mxu0 0
        %3447 = vmatpush1.bf16.msra.mxu0 %v1367
        %3448 = vmatprep.subr.bf16.mxu0 0
        %3449 = vmatpush1.bf16.msra.mxu0 0
        %3450 = vmatprep.subr.bf16.mxu0 0
        %3451 = vmatpush1.bf16.msra.mxu0 0
        %3452 = vmatprep.subr.bf16.mxu0 0
        %3453 = vmatpush1.bf16.msra.mxu0 0
        %3454 = vmatprep.subr.bf16.mxu0 0
        %3455 = vmatpush1.bf16.msra.mxu0 0
        %3456 = vmatprep.subr.bf16.mxu0 0
        %3457 = vmatpush1.bf16.msra.mxu0 0
        %3458 = vmatprep.subr.bf16.mxu0 0
        %3459 = vmatpush1.bf16.msra.mxu0 0
        %3460 = vmatprep.subr.bf16.mxu0 0
        %3461 = vmatpush1.bf16.msra.mxu0 0
        %3462 = vmatprep.subr.bf16.mxu0 0
        %3463 = vmatpush1.bf16.msra.mxu0 0
        %3464 = vmatprep.subr.bf16.mxu0 0
        %3465 = vmatpush1.bf16.msra.mxu0 0
        %3466 = vmatprep.subr.bf16.mxu0 0
        %3467 = vmatpush1.bf16.msra.mxu0 0
        %3468 = vmatprep.subr.bf16.mxu0 0
        %3469 = vmatpush1.bf16.msra.mxu0 0
        %3470 = vmatprep.subr.bf16.mxu0 0
        %3471 = vmatpush1.bf16.msra.mxu0 0
        %3472 = vmatprep.mubr.bf16.mxu0 0
        %3473 = vmatmul.mubr.bf16.gmra.mrb[0].mxu0 %v3393
        %v3474 = vpop.f32.mrb[0].mxu0
        %v3475 = vadd.f32 %v526, %v3474
        %v3476 = vpop.f32.mrb[0].mxu0
        %v3477 = vpop.f32.mrb[0].mxu0
        %v3478 = vadd.f32 %v530, %v3477
        %v3479 = vpop.f32.mrb[0].mxu0
        %3480 = vmatprep.mubr.bf16.mxu0 0
        %3481 = vmatmul.mubr.bf16.gmra.mrb[0].mxu0 %v3396
        %v3482 = vpop.f32.mrb[0].mxu0
        %v3483 = vadd.f32 %v536, %v3482
        %v3484 = vpop.f32.mrb[0].mxu0
        %v3485 = vpop.f32.mrb[0].mxu0
        %v3486 = vadd.f32 %v540, %v3485
        %v3487 = vpop.f32.mrb[0].mxu0
        %3488 = vmatprep.mubr.bf16.mxu0 0
        %3489 = vmatmul.mubr.bf16.gmra.mrb[0].mxu0 %v3399
        %v3490 = vpop.f32.mrb[0].mxu0
        %v3491 = vadd.f32 %v546, %v3490
        %v3492 = vpop.f32.mrb[0].mxu0
        %v3493 = vpop.f32.mrb[0].mxu0
        %v3494 = vadd.f32 %v550, %v3493
        %v3495 = vpop.f32.mrb[0].mxu0
        %3496 = vmatprep.mubr.bf16.mxu0 0
        %3497 = vmatmul.mubr.bf16.gmra.mrb[0].mxu0 %v3402
        %v3498 = vpop.f32.mrb[0].mxu0
        %v3499 = vadd.f32 %v556, %v3498
        %v3500 = vpop.f32.mrb[0].mxu0
        %v3501 = vpop.f32.mrb[0].mxu0
        %v3502 = vadd.f32 %v560, %v3501
        %v3503 = vpop.f32.mrb[0].mxu0
        %3504 = vmatprep.mubr.bf16.mxu0 0
        %3505 = vmatmul.mubr.bf16.gmra.mrb[0].mxu0 %v3405
        %v3506 = vpop.f32.mrb[0].mxu0
        %v3507 = vadd.f32 %v566, %v3506
        %v3508 = vpop.f32.mrb[0].mxu0
        %v3509 = vpop.f32.mrb[0].mxu0
        %v3510 = vadd.f32 %v570, %v3509
        %v3511 = vpop.f32.mrb[0].mxu0
        %3512 = vmatprep.mubr.bf16.mxu0 0
        %3513 = vmatmul.mubr.bf16.gmra.mrb[0].mxu0 %v3408
        %v3514 = vpop.f32.mrb[0].mxu0
        %v3515 = vadd.f32 %v576, %v3514
        %v3516 = vpop.f32.mrb[0].mxu0
        %v3517 = vpop.f32.mrb[0].mxu0
        %v3518 = vadd.f32 %v580, %v3517
        %v3519 = vpop.f32.mrb[0].mxu0
        %3520 = vmatprep.mubr.bf16.mxu0 0
        %3521 = vmatmul.mubr.bf16.gmra.mrb[0].mxu0 %v3411
        %v3522 = vpop.f32.mrb[0].mxu0
        %v3523 = vadd.f32 %v586, %v3522
        %v3524 = vpop.f32.mrb[0].mxu0
        %v3525 = vpop.f32.mrb[0].mxu0
        %v3526 = vadd.f32 %v590, %v3525
        %v3527 = vpop.f32.mrb[0].mxu0
        %3528 = vmatprep.mubr.bf16.mxu0 0
        %3529 = vmatmul.mubr.bf16.gmra.mrb[0].mxu0 %v3414
        %v3530 = vpop.f32.mrb[0].mxu0
        %v3531 = vadd.f32 %v596, %v3530
        %v3532 = vpop.f32.mrb[0].mxu0
        %v3533 = vpop.f32.mrb[0].mxu0
        %v3534 = vadd.f32 %v600, %v3533
        %v3535 = vpop.f32.mrb[0].mxu0
        %3536 = vmatprep.mubr.bf16.mxu0 0
        %3537 = vmatmul.mubr.bf16.gmra.mrb[0].mxu0 %v3417
        %v3538 = vpop.f32.mrb[0].mxu0
        %v3539 = vadd.f32 %v606, %v3538
        %v3540 = vpop.f32.mrb[0].mxu0
        %v3541 = vpop.f32.mrb[0].mxu0
        %v3542 = vadd.f32 %v610, %v3541
        %v3543 = vpop.f32.mrb[0].mxu0
        %3544 = vmatprep.mubr.bf16.mxu0 0
        %3545 = vmatmul.mubr.bf16.gmra.mrb[0].mxu0 %v3420
        %v3546 = vpop.f32.mrb[0].mxu0
        %v3547 = vadd.f32 %v616, %v3546
        %v3548 = vpop.f32.mrb[0].mxu0
        %v3549 = vpop.f32.mrb[0].mxu0
        %v3550 = vadd.f32 %v620, %v3549
        %v3551 = vpop.f32.mrb[0].mxu0
        %3552 = vmatprep.mubr.bf16.mxu0 0
        %3553 = vmatmul.mubr.bf16.gmra.mrb[0].mxu0 %v3423
        %v3554 = vpop.f32.mrb[0].mxu0
        %v3555 = vadd.f32 %v626, %v3554
        %v3556 = vpop.f32.mrb[0].mxu0
        %v3557 = vpop.f32.mrb[0].mxu0
        %v3558 = vadd.f32 %v630, %v3557
        %v3559 = vpop.f32.mrb[0].mxu0
        %3560 = vmatprep.mubr.bf16.mxu0 0
        %3561 = vmatmul.mubr.bf16.gmra.mrb[0].mxu0 %v3426
        %v3562 = vpop.f32.mrb[0].mxu0
        %v3563 = vadd.f32 %v636, %v3562
        %v3564 = vpop.f32.mrb[0].mxu0
        %v3565 = vpop.f32.mrb[0].mxu0
        %v3566 = vadd.f32 %v640, %v3565
        %v3567 = vpop.f32.mrb[0].mxu0
        %3568 = vmatprep.mubr.bf16.mxu0 0
        %3569 = vmatmul.mubr.bf16.gmra.mrb[0].mxu0 %v3429
        %v3570 = vpop.f32.mrb[0].mxu0
        %v3571 = vadd.f32 %v646, %v3570
        %v3572 = vpop.f32.mrb[0].mxu0
        %v3573 = vpop.f32.mrb[0].mxu0
        %v3574 = vadd.f32 %v650, %v3573
        %v3575 = vpop.f32.mrb[0].mxu0
        %3576 = vmatprep.mubr.bf16.mxu0 0
        %3577 = vmatmul.mubr.bf16.gmra.mrb[0].mxu0 %v3432
        %v3578 = vpop.f32.mrb[0].mxu0
        %v3579 = vadd.f32 %v656, %v3578
        %v3580 = vpop.f32.mrb[0].mxu0
        %v3581 = vpop.f32.mrb[0].mxu0
        %v3582 = vadd.f32 %v660, %v3581
        %v3583 = vpop.f32.mrb[0].mxu0
        %3584 = vmatprep.mubr.bf16.mxu0 0
        %3585 = vmatmul.mubr.bf16.gmra.mrb[0].mxu0 %v3435
        %v3586 = vpop.f32.mrb[0].mxu0
        %v3587 = vadd.f32 %v666, %v3586
        %v3588 = vpop.f32.mrb[0].mxu0
        %v3589 = vpop.f32.mrb[0].mxu0
        %v3590 = vadd.f32 %v670, %v3589
        %v3591 = vpop.f32.mrb[0].mxu0
        %3592 = vmatprep.mubr.bf16.mxu0 0
        %3593 = vmatmul.mubr.bf16.gmra.mrb[0].mxu0 %v3438
        %v3594 = vpop.f32.mrb[0].mxu0
        %v3595 = vadd.f32 %v676, %v3594
        %v3596 = vpop.f32.mrb[0].mxu0
        %v3597 = vpop.f32.mrb[0].mxu0
        %v3598 = vadd.f32 %v680, %v3597
        %v3599 = vpop.f32.mrb[0].mxu0
        %3600 = vdwg.mxu0
        %v3601 = vtanh.pop %v3475
        %v3602 = vtanh.pop %v3478
        %v3603 = vtanh.pop %v3483
        %v3604 = vtanh.pop %v3486
        %v3605 = vtanh.pop %v3491
        %v3606 = vtanh.pop %v3494
        %v3607 = vtanh.pop %v3499
        %v3608 = vtanh.pop %v3502
        %v3609 = vtanh.pop %v3507
        %v3610 = vtanh.pop %v3510
        %v3611 = vtanh.pop %v3515
        %v3612 = vtanh.pop %v3518
        %v3613 = vtanh.pop %v3523
        %v3614 = vtanh.pop %v3526
        %v3615 = vtanh.pop %v3531
        %v3616 = vtanh.pop %v3534
        %v3617 = vtanh.pop %v3539
        %v3618 = vtanh.pop %v3542
        %v3619 = vtanh.pop %v3547
        %v3620 = vtanh.pop %v3550
        %v3621 = vtanh.pop %v3555
        %v3622 = vtanh.pop %v3558
        %v3623 = vtanh.pop %v3563
        %v3624 = vtanh.pop %v3566
        %v3625 = vtanh.pop %v3571
        %v3626 = vtanh.pop %v3574
        %v3627 = vtanh.pop %v3579
        %v3628 = vtanh.pop %v3582
        %v3629 = vtanh.pop %v3587
        %v3630 = vtanh.pop %v3590
        %v3631 = vtanh.pop %v3595
        %v3632 = vtanh.pop %v3598
        %v3633 = vsub.f32 1.0, %v3105
        %v3634 = vsub.f32 1.0, %v3107
        %v3635 = vsub.f32 1.0, %v3109
        %v3636 = vsub.f32 1.0, %v3111
        %v3637 = vsub.f32 1.0, %v3113
        %v3638 = vsub.f32 1.0, %v3115
        %v3639 = vsub.f32 1.0, %v3117
        %v3640 = vsub.f32 1.0, %v3119
        %v3641 = vsub.f32 1.0, %v3121
        %v3642 = vsub.f32 1.0, %v3123
        %v3643 = vsub.f32 1.0, %v3125
        %v3644 = vsub.f32 1.0, %v3127
        %v3645 = vsub.f32 1.0, %v3129
        %v3646 = vsub.f32 1.0, %v3131
        %v3647 = vsub.f32 1.0, %v3133
        %v3648 = vsub.f32 1.0, %v3135
        %v3649 = vsub.f32 1.0, %v3137
        %v3650 = vsub.f32 1.0, %v3139
        %v3651 = vsub.f32 1.0, %v3141
        %v3652 = vsub.f32 1.0, %v3143
        %v3653 = vsub.f32 1.0, %v3145
        %v3654 = vsub.f32 1.0, %v3147
        %v3655 = vsub.f32 1.0, %v3149
        %v3656 = vsub.f32 1.0, %v3151
        %v3657 = vsub.f32 1.0, %v3153
        %v3658 = vsub.f32 1.0, %v3155
        %v3659 = vsub.f32 1.0, %v3157
        %v3660 = vsub.f32 1.0, %v3159
        %v3661 = vsub.f32 1.0, %v3161
        %v3662 = vsub.f32 1.0, %v3163
        %v3663 = vsub.f32 1.0, %v3165
        %v3664 = vsub.f32 1.0, %v3167
        %v3665 = vmul.f32 %v3633, %v2719
        %v3666 = vmul.f32 %v3634, %v2720
        %v3667 = vmul.f32 %v3635, %v2721
        %v3668 = vmul.f32 %v3636, %v2722
        %v3669 = vmul.f32 %v3637, %v2723
        %v3670 = vmul.f32 %v3638, %v2724
        %v3671 = vmul.f32 %v3639, %v2725
        %v3672 = vmul.f32 %v3640, %v2726
        %v3673 = vmul.f32 %v3641, %v2727
        %v3674 = vmul.f32 %v3642, %v2728
        %v3675 = vmul.f32 %v3643, %v2729
        %v3676 = vmul.f32 %v3644, %v2730
        %v3677 = vmul.f32 %v3645, %v2731
        %v3678 = vmul.f32 %v3646, %v2732
        %v3679 = vmul.f32 %v3647, %v2733
        %v3680 = vmul.f32 %v3648, %v2734
        %v3681 = vmul.f32 %v3649, %v2735
        %v3682 = vmul.f32 %v3650, %v2736
        %v3683 = vmul.f32 %v3651, %v2737
        %v3684 = vmul.f32 %v3652, %v2738
        %v3685 = vmul.f32 %v3653, %v2739
        %v3686 = vmul.f32 %v3654, %v2740
        %v3687 = vmul.f32 %v3655, %v2741
        %v3688 = vmul.f32 %v3656, %v2742
        %v3689 = vmul.f32 %v3657, %v2743
        %v3690 = vmul.f32 %v3658, %v2744
        %v3691 = vmul.f32 %v3659, %v2745
        %v3692 = vmul.f32 %v3660, %v2746
        %v3693 = vmul.f32 %v3661, %v2747
        %v3694 = vmul.f32 %v3662, %v2748
        %v3695 = vmul.f32 %v3663, %v2749
        %v3696 = vmul.f32 %v3664, %v2750
        %v3697 = vmul.f32 %v3105, %v3601
        %v3698 = vmul.f32 %v3107, %v3602
        %v3699 = vmul.f32 %v3109, %v3603
        %v3700 = vmul.f32 %v3111, %v3604
        %v3701 = vmul.f32 %v3113, %v3605
        %v3702 = vmul.f32 %v3115, %v3606
        %v3703 = vmul.f32 %v3117, %v3607
        %v3704 = vmul.f32 %v3119, %v3608
        %v3705 = vmul.f32 %v3121, %v3609
        %v3706 = vmul.f32 %v3123, %v3610
        %v3707 = vmul.f32 %v3125, %v3611
        %v3708 = vmul.f32 %v3127, %v3612
        %v3709 = vmul.f32 %v3129, %v3613
        %v3710 = vmul.f32 %v3131, %v3614
        %v3711 = vmul.f32 %v3133, %v3615
        %v3712 = vmul.f32 %v3135, %v3616
        %v3713 = vmul.f32 %v3137, %v3617
        %v3714 = vmul.f32 %v3139, %v3618
        %v3715 = vmul.f32 %v3141, %v3619
        %v3716 = vmul.f32 %v3143, %v3620
        %v3717 = vmul.f32 %v3145, %v3621
        %v3718 = vmul.f32 %v3147, %v3622
        %v3719 = vmul.f32 %v3149, %v3623
        %v3720 = vmul.f32 %v3151, %v3624
        %v3721 = vmul.f32 %v3153, %v3625
        %v3722 = vmul.f32 %v3155, %v3626
        %v3723 = vmul.f32 %v3157, %v3627
        %v3724 = vmul.f32 %v3159, %v3628
        %v3725 = vmul.f32 %v3161, %v3629
        %v3726 = vmul.f32 %v3163, %v3630
        %v3727 = vmul.f32 %v3165, %v3631
        %v3728 = vmul.f32 %v3167, %v3632
        %v3729 = vadd.f32 %v3665, %v3697
        %v3730 = vadd.f32 %v3666, %v3698
        %v3731 = vadd.f32 %v3667, %v3699
        %v3732 = vadd.f32 %v3668, %v3700
        %v3733 = vadd.f32 %v3669, %v3701
        %v3734 = vadd.f32 %v3670, %v3702
        %v3735 = vadd.f32 %v3671, %v3703
        %v3736 = vadd.f32 %v3672, %v3704
        %v3737 = vadd.f32 %v3673, %v3705
        %v3738 = vadd.f32 %v3674, %v3706
        %v3739 = vadd.f32 %v3675, %v3707
        %v3740 = vadd.f32 %v3676, %v3708
        %v3741 = vadd.f32 %v3677, %v3709
        %v3742 = vadd.f32 %v3678, %v3710
        %v3743 = vadd.f32 %v3679, %v3711
        %v3744 = vadd.f32 %v3680, %v3712
        %v3745 = vadd.f32 %v3681, %v3713
        %v3746 = vadd.f32 %v3682, %v3714
        %v3747 = vadd.f32 %v3683, %v3715
        %v3748 = vadd.f32 %v3684, %v3716
        %v3749 = vadd.f32 %v3685, %v3717
        %v3750 = vadd.f32 %v3686, %v3718
        %v3751 = vadd.f32 %v3687, %v3719
        %v3752 = vadd.f32 %v3688, %v3720
        %v3753 = vadd.f32 %v3689, %v3721
        %v3754 = vadd.f32 %v3690, %v3722
        %v3755 = vadd.f32 %v3691, %v3723
        %v3756 = vadd.f32 %v3692, %v3724
        %v3757 = vadd.f32 %v3693, %v3725
        %v3758 = vadd.f32 %v3694, %v3726
        %v3759 = vadd.f32 %v3695, %v3727
        %v3760 = vadd.f32 %v3696, %v3728
        %v3761 = vpack.c.bf16 %v3730, %v3729
        %v3762 = vpack.c.bf16 %v3732, %v3731
        %v3763 = vpack.c.bf16 %v3734, %v3733
        %v3764 = vpack.c.bf16 %v3736, %v3735
        %v3765 = vpack.c.bf16 %v3738, %v3737
        %v3766 = vpack.c.bf16 %v3740, %v3739
        %v3767 = vpack.c.bf16 %v3742, %v3741
        %v3768 = vpack.c.bf16 %v3744, %v3743
        %v3769 = vpack.c.bf16 %v3746, %v3745
        %v3770 = vpack.c.bf16 %v3748, %v3747
        %v3771 = vpack.c.bf16 %v3750, %v3749
        %v3772 = vpack.c.bf16 %v3752, %v3751
        %v3773 = vpack.c.bf16 %v3754, %v3753
        %v3774 = vpack.c.bf16 %v3756, %v3755
        %v3775 = vpack.c.bf16 %v3758, %v3757
        %v3776 = vpack.c.bf16 %v3760, %v3759
        %v3778 = vsel %vm722, %v3761, 0
        %v3781 = vsel %vm722, %v3762, 0
        %v3784 = vsel %vm722, %v3763, 0
        %v3787 = vsel %vm722, %v3764, 0
        %v3790 = vsel %vm722, %v3765, 0
        %v3793 = vsel %vm722, %v3766, 0
        %v3796 = vsel %vm722, %v3767, 0
        %v3799 = vsel %vm722, %v3768, 0
        %v3802 = vsel %vm722, %v3769, 0
        %v3805 = vsel %vm722, %v3770, 0
        %v3808 = vsel %vm722, %v3771, 0
        %v3811 = vsel %vm722, %v3772, 0
        %v3814 = vsel %vm722, %v3773, 0
        %v3817 = vsel %vm722, %v3774, 0
        %v3820 = vsel %vm722, %v3775, 0
        %v3823 = vsel %vm722, %v3776, 0
        %3825 = vmatprep.subr.bf16.mxu0 0
        %3826 = vmatpush1.bf16.msra.mxu0 %v714
        %3827 = vmatprep.subr.bf16.mxu0 0
        %3828 = vmatpush1.bf16.msra.mxu0 %v715
        %3829 = vmatprep.subr.bf16.mxu0 0
        %3830 = vmatpush1.bf16.msra.mxu0 %v716
        %3831 = vmatprep.subr.bf16.mxu0 0
        %3832 = vmatpush1.bf16.msra.mxu0 %v717
        %3833 = vmatprep.subr.bf16.mxu0 0
        %3834 = vmatpush1.bf16.msra.mxu0 0
        %3835 = vmatprep.subr.bf16.mxu0 0
        %3836 = vmatpush1.bf16.msra.mxu0 0
        %3837 = vmatprep.subr.bf16.mxu0 0
        %3838 = vmatpush1.bf16.msra.mxu0 0
        %3839 = vmatprep.subr.bf16.mxu0 0
        %3840 = vmatpush1.bf16.msra.mxu0 0
        %3841 = vmatprep.subr.bf16.mxu0 0
        %3842 = vmatpush1.bf16.msra.mxu0 0
        %3843 = vmatprep.subr.bf16.mxu0 0
        %3844 = vmatpush1.bf16.msra.mxu0 0
        %3845 = vmatprep.subr.bf16.mxu0 0
        %3846 = vmatpush1.bf16.msra.mxu0 0
        %3847 = vmatprep.subr.bf16.mxu0 0
        %3848 = vmatpush1.bf16.msra.mxu0 0
        %3849 = vmatprep.subr.bf16.mxu0 0
        %3850 = vmatpush1.bf16.msra.mxu0 0
        %3851 = vmatprep.subr.bf16.mxu0 0
        %3852 = vmatpush1.bf16.msra.mxu0 0
        %3853 = vmatprep.subr.bf16.mxu0 0
        %3854 = vmatpush1.bf16.msra.mxu0 0
        %3855 = vmatprep.subr.bf16.mxu0 0
        %3856 = vmatpush1.bf16.msra.mxu0 0
        %3857 = vmatprep.mubr.bf16.mxu0 0
        %3858 = vmatmul.mubr.bf16.gmra.mrb[0].mxu0 %v3778
        %v3859 = vpop.f32.mrb[0].mxu0
        %v3860 = vadd.f32 %v524, %v3859
        %v3861 = vpop.f32.mrb[0].mxu0
        %v3862 = vpop.f32.mrb[0].mxu0
        %v3863 = vadd.f32 %v528, %v3862
        %v3864 = vpop.f32.mrb[0].mxu0
        %3865 = vmatprep.mubr.bf16.mxu0 0
        %3866 = vmatmul.mubr.bf16.gmra.mrb[0].mxu0 %v3781
        %v3867 = vpop.f32.mrb[0].mxu0
        %v3868 = vadd.f32 %v534, %v3867
        %v3869 = vpop.f32.mrb[0].mxu0
        %v3870 = vpop.f32.mrb[0].mxu0
        %v3871 = vadd.f32 %v538, %v3870
        %v3872 = vpop.f32.mrb[0].mxu0
        %3873 = vmatprep.mubr.bf16.mxu0 0
        %3874 = vmatmul.mubr.bf16.gmra.mrb[0].mxu0 %v3784
        %v3875 = vpop.f32.mrb[0].mxu0
        %v3876 = vadd.f32 %v544, %v3875
        %v3877 = vpop.f32.mrb[0].mxu0
        %v3878 = vpop.f32.mrb[0].mxu0
        %v3879 = vadd.f32 %v548, %v3878
        %v3880 = vpop.f32.mrb[0].mxu0
        %3881 = vmatprep.mubr.bf16.mxu0 0
        %3882 = vmatmul.mubr.bf16.gmra.mrb[0].mxu0 %v3787
        %v3883 = vpop.f32.mrb[0].mxu0
        %v3884 = vadd.f32 %v554, %v3883
        %v3885 = vpop.f32.mrb[0].mxu0
        %v3886 = vpop.f32.mrb[0].mxu0
        %v3887 = vadd.f32 %v558, %v3886
        %v3888 = vpop.f32.mrb[0].mxu0
        %3889 = vmatprep.mubr.bf16.mxu0 0
        %3890 = vmatmul.mubr.bf16.gmra.mrb[0].mxu0 %v3790
        %v3891 = vpop.f32.mrb[0].mxu0
        %v3892 = vadd.f32 %v564, %v3891
        %v3893 = vpop.f32.mrb[0].mxu0
        %v3894 = vpop.f32.mrb[0].mxu0
        %v3895 = vadd.f32 %v568, %v3894
        %v3896 = vpop.f32.mrb[0].mxu0
        %3897 = vmatprep.mubr.bf16.mxu0 0
        %3898 = vmatmul.mubr.bf16.gmra.mrb[0].mxu0 %v3793
        %v3899 = vpop.f32.mrb[0].mxu0
        %v3900 = vadd.f32 %v574, %v3899
        %v3901 = vpop.f32.mrb[0].mxu0
        %v3902 = vpop.f32.mrb[0].mxu0
        %v3903 = vadd.f32 %v578, %v3902
        %v3904 = vpop.f32.mrb[0].mxu0
        %3905 = vmatprep.mubr.bf16.mxu0 0
        %3906 = vmatmul.mubr.bf16.gmra.mrb[0].mxu0 %v3796
        %v3907 = vpop.f32.mrb[0].mxu0
        %v3908 = vadd.f32 %v584, %v3907
        %v3909 = vpop.f32.mrb[0].mxu0
        %v3910 = vpop.f32.mrb[0].mxu0
        %v3911 = vadd.f32 %v588, %v3910
        %v3912 = vpop.f32.mrb[0].mxu0
        %3913 = vmatprep.mubr.bf16.mxu0 0
        %3914 = vmatmul.mubr.bf16.gmra.mrb[0].mxu0 %v3799
        %v3915 = vpop.f32.mrb[0].mxu0
        %v3916 = vadd.f32 %v594, %v3915
        %v3917 = vpop.f32.mrb[0].mxu0
        %v3918 = vpop.f32.mrb[0].mxu0
        %v3919 = vadd.f32 %v598, %v3918
        %v3920 = vpop.f32.mrb[0].mxu0
        %3921 = vmatprep.mubr.bf16.mxu0 0
        %3922 = vmatmul.mubr.bf16.gmra.mrb[0].mxu0 %v3802
        %v3923 = vpop.f32.mrb[0].mxu0
        %v3924 = vadd.f32 %v604, %v3923
        %v3925 = vpop.f32.mrb[0].mxu0
        %v3926 = vpop.f32.mrb[0].mxu0
        %v3927 = vadd.f32 %v608, %v3926
        %v3928 = vpop.f32.mrb[0].mxu0
        %3929 = vmatprep.mubr.bf16.mxu0 0
        %3930 = vmatmul.mubr.bf16.gmra.mrb[0].mxu0 %v3805
        %v3931 = vpop.f32.mrb[0].mxu0
        %v3932 = vadd.f32 %v614, %v3931
        %v3933 = vpop.f32.mrb[0].mxu0
        %v3934 = vpop.f32.mrb[0].mxu0
        %v3935 = vadd.f32 %v618, %v3934
        %v3936 = vpop.f32.mrb[0].mxu0
        %3937 = vmatprep.mubr.bf16.mxu0 0
        %3938 = vmatmul.mubr.bf16.gmra.mrb[0].mxu0 %v3808
        %v3939 = vpop.f32.mrb[0].mxu0
        %v3940 = vadd.f32 %v624, %v3939
        %v3941 = vpop.f32.mrb[0].mxu0
        %v3942 = vpop.f32.mrb[0].mxu0
        %v3943 = vadd.f32 %v628, %v3942
        %v3944 = vpop.f32.mrb[0].mxu0
        %3945 = vmatprep.mubr.bf16.mxu0 0
        %3946 = vmatmul.mubr.bf16.gmra.mrb[0].mxu0 %v3811
        %v3947 = vpop.f32.mrb[0].mxu0
        %v3948 = vadd.f32 %v634, %v3947
        %v3949 = vpop.f32.mrb[0].mxu0
        %v3950 = vpop.f32.mrb[0].mxu0
        %v3951 = vadd.f32 %v638, %v3950
        %v3952 = vpop.f32.mrb[0].mxu0
        %3953 = vmatprep.mubr.bf16.mxu0 0
        %3954 = vmatmul.mubr.bf16.gmra.mrb[0].mxu0 %v3814
        %v3955 = vpop.f32.mrb[0].mxu0
        %v3956 = vadd.f32 %v644, %v3955
        %v3957 = vpop.f32.mrb[0].mxu0
        %v3958 = vpop.f32.mrb[0].mxu0
        %v3959 = vadd.f32 %v648, %v3958
        %v3960 = vpop.f32.mrb[0].mxu0
        %3961 = vmatprep.mubr.bf16.mxu0 0
        %3962 = vmatmul.mubr.bf16.gmra.mrb[0].mxu0 %v3817
        %v3963 = vpop.f32.mrb[0].mxu0
        %v3964 = vadd.f32 %v654, %v3963
        %v3965 = vpop.f32.mrb[0].mxu0
        %v3966 = vpop.f32.mrb[0].mxu0
        %v3967 = vadd.f32 %v658, %v3966
        %v3968 = vpop.f32.mrb[0].mxu0
        %3969 = vmatprep.mubr.bf16.mxu0 0
        %3970 = vmatmul.mubr.bf16.gmra.mrb[0].mxu0 %v3820
        %v3971 = vpop.f32.mrb[0].mxu0
        %v3972 = vadd.f32 %v664, %v3971
        %v3973 = vpop.f32.mrb[0].mxu0
        %v3974 = vpop.f32.mrb[0].mxu0
        %v3975 = vadd.f32 %v668, %v3974
        %v3976 = vpop.f32.mrb[0].mxu0
        %3977 = vmatprep.mubr.bf16.mxu0 0
        %3978 = vmatmul.mubr.bf16.gmra.mrb[0].mxu0 %v3823
        %v3979 = vpop.f32.mrb[0].mxu0
        %v3980 = vadd.f32 %v674, %v3979
        %v3981 = vpop.f32.mrb[0].mxu0
        %v3982 = vpop.f32.mrb[0].mxu0
        %v3983 = vadd.f32 %v678, %v3982
        %v3984 = vpop.f32.mrb[0].mxu0
        %3985 = vdwg.mxu0
        %v3986 = vxor.u32 %v3860, 2147483648
        %v3987 = vxor.u32 %v3863, 2147483648
        %v3988 = vxor.u32 %v3868, 2147483648
        %v3989 = vxor.u32 %v3871, 2147483648
        %v3990 = vxor.u32 %v3876, 2147483648
        %v3991 = vxor.u32 %v3879, 2147483648
        %v3992 = vxor.u32 %v3884, 2147483648
        %v3993 = vxor.u32 %v3887, 2147483648
        %v3994 = vxor.u32 %v3892, 2147483648
        %v3995 = vxor.u32 %v3895, 2147483648
        %v3996 = vxor.u32 %v3900, 2147483648
        %v3997 = vxor.u32 %v3903, 2147483648
        %v3998 = vxor.u32 %v3908, 2147483648
        %v3999 = vxor.u32 %v3911, 2147483648
        %v4000 = vxor.u32 %v3916, 2147483648
        %v4001 = vxor.u32 %v3919, 2147483648
        %v4002 = vxor.u32 %v3924, 2147483648
        %v4003 = vxor.u32 %v3927, 2147483648
        %v4004 = vxor.u32 %v3932, 2147483648
        %v4005 = vxor.u32 %v3935, 2147483648
        %v4006 = vxor.u32 %v3940, 2147483648
        %v4007 = vxor.u32 %v3943, 2147483648
        %v4008 = vxor.u32 %v3948, 2147483648
        %v4009 = vxor.u32 %v3951, 2147483648
        %v4010 = vxor.u32 %v3956, 2147483648
        %v4011 = vxor.u32 %v3959, 2147483648
        %v4012 = vxor.u32 %v3964, 2147483648
        %v4013 = vxor.u32 %v3967, 2147483648
        %v4014 = vxor.u32 %v3972, 2147483648
        %v4015 = vxor.u32 %v3975, 2147483648
        %v4016 = vxor.u32 %v3980, 2147483648
        %v4017 = vxor.u32 %v3983, 2147483648
        %v4018 = vmul.f32 %v3986, 1.442695
        %v4019 = vpow.pop %v4018
        %v4020 = vmul.f32 %v3987, 1.442695
        %v4021 = vpow.pop %v4020
        %v4022 = vmul.f32 %v3988, 1.442695
        %v4023 = vpow.pop %v4022
        %v4024 = vmul.f32 %v3989, 1.442695
        %v4025 = vpow.pop %v4024
        %v4026 = vmul.f32 %v3990, 1.442695
        %v4027 = vpow.pop %v4026
        %v4028 = vmul.f32 %v3991, 1.442695
        %v4029 = vpow.pop %v4028
        %v4030 = vmul.f32 %v3992, 1.442695
        %v4031 = vpow.pop %v4030
        %v4032 = vmul.f32 %v3993, 1.442695
        %v4033 = vpow.pop %v4032
        %v4034 = vmul.f32 %v3994, 1.442695
        %v4035 = vpow.pop %v4034
        %v4036 = vmul.f32 %v3995, 1.442695
        %v4037 = vpow.pop %v4036
        %v4038 = vmul.f32 %v3996, 1.442695
        %v4039 = vpow.pop %v4038
        %v4040 = vmul.f32 %v3997, 1.442695
        %v4041 = vpow.pop %v4040
        %v4042 = vmul.f32 %v3998, 1.442695
        %v4043 = vpow.pop %v4042
        %v4044 = vmul.f32 %v3999, 1.442695
        %v4045 = vpow.pop %v4044
        %v4046 = vmul.f32 %v4000, 1.442695
        %v4047 = vpow.pop %v4046
        %v4048 = vmul.f32 %v4001, 1.442695
        %v4049 = vpow.pop %v4048
        %v4050 = vmul.f32 %v4002, 1.442695
        %v4051 = vpow.pop %v4050
        %v4052 = vmul.f32 %v4003, 1.442695
        %v4053 = vpow.pop %v4052
        %v4054 = vmul.f32 %v4004, 1.442695
        %v4055 = vpow.pop %v4054
        %v4056 = vmul.f32 %v4005, 1.442695
        %v4057 = vpow.pop %v4056
        %v4058 = vmul.f32 %v4006, 1.442695
        %v4059 = vpow.pop %v4058
        %v4060 = vmul.f32 %v4007, 1.442695
        %v4061 = vpow.pop %v4060
        %v4062 = vmul.f32 %v4008, 1.442695
        %v4063 = vpow.pop %v4062
        %v4064 = vmul.f32 %v4009, 1.442695
        %v4065 = vpow.pop %v4064
        %v4066 = vmul.f32 %v4010, 1.442695
        %v4067 = vpow.pop %v4066
        %v4068 = vmul.f32 %v4011, 1.442695
        %v4069 = vpow.pop %v4068
        %v4070 = vmul.f32 %v4012, 1.442695
        %v4071 = vpow.pop %v4070
        %v4072 = vmul.f32 %v4013, 1.442695
        %v4073 = vpow.pop %v4072
        %v4074 = vmul.f32 %v4014, 1.442695
        %v4075 = vpow.pop %v4074
        %v4076 = vmul.f32 %v4015, 1.442695
        %v4077 = vpow.pop %v4076
        %v4078 = vmul.f32 %v4016, 1.442695
        %v4079 = vpow.pop %v4078
        %v4080 = vmul.f32 %v4017, 1.442695
        %v4081 = vpow.pop %v4080
        %v4082 = vadd.f32 %v4019, 1.0
        %v4083 = vadd.f32 %v4021, 1.0
        %v4084 = vadd.f32 %v4023, 1.0
        %v4085 = vadd.f32 %v4025, 1.0
        %v4086 = vadd.f32 %v4027, 1.0
        %v4087 = vadd.f32 %v4029, 1.0
        %v4088 = vadd.f32 %v4031, 1.0
        %v4089 = vadd.f32 %v4033, 1.0
        %v4090 = vadd.f32 %v4035, 1.0
        %v4091 = vadd.f32 %v4037, 1.0
        %v4092 = vadd.f32 %v4039, 1.0
        %v4093 = vadd.f32 %v4041, 1.0
        %v4094 = vadd.f32 %v4043, 1.0
        %v4095 = vadd.f32 %v4045, 1.0
        %v4096 = vadd.f32 %v4047, 1.0
        %v4097 = vadd.f32 %v4049, 1.0
        %v4098 = vadd.f32 %v4051, 1.0
        %v4099 = vadd.f32 %v4053, 1.0
        %v4100 = vadd.f32 %v4055, 1.0
        %v4101 = vadd.f32 %v4057, 1.0
        %v4102 = vadd.f32 %v4059, 1.0
        %v4103 = vadd.f32 %v4061, 1.0
        %v4104 = vadd.f32 %v4063, 1.0
        %v4105 = vadd.f32 %v4065, 1.0
        %v4106 = vadd.f32 %v4067, 1.0
        %v4107 = vadd.f32 %v4069, 1.0
        %v4108 = vadd.f32 %v4071, 1.0
        %v4109 = vadd.f32 %v4073, 1.0
        %v4110 = vadd.f32 %v4075, 1.0
        %v4111 = vadd.f32 %v4077, 1.0
        %v4112 = vadd.f32 %v4079, 1.0
        %v4113 = vadd.f32 %v4081, 1.0
        %v4114 = vrcp.pop %v4082
        %v4115 = vmul.f32 1.0, %v4114
        %v4116 = vrcp.pop %v4083
        %v4117 = vmul.f32 1.0, %v4116
        %v4118 = vrcp.pop %v4084
        %v4119 = vmul.f32 1.0, %v4118
        %v4120 = vrcp.pop %v4085
        %v4121 = vmul.f32 1.0, %v4120
        %v4122 = vrcp.pop %v4086
        %v4123 = vmul.f32 1.0, %v4122
        %v4124 = vrcp.pop %v4087
        %v4125 = vmul.f32 1.0, %v4124
        %v4126 = vrcp.pop %v4088
        %v4127 = vmul.f32 1.0, %v4126
        %v4128 = vrcp.pop %v4089
        %v4129 = vmul.f32 1.0, %v4128
        %v4130 = vrcp.pop %v4090
        %v4131 = vmul.f32 1.0, %v4130
        %v4132 = vrcp.pop %v4091
        %v4133 = vmul.f32 1.0, %v4132
        %v4134 = vrcp.pop %v4092
        %v4135 = vmul.f32 1.0, %v4134
        %v4136 = vrcp.pop %v4093
        %v4137 = vmul.f32 1.0, %v4136
        %v4138 = vrcp.pop %v4094
        %v4139 = vmul.f32 1.0, %v4138
        %v4140 = vrcp.pop %v4095
        %v4141 = vmul.f32 1.0, %v4140
        %v4142 = vrcp.pop %v4096
        %v4143 = vmul.f32 1.0, %v4142
        %v4144 = vrcp.pop %v4097
        %v4145 = vmul.f32 1.0, %v4144
        %v4146 = vrcp.pop %v4098
        %v4147 = vmul.f32 1.0, %v4146
        %v4148 = vrcp.pop %v4099
        %v4149 = vmul.f32 1.0, %v4148
        %v4150 = vrcp.pop %v4100
        %v4151 = vmul.f32 1.0, %v4150
        %v4152 = vrcp.pop %v4101
        %v4153 = vmul.f32 1.0, %v4152
        %v4154 = vrcp.pop %v4102
        %v4155 = vmul.f32 1.0, %v4154
        %v4156 = vrcp.pop %v4103
        %v4157 = vmul.f32 1.0, %v4156
        %v4158 = vrcp.pop %v4104
        %v4159 = vmul.f32 1.0, %v4158
        %v4160 = vrcp.pop %v4105
        %v4161 = vmul.f32 1.0, %v4160
        %v4162 = vrcp.pop %v4106
        %v4163 = vmul.f32 1.0, %v4162
        %v4164 = vrcp.pop %v4107
        %v4165 = vmul.f32 1.0, %v4164
        %v4166 = vrcp.pop %v4108
        %v4167 = vmul.f32 1.0, %v4166
        %v4168 = vrcp.pop %v4109
        %v4169 = vmul.f32 1.0, %v4168
        %v4170 = vrcp.pop %v4110
        %v4171 = vmul.f32 1.0, %v4170
        %v4172 = vrcp.pop %v4111
        %v4173 = vmul.f32 1.0, %v4172
        %v4174 = vrcp.pop %v4112
        %v4175 = vmul.f32 1.0, %v4174
        %v4176 = vrcp.pop %v4113
        %v4177 = vmul.f32 1.0, %v4176
        %4210 = vrot.lane.b32.xlu0 %v3729, 64
        %v4211 = vpop.permute.xlu0 %4210
        %4212 = vrot.lane.b32.xlu0 %v3730, 64
        %v4213 = vpop.permute.xlu0 %4212
        %4214 = vrot.lane.b32.xlu0 %v3731, 64
        %v4215 = vpop.permute.xlu0 %4214
        %4216 = vrot.lane.b32.xlu0 %v3732, 64
        %v4217 = vpop.permute.xlu0 %4216
        %4218 = vrot.lane.b32.xlu0 %v3733, 64
        %v4219 = vpop.permute.xlu0 %4218
        %4220 = vrot.lane.b32.xlu0 %v3734, 64
        %v4221 = vpop.permute.xlu0 %4220
        %4222 = vrot.lane.b32.xlu0 %v3735, 64
        %v4223 = vpop.permute.xlu0 %4222
        %4224 = vrot.lane.b32.xlu0 %v3736, 64
        %v4225 = vpop.permute.xlu0 %4224
        %4226 = vrot.lane.b32.xlu0 %v3737, 64
        %v4227 = vpop.permute.xlu0 %4226
        %4228 = vrot.lane.b32.xlu0 %v3738, 64
        %v4229 = vpop.permute.xlu0 %4228
        %4230 = vrot.lane.b32.xlu0 %v3739, 64
        %v4231 = vpop.permute.xlu0 %4230
        %4232 = vrot.lane.b32.xlu0 %v3740, 64
        %v4233 = vpop.permute.xlu0 %4232
        %4234 = vrot.lane.b32.xlu0 %v3741, 64
        %v4235 = vpop.permute.xlu0 %4234
        %4236 = vrot.lane.b32.xlu0 %v3742, 64
        %v4237 = vpop.permute.xlu0 %4236
        %4238 = vrot.lane.b32.xlu0 %v3743, 64
        %v4239 = vpop.permute.xlu0 %4238
        %4240 = vrot.lane.b32.xlu0 %v3744, 64
        %v4241 = vpop.permute.xlu0 %4240
        %4242 = vrot.lane.b32.xlu0 %v3745, 64
        %v4243 = vpop.permute.xlu0 %4242
        %4244 = vrot.lane.b32.xlu0 %v3746, 64
        %v4245 = vpop.permute.xlu0 %4244
        %4246 = vrot.lane.b32.xlu0 %v3747, 64
        %v4247 = vpop.permute.xlu0 %4246
        %4248 = vrot.lane.b32.xlu0 %v3748, 64
        %v4249 = vpop.permute.xlu0 %4248
        %4250 = vrot.lane.b32.xlu0 %v3749, 64
        %v4251 = vpop.permute.xlu0 %4250
        %4252 = vrot.lane.b32.xlu0 %v3750, 64
        %v4253 = vpop.permute.xlu0 %4252
        %4254 = vrot.lane.b32.xlu0 %v3751, 64
        %v4255 = vpop.permute.xlu0 %4254
        %4256 = vrot.lane.b32.xlu0 %v3752, 64
        %v4257 = vpop.permute.xlu0 %4256
        %4258 = vrot.lane.b32.xlu0 %v3753, 64
        %v4259 = vpop.permute.xlu0 %4258
        %4260 = vrot.lane.b32.xlu0 %v3754, 64
        %v4261 = vpop.permute.xlu0 %4260
        %4262 = vrot.lane.b32.xlu0 %v3755, 64
        %v4263 = vpop.permute.xlu0 %4262
        %4264 = vrot.lane.b32.xlu0 %v3756, 64
        %v4265 = vpop.permute.xlu0 %4264
        %4266 = vrot.lane.b32.xlu0 %v3757, 64
        %v4267 = vpop.permute.xlu0 %4266
        %4268 = vrot.lane.b32.xlu0 %v3758, 64
        %v4269 = vpop.permute.xlu0 %4268
        %4270 = vrot.lane.b32.xlu0 %v3759, 64
        %v4271 = vpop.permute.xlu0 %4270
        %4272 = vrot.lane.b32.xlu0 %v3760, 64
        %v4273 = vpop.permute.xlu0 %4272
        %v4306 = vmul.f32 %v4115, %v4211
        %v4307 = vmul.f32 %v4117, %v4213
        %v4308 = vmul.f32 %v4119, %v4215
        %v4309 = vmul.f32 %v4121, %v4217
        %v4310 = vmul.f32 %v4123, %v4219
        %v4311 = vmul.f32 %v4125, %v4221
        %v4312 = vmul.f32 %v4127, %v4223
        %v4313 = vmul.f32 %v4129, %v4225
        %v4314 = vmul.f32 %v4131, %v4227
        %v4315 = vmul.f32 %v4133, %v4229
        %v4316 = vmul.f32 %v4135, %v4231
        %v4317 = vmul.f32 %v4137, %v4233
        %v4318 = vmul.f32 %v4139, %v4235
        %v4319 = vmul.f32 %v4141, %v4237
        %v4320 = vmul.f32 %v4143, %v4239
        %v4321 = vmul.f32 %v4145, %v4241
        %v4322 = vmul.f32 %v4147, %v4243
        %v4323 = vmul.f32 %v4149, %v4245
        %v4324 = vmul.f32 %v4151, %v4247
        %v4325 = vmul.f32 %v4153, %v4249
        %v4326 = vmul.f32 %v4155, %v4251
        %v4327 = vmul.f32 %v4157, %v4253
        %v4328 = vmul.f32 %v4159, %v4255
        %v4329 = vmul.f32 %v4161, %v4257
        %v4330 = vmul.f32 %v4163, %v4259
        %v4331 = vmul.f32 %v4165, %v4261
        %v4332 = vmul.f32 %v4167, %v4263
        %v4333 = vmul.f32 %v4169, %v4265
        %v4334 = vmul.f32 %v4171, %v4267
        %v4335 = vmul.f32 %v4173, %v4269
        %v4336 = vmul.f32 %v4175, %v4271
        %v4337 = vmul.f32 %v4177, %v4273
        %v4338 = vpack.c.bf16 %v4307, %v4306
        %v4339 = vpack.c.bf16 %v4309, %v4308
        %v4340 = vpack.c.bf16 %v4311, %v4310
        %v4341 = vpack.c.bf16 %v4313, %v4312
        %v4342 = vpack.c.bf16 %v4315, %v4314
        %v4343 = vpack.c.bf16 %v4317, %v4316
        %v4344 = vpack.c.bf16 %v4319, %v4318
        %v4345 = vpack.c.bf16 %v4321, %v4320
        %v4346 = vpack.c.bf16 %v4323, %v4322
        %v4347 = vpack.c.bf16 %v4325, %v4324
        %v4348 = vpack.c.bf16 %v4327, %v4326
        %v4349 = vpack.c.bf16 %v4329, %v4328
        %v4350 = vpack.c.bf16 %v4331, %v4330
        %v4351 = vpack.c.bf16 %v4333, %v4332
        %v4352 = vpack.c.bf16 %v4335, %v4334
        %v4353 = vpack.c.bf16 %v4337, %v4336
        %4370 = vrot.lane.b32.xlu0 %v4338, 64
        %v4371 = vpop.permute.xlu0 %4370
        %4372 = vrot.lane.b32.xlu0 %v4339, 64
        %v4373 = vpop.permute.xlu0 %4372
        %4374 = vrot.lane.b32.xlu0 %v4340, 64
        %v4375 = vpop.permute.xlu0 %4374
        %4376 = vrot.lane.b32.xlu0 %v4341, 64
        %v4377 = vpop.permute.xlu0 %4376
        %4378 = vrot.lane.b32.xlu0 %v4342, 64
        %v4379 = vpop.permute.xlu0 %4378
        %4380 = vrot.lane.b32.xlu0 %v4343, 64
        %v4381 = vpop.permute.xlu0 %4380
        %4382 = vrot.lane.b32.xlu0 %v4344, 64
        %v4383 = vpop.permute.xlu0 %4382
        %4384 = vrot.lane.b32.xlu0 %v4345, 64
        %v4385 = vpop.permute.xlu0 %4384
        %4386 = vrot.lane.b32.xlu0 %v4346, 64
        %v4387 = vpop.permute.xlu0 %4386
        %4388 = vrot.lane.b32.xlu0 %v4347, 64
        %v4389 = vpop.permute.xlu0 %4388
        %4390 = vrot.lane.b32.xlu0 %v4348, 64
        %v4391 = vpop.permute.xlu0 %4390
        %4392 = vrot.lane.b32.xlu0 %v4349, 64
        %v4393 = vpop.permute.xlu0 %4392
        %4394 = vrot.lane.b32.xlu0 %v4350, 64
        %v4395 = vpop.permute.xlu0 %4394
        %4396 = vrot.lane.b32.xlu0 %v4351, 64
        %v4397 = vpop.permute.xlu0 %4396
        %4398 = vrot.lane.b32.xlu0 %v4352, 64
        %v4399 = vpop.permute.xlu0 %4398
        %4400 = vrot.lane.b32.xlu0 %v4353, 64
        %v4401 = vpop.permute.xlu0 %4400
        %v4403 = vsel %vm722, %v4371, 0
        %v4406 = vsel %vm722, %v4373, 0
        %v4409 = vsel %vm722, %v4375, 0
        %v4412 = vsel %vm722, %v4377, 0
        %v4415 = vsel %vm722, %v4379, 0
        %v4418 = vsel %vm722, %v4381, 0
        %v4421 = vsel %vm722, %v4383, 0
        %v4424 = vsel %vm722, %v4385, 0
        %v4427 = vsel %vm722, %v4387, 0
        %v4430 = vsel %vm722, %v4389, 0
        %v4433 = vsel %vm722, %v4391, 0
        %v4436 = vsel %vm722, %v4393, 0
        %v4439 = vsel %vm722, %v4395, 0
        %v4442 = vsel %vm722, %v4397, 0
        %v4445 = vsel %vm722, %v4399, 0
        %v4448 = vsel %vm722, %v4401, 0
        %4450 = vmatprep.subr.bf16.mxu0 0
        %4451 = vmatpush1.bf16.msra.mxu0 %v1364
        %4452 = vmatprep.subr.bf16.mxu0 0
        %4453 = vmatpush1.bf16.msra.mxu0 %v1365
        %4454 = vmatprep.subr.bf16.mxu0 0
        %4455 = vmatpush1.bf16.msra.mxu0 %v1366
        %4456 = vmatprep.subr.bf16.mxu0 0
        %4457 = vmatpush1.bf16.msra.mxu0 %v1367
        %4458 = vmatprep.subr.bf16.mxu0 0
        %4459 = vmatpush1.bf16.msra.mxu0 0
        %4460 = vmatprep.subr.bf16.mxu0 0
        %4461 = vmatpush1.bf16.msra.mxu0 0
        %4462 = vmatprep.subr.bf16.mxu0 0
        %4463 = vmatpush1.bf16.msra.mxu0 0
        %4464 = vmatprep.subr.bf16.mxu0 0
        %4465 = vmatpush1.bf16.msra.mxu0 0
        %4466 = vmatprep.subr.bf16.mxu0 0
        %4467 = vmatpush1.bf16.msra.mxu0 0
        %4468 = vmatprep.subr.bf16.mxu0 0
        %4469 = vmatpush1.bf16.msra.mxu0 0
        %4470 = vmatprep.subr.bf16.mxu0 0
        %4471 = vmatpush1.bf16.msra.mxu0 0
        %4472 = vmatprep.subr.bf16.mxu0 0
        %4473 = vmatpush1.bf16.msra.mxu0 0
        %4474 = vmatprep.subr.bf16.mxu0 0
        %4475 = vmatpush1.bf16.msra.mxu0 0
        %4476 = vmatprep.subr.bf16.mxu0 0
        %4477 = vmatpush1.bf16.msra.mxu0 0
        %4478 = vmatprep.subr.bf16.mxu0 0
        %4479 = vmatpush1.bf16.msra.mxu0 0
        %4480 = vmatprep.subr.bf16.mxu0 0
        %4481 = vmatpush1.bf16.msra.mxu0 0
        %4482 = vmatprep.mubr.bf16.mxu0 0
        %4483 = vmatmul.mubr.bf16.gmra.mrb[0].mxu0 %v4403
        %v4484 = vpop.f32.mrb[0].mxu0
        %v4485 = vadd.f32 %v526, %v4484
        %v4486 = vpop.f32.mrb[0].mxu0
        %v4487 = vpop.f32.mrb[0].mxu0
        %v4488 = vadd.f32 %v530, %v4487
        %v4489 = vpop.f32.mrb[0].mxu0
        %4490 = vmatprep.mubr.bf16.mxu0 0
        %4491 = vmatmul.mubr.bf16.gmra.mrb[0].mxu0 %v4406
        %v4492 = vpop.f32.mrb[0].mxu0
        %v4493 = vadd.f32 %v536, %v4492
        %v4494 = vpop.f32.mrb[0].mxu0
        %v4495 = vpop.f32.mrb[0].mxu0
        %v4496 = vadd.f32 %v540, %v4495
        %v4497 = vpop.f32.mrb[0].mxu0
        %4498 = vmatprep.mubr.bf16.mxu0 0
        %4499 = vmatmul.mubr.bf16.gmra.mrb[0].mxu0 %v4409
        %v4500 = vpop.f32.mrb[0].mxu0
        %v4501 = vadd.f32 %v546, %v4500
        %v4502 = vpop.f32.mrb[0].mxu0
        %v4503 = vpop.f32.mrb[0].mxu0
        %v4504 = vadd.f32 %v550, %v4503
        %v4505 = vpop.f32.mrb[0].mxu0
        %4506 = vmatprep.mubr.bf16.mxu0 0
        %4507 = vmatmul.mubr.bf16.gmra.mrb[0].mxu0 %v4412
        %v4508 = vpop.f32.mrb[0].mxu0
        %v4509 = vadd.f32 %v556, %v4508
        %v4510 = vpop.f32.mrb[0].mxu0
        %v4511 = vpop.f32.mrb[0].mxu0
        %v4512 = vadd.f32 %v560, %v4511
        %v4513 = vpop.f32.mrb[0].mxu0
        %4514 = vmatprep.mubr.bf16.mxu0 0
        %4515 = vmatmul.mubr.bf16.gmra.mrb[0].mxu0 %v4415
        %v4516 = vpop.f32.mrb[0].mxu0
        %v4517 = vadd.f32 %v566, %v4516
        %v4518 = vpop.f32.mrb[0].mxu0
        %v4519 = vpop.f32.mrb[0].mxu0
        %v4520 = vadd.f32 %v570, %v4519
        %v4521 = vpop.f32.mrb[0].mxu0
        %4522 = vmatprep.mubr.bf16.mxu0 0
        %4523 = vmatmul.mubr.bf16.gmra.mrb[0].mxu0 %v4418
        %v4524 = vpop.f32.mrb[0].mxu0
        %v4525 = vadd.f32 %v576, %v4524
        %v4526 = vpop.f32.mrb[0].mxu0
        %v4527 = vpop.f32.mrb[0].mxu0
        %v4528 = vadd.f32 %v580, %v4527
        %v4529 = vpop.f32.mrb[0].mxu0
        %4530 = vmatprep.mubr.bf16.mxu0 0
        %4531 = vmatmul.mubr.bf16.gmra.mrb[0].mxu0 %v4421
        %v4532 = vpop.f32.mrb[0].mxu0
        %v4533 = vadd.f32 %v586, %v4532
        %v4534 = vpop.f32.mrb[0].mxu0
        %v4535 = vpop.f32.mrb[0].mxu0
        %v4536 = vadd.f32 %v590, %v4535
        %v4537 = vpop.f32.mrb[0].mxu0
        %4538 = vmatprep.mubr.bf16.mxu0 0
        %4539 = vmatmul.mubr.bf16.gmra.mrb[0].mxu0 %v4424
        %v4540 = vpop.f32.mrb[0].mxu0
        %v4541 = vadd.f32 %v596, %v4540
        %v4542 = vpop.f32.mrb[0].mxu0
        %v4543 = vpop.f32.mrb[0].mxu0
        %v4544 = vadd.f32 %v600, %v4543
        %v4545 = vpop.f32.mrb[0].mxu0
        %4546 = vmatprep.mubr.bf16.mxu0 0
        %4547 = vmatmul.mubr.bf16.gmra.mrb[0].mxu0 %v4427
        %v4548 = vpop.f32.mrb[0].mxu0
        %v4549 = vadd.f32 %v606, %v4548
        %v4550 = vpop.f32.mrb[0].mxu0
        %v4551 = vpop.f32.mrb[0].mxu0
        %v4552 = vadd.f32 %v610, %v4551
        %v4553 = vpop.f32.mrb[0].mxu0
        %4554 = vmatprep.mubr.bf16.mxu0 0
        %4555 = vmatmul.mubr.bf16.gmra.mrb[0].mxu0 %v4430
        %v4556 = vpop.f32.mrb[0].mxu0
        %v4557 = vadd.f32 %v616, %v4556
        %v4558 = vpop.f32.mrb[0].mxu0
        %v4559 = vpop.f32.mrb[0].mxu0
        %v4560 = vadd.f32 %v620, %v4559
        %v4561 = vpop.f32.mrb[0].mxu0
        %4562 = vmatprep.mubr.bf16.mxu0 0
        %4563 = vmatmul.mubr.bf16.gmra.mrb[0].mxu0 %v4433
        %v4564 = vpop.f32.mrb[0].mxu0
        %v4565 = vadd.f32 %v626, %v4564
        %v4566 = vpop.f32.mrb[0].mxu0
        %v4567 = vpop.f32.mrb[0].mxu0
        %v4568 = vadd.f32 %v630, %v4567
        %v4569 = vpop.f32.mrb[0].mxu0
        %4570 = vmatprep.mubr.bf16.mxu0 0
        %4571 = vmatmul.mubr.bf16.gmra.mrb[0].mxu0 %v4436
        %v4572 = vpop.f32.mrb[0].mxu0
        %v4573 = vadd.f32 %v636, %v4572
        %v4574 = vpop.f32.mrb[0].mxu0
        %v4575 = vpop.f32.mrb[0].mxu0
        %v4576 = vadd.f32 %v640, %v4575
        %v4577 = vpop.f32.mrb[0].mxu0
        %4578 = vmatprep.mubr.bf16.mxu0 0
        %4579 = vmatmul.mubr.bf16.gmra.mrb[0].mxu0 %v4439
        %v4580 = vpop.f32.mrb[0].mxu0
        %v4581 = vadd.f32 %v646, %v4580
        %v4582 = vpop.f32.mrb[0].mxu0
        %v4583 = vpop.f32.mrb[0].mxu0
        %v4584 = vadd.f32 %v650, %v4583
        %v4585 = vpop.f32.mrb[0].mxu0
        %4586 = vmatprep.mubr.bf16.mxu0 0
        %4587 = vmatmul.mubr.bf16.gmra.mrb[0].mxu0 %v4442
        %v4588 = vpop.f32.mrb[0].mxu0
        %v4589 = vadd.f32 %v656, %v4588
        %v4590 = vpop.f32.mrb[0].mxu0
        %v4591 = vpop.f32.mrb[0].mxu0
        %v4592 = vadd.f32 %v660, %v4591
        %v4593 = vpop.f32.mrb[0].mxu0
        %4594 = vmatprep.mubr.bf16.mxu0 0
        %4595 = vmatmul.mubr.bf16.gmra.mrb[0].mxu0 %v4445
        %v4596 = vpop.f32.mrb[0].mxu0
        %v4597 = vadd.f32 %v666, %v4596
        %v4598 = vpop.f32.mrb[0].mxu0
        %v4599 = vpop.f32.mrb[0].mxu0
        %v4600 = vadd.f32 %v670, %v4599
        %v4601 = vpop.f32.mrb[0].mxu0
        %4602 = vmatprep.mubr.bf16.mxu0 0
        %4603 = vmatmul.mubr.bf16.gmra.mrb[0].mxu0 %v4448
        %v4604 = vpop.f32.mrb[0].mxu0
        %v4605 = vadd.f32 %v676, %v4604
        %v4606 = vpop.f32.mrb[0].mxu0
        %v4607 = vpop.f32.mrb[0].mxu0
        %v4608 = vadd.f32 %v680, %v4607
        %v4609 = vpop.f32.mrb[0].mxu0
        %4610 = vdwg.mxu0
        %v4611 = vtanh.pop %v4485
        %v4612 = vtanh.pop %v4488
        %v4613 = vtanh.pop %v4493
        %v4614 = vtanh.pop %v4496
        %v4615 = vtanh.pop %v4501
        %v4616 = vtanh.pop %v4504
        %v4617 = vtanh.pop %v4509
        %v4618 = vtanh.pop %v4512
        %v4619 = vtanh.pop %v4517
        %v4620 = vtanh.pop %v4520
        %v4621 = vtanh.pop %v4525
        %v4622 = vtanh.pop %v4528
        %v4623 = vtanh.pop %v4533
        %v4624 = vtanh.pop %v4536
        %v4625 = vtanh.pop %v4541
        %v4626 = vtanh.pop %v4544
        %v4627 = vtanh.pop %v4549
        %v4628 = vtanh.pop %v4552
        %v4629 = vtanh.pop %v4557
        %v4630 = vtanh.pop %v4560
        %v4631 = vtanh.pop %v4565
        %v4632 = vtanh.pop %v4568
        %v4633 = vtanh.pop %v4573
        %v4634 = vtanh.pop %v4576
        %v4635 = vtanh.pop %v4581
        %v4636 = vtanh.pop %v4584
        %v4637 = vtanh.pop %v4589
        %v4638 = vtanh.pop %v4592
        %v4639 = vtanh.pop %v4597
        %v4640 = vtanh.pop %v4600
        %v4641 = vtanh.pop %v4605
        %v4642 = vtanh.pop %v4608
        %v4643 = vsub.f32 1.0, %v4115
        %v4644 = vsub.f32 1.0, %v4117
        %v4645 = vsub.f32 1.0, %v4119
        %v4646 = vsub.f32 1.0, %v4121
        %v4647 = vsub.f32 1.0, %v4123
        %v4648 = vsub.f32 1.0, %v4125
        %v4649 = vsub.f32 1.0, %v4127
        %v4650 = vsub.f32 1.0, %v4129
        %v4651 = vsub.f32 1.0, %v4131
        %v4652 = vsub.f32 1.0, %v4133
        %v4653 = vsub.f32 1.0, %v4135
        %v4654 = vsub.f32 1.0, %v4137
        %v4655 = vsub.f32 1.0, %v4139
        %v4656 = vsub.f32 1.0, %v4141
        %v4657 = vsub.f32 1.0, %v4143
        %v4658 = vsub.f32 1.0, %v4145
        %v4659 = vsub.f32 1.0, %v4147
        %v4660 = vsub.f32 1.0, %v4149
        %v4661 = vsub.f32 1.0, %v4151
        %v4662 = vsub.f32 1.0, %v4153
        %v4663 = vsub.f32 1.0, %v4155
        %v4664 = vsub.f32 1.0, %v4157
        %v4665 = vsub.f32 1.0, %v4159
        %v4666 = vsub.f32 1.0, %v4161
        %v4667 = vsub.f32 1.0, %v4163
        %v4668 = vsub.f32 1.0, %v4165
        %v4669 = vsub.f32 1.0, %v4167
        %v4670 = vsub.f32 1.0, %v4169
        %v4671 = vsub.f32 1.0, %v4171
        %v4672 = vsub.f32 1.0, %v4173
        %v4673 = vsub.f32 1.0, %v4175
        %v4674 = vsub.f32 1.0, %v4177
        %v4675 = vmul.f32 %v4643, %v3729
        %v4676 = vmul.f32 %v4644, %v3730
        %v4677 = vmul.f32 %v4645, %v3731
        %v4678 = vmul.f32 %v4646, %v3732
        %v4679 = vmul.f32 %v4647, %v3733
        %v4680 = vmul.f32 %v4648, %v3734
        %v4681 = vmul.f32 %v4649, %v3735
        %v4682 = vmul.f32 %v4650, %v3736
        %v4683 = vmul.f32 %v4651, %v3737
        %v4684 = vmul.f32 %v4652, %v3738
        %v4685 = vmul.f32 %v4653, %v3739
        %v4686 = vmul.f32 %v4654, %v3740
        %v4687 = vmul.f32 %v4655, %v3741
        %v4688 = vmul.f32 %v4656, %v3742
        %v4689 = vmul.f32 %v4657, %v3743
        %v4690 = vmul.f32 %v4658, %v3744
        %v4691 = vmul.f32 %v4659, %v3745
        %v4692 = vmul.f32 %v4660, %v3746
        %v4693 = vmul.f32 %v4661, %v3747
        %v4694 = vmul.f32 %v4662, %v3748
        %v4695 = vmul.f32 %v4663, %v3749
        %v4696 = vmul.f32 %v4664, %v3750
        %v4697 = vmul.f32 %v4665, %v3751
        %v4698 = vmul.f32 %v4666, %v3752
        %v4699 = vmul.f32 %v4667, %v3753
        %v4700 = vmul.f32 %v4668, %v3754
        %v4701 = vmul.f32 %v4669, %v3755
        %v4702 = vmul.f32 %v4670, %v3756
        %v4703 = vmul.f32 %v4671, %v3757
        %v4704 = vmul.f32 %v4672, %v3758
        %v4705 = vmul.f32 %v4673, %v3759
        %v4706 = vmul.f32 %v4674, %v3760
        %v4707 = vmul.f32 %v4115, %v4611
        %v4708 = vmul.f32 %v4117, %v4612
        %v4709 = vmul.f32 %v4119, %v4613
        %v4710 = vmul.f32 %v4121, %v4614
        %v4711 = vmul.f32 %v4123, %v4615
        %v4712 = vmul.f32 %v4125, %v4616
        %v4713 = vmul.f32 %v4127, %v4617
        %v4714 = vmul.f32 %v4129, %v4618
        %v4715 = vmul.f32 %v4131, %v4619
        %v4716 = vmul.f32 %v4133, %v4620
        %v4717 = vmul.f32 %v4135, %v4621
        %v4718 = vmul.f32 %v4137, %v4622
        %v4719 = vmul.f32 %v4139, %v4623
        %v4720 = vmul.f32 %v4141, %v4624
        %v4721 = vmul.f32 %v4143, %v4625
        %v4722 = vmul.f32 %v4145, %v4626
        %v4723 = vmul.f32 %v4147, %v4627
        %v4724 = vmul.f32 %v4149, %v4628
        %v4725 = vmul.f32 %v4151, %v4629
        %v4726 = vmul.f32 %v4153, %v4630
        %v4727 = vmul.f32 %v4155, %v4631
        %v4728 = vmul.f32 %v4157, %v4632
        %v4729 = vmul.f32 %v4159, %v4633
        %v4730 = vmul.f32 %v4161, %v4634
        %v4731 = vmul.f32 %v4163, %v4635
        %v4732 = vmul.f32 %v4165, %v4636
        %v4733 = vmul.f32 %v4167, %v4637
        %v4734 = vmul.f32 %v4169, %v4638
        %v4735 = vmul.f32 %v4171, %v4639
        %v4736 = vmul.f32 %v4173, %v4640
        %v4737 = vmul.f32 %v4175, %v4641
        %v4738 = vmul.f32 %v4177, %v4642
        %v4739 = vadd.f32 %v4675, %v4707
        %v4740 = vadd.f32 %v4676, %v4708
        %v4741 = vadd.f32 %v4677, %v4709
        %v4742 = vadd.f32 %v4678, %v4710
        %v4743 = vadd.f32 %v4679, %v4711
        %v4744 = vadd.f32 %v4680, %v4712
        %v4745 = vadd.f32 %v4681, %v4713
        %v4746 = vadd.f32 %v4682, %v4714
        %v4747 = vadd.f32 %v4683, %v4715
        %v4748 = vadd.f32 %v4684, %v4716
        %v4749 = vadd.f32 %v4685, %v4717
        %v4750 = vadd.f32 %v4686, %v4718
        %v4751 = vadd.f32 %v4687, %v4719
        %v4752 = vadd.f32 %v4688, %v4720
        %v4753 = vadd.f32 %v4689, %v4721
        %v4754 = vadd.f32 %v4690, %v4722
        %v4755 = vadd.f32 %v4691, %v4723
        %v4756 = vadd.f32 %v4692, %v4724
        %v4757 = vadd.f32 %v4693, %v4725
        %v4758 = vadd.f32 %v4694, %v4726
        %v4759 = vadd.f32 %v4695, %v4727
        %v4760 = vadd.f32 %v4696, %v4728
        %v4761 = vadd.f32 %v4697, %v4729
        %v4762 = vadd.f32 %v4698, %v4730
        %v4763 = vadd.f32 %v4699, %v4731
        %v4764 = vadd.f32 %v4700, %v4732
        %v4765 = vadd.f32 %v4701, %v4733
        %v4766 = vadd.f32 %v4702, %v4734
        %v4767 = vadd.f32 %v4703, %v4735
        %v4768 = vadd.f32 %v4704, %v4736
        %v4769 = vadd.f32 %v4705, %v4737
        %v4770 = vadd.f32 %v4706, %v4738
        %v4771 = vpack.c.bf16 %v4740, %v4739
        %v4772 = vpack.c.bf16 %v4742, %v4741
        %v4773 = vpack.c.bf16 %v4744, %v4743
        %v4774 = vpack.c.bf16 %v4746, %v4745
        %v4775 = vpack.c.bf16 %v4748, %v4747
        %v4776 = vpack.c.bf16 %v4750, %v4749
        %v4777 = vpack.c.bf16 %v4752, %v4751
        %v4778 = vpack.c.bf16 %v4754, %v4753
        %v4779 = vpack.c.bf16 %v4756, %v4755
        %v4780 = vpack.c.bf16 %v4758, %v4757
        %v4781 = vpack.c.bf16 %v4760, %v4759
        %v4782 = vpack.c.bf16 %v4762, %v4761
        %v4783 = vpack.c.bf16 %v4764, %v4763
        %v4784 = vpack.c.bf16 %v4766, %v4765
        %v4785 = vpack.c.bf16 %v4768, %v4767
        %v4786 = vpack.c.bf16 %v4770, %v4769
        %v4788 = vsel %vm722, %v4771, 0
        %v4791 = vsel %vm722, %v4772, 0
        %v4794 = vsel %vm722, %v4773, 0
        %v4797 = vsel %vm722, %v4774, 0
        %v4800 = vsel %vm722, %v4775, 0
        %v4803 = vsel %vm722, %v4776, 0
        %v4806 = vsel %vm722, %v4777, 0
        %v4809 = vsel %vm722, %v4778, 0
        %v4812 = vsel %vm722, %v4779, 0
        %v4815 = vsel %vm722, %v4780, 0
        %v4818 = vsel %vm722, %v4781, 0
        %v4821 = vsel %vm722, %v4782, 0
        %v4824 = vsel %vm722, %v4783, 0
        %v4827 = vsel %vm722, %v4784, 0
        %v4830 = vsel %vm722, %v4785, 0
        %v4833 = vsel %vm722, %v4786, 0
        %4835 = vmatprep.subr.bf16.mxu0 0
        %4836 = vmatpush1.bf16.msra.mxu0 %v714
        %4837 = vmatprep.subr.bf16.mxu0 0
        %4838 = vmatpush1.bf16.msra.mxu0 %v715
        %4839 = vmatprep.subr.bf16.mxu0 0
        %4840 = vmatpush1.bf16.msra.mxu0 %v716
        %4841 = vmatprep.subr.bf16.mxu0 0
        %4842 = vmatpush1.bf16.msra.mxu0 %v717
        %4843 = vmatprep.subr.bf16.mxu0 0
        %4844 = vmatpush1.bf16.msra.mxu0 0
        %4845 = vmatprep.subr.bf16.mxu0 0
        %4846 = vmatpush1.bf16.msra.mxu0 0
        %4847 = vmatprep.subr.bf16.mxu0 0
        %4848 = vmatpush1.bf16.msra.mxu0 0
        %4849 = vmatprep.subr.bf16.mxu0 0
        %4850 = vmatpush1.bf16.msra.mxu0 0
        %4851 = vmatprep.subr.bf16.mxu0 0
        %4852 = vmatpush1.bf16.msra.mxu0 0
        %4853 = vmatprep.subr.bf16.mxu0 0
        %4854 = vmatpush1.bf16.msra.mxu0 0
        %4855 = vmatprep.subr.bf16.mxu0 0
        %4856 = vmatpush1.bf16.msra.mxu0 0
        %4857 = vmatprep.subr.bf16.mxu0 0
        %4858 = vmatpush1.bf16.msra.mxu0 0
        %4859 = vmatprep.subr.bf16.mxu0 0
        %4860 = vmatpush1.bf16.msra.mxu0 0
        %4861 = vmatprep.subr.bf16.mxu0 0
        %4862 = vmatpush1.bf16.msra.mxu0 0
        %4863 = vmatprep.subr.bf16.mxu0 0
        %4864 = vmatpush1.bf16.msra.mxu0 0
        %4865 = vmatprep.subr.bf16.mxu0 0
        %4866 = vmatpush1.bf16.msra.mxu0 0
        %4867 = vmatprep.mubr.bf16.mxu0 0
        %4868 = vmatmul.mubr.bf16.gmra.mrb[0].mxu0 %v4788
        %v4869 = vpop.f32.mrb[0].mxu0
        %v4870 = vadd.f32 %v524, %v4869
        %v4871 = vpop.f32.mrb[0].mxu0
        %v4872 = vpop.f32.mrb[0].mxu0
        %v4873 = vadd.f32 %v528, %v4872
        %v4874 = vpop.f32.mrb[0].mxu0
        %4875 = vmatprep.mubr.bf16.mxu0 0
        %4876 = vmatmul.mubr.bf16.gmra.mrb[0].mxu0 %v4791
        %v4877 = vpop.f32.mrb[0].mxu0
        %v4878 = vadd.f32 %v534, %v4877
        %v4879 = vpop.f32.mrb[0].mxu0
        %v4880 = vpop.f32.mrb[0].mxu0
        %v4881 = vadd.f32 %v538, %v4880
        %v4882 = vpop.f32.mrb[0].mxu0
        %4883 = vmatprep.mubr.bf16.mxu0 0
        %4884 = vmatmul.mubr.bf16.gmra.mrb[0].mxu0 %v4794
        %v4885 = vpop.f32.mrb[0].mxu0
        %v4886 = vadd.f32 %v544, %v4885
        %v4887 = vpop.f32.mrb[0].mxu0
        %v4888 = vpop.f32.mrb[0].mxu0
        %v4889 = vadd.f32 %v548, %v4888
        %v4890 = vpop.f32.mrb[0].mxu0
        %4891 = vmatprep.mubr.bf16.mxu0 0
        %4892 = vmatmul.mubr.bf16.gmra.mrb[0].mxu0 %v4797
        %v4893 = vpop.f32.mrb[0].mxu0
        %v4894 = vadd.f32 %v554, %v4893
        %v4895 = vpop.f32.mrb[0].mxu0
        %v4896 = vpop.f32.mrb[0].mxu0
        %v4897 = vadd.f32 %v558, %v4896
        %v4898 = vpop.f32.mrb[0].mxu0
        %4899 = vmatprep.mubr.bf16.mxu0 0
        %4900 = vmatmul.mubr.bf16.gmra.mrb[0].mxu0 %v4800
        %v4901 = vpop.f32.mrb[0].mxu0
        %v4902 = vadd.f32 %v564, %v4901
        %v4903 = vpop.f32.mrb[0].mxu0
        %v4904 = vpop.f32.mrb[0].mxu0
        %v4905 = vadd.f32 %v568, %v4904
        %v4906 = vpop.f32.mrb[0].mxu0
        %4907 = vmatprep.mubr.bf16.mxu0 0
        %4908 = vmatmul.mubr.bf16.gmra.mrb[0].mxu0 %v4803
        %v4909 = vpop.f32.mrb[0].mxu0
        %v4910 = vadd.f32 %v574, %v4909
        %v4911 = vpop.f32.mrb[0].mxu0
        %v4912 = vpop.f32.mrb[0].mxu0
        %v4913 = vadd.f32 %v578, %v4912
        %v4914 = vpop.f32.mrb[0].mxu0
        %4915 = vmatprep.mubr.bf16.mxu0 0
        %4916 = vmatmul.mubr.bf16.gmra.mrb[0].mxu0 %v4806
        %v4917 = vpop.f32.mrb[0].mxu0
        %v4918 = vadd.f32 %v584, %v4917
        %v4919 = vpop.f32.mrb[0].mxu0
        %v4920 = vpop.f32.mrb[0].mxu0
        %v4921 = vadd.f32 %v588, %v4920
        %v4922 = vpop.f32.mrb[0].mxu0
        %4923 = vmatprep.mubr.bf16.mxu0 0
        %4924 = vmatmul.mubr.bf16.gmra.mrb[0].mxu0 %v4809
        %v4925 = vpop.f32.mrb[0].mxu0
        %v4926 = vadd.f32 %v594, %v4925
        %v4927 = vpop.f32.mrb[0].mxu0
        %v4928 = vpop.f32.mrb[0].mxu0
        %v4929 = vadd.f32 %v598, %v4928
        %v4930 = vpop.f32.mrb[0].mxu0
        %4931 = vmatprep.mubr.bf16.mxu0 0
        %4932 = vmatmul.mubr.bf16.gmra.mrb[0].mxu0 %v4812
        %v4933 = vpop.f32.mrb[0].mxu0
        %v4934 = vadd.f32 %v604, %v4933
        %v4935 = vpop.f32.mrb[0].mxu0
        %v4936 = vpop.f32.mrb[0].mxu0
        %v4937 = vadd.f32 %v608, %v4936
        %v4938 = vpop.f32.mrb[0].mxu0
        %4939 = vmatprep.mubr.bf16.mxu0 0
        %4940 = vmatmul.mubr.bf16.gmra.mrb[0].mxu0 %v4815
        %v4941 = vpop.f32.mrb[0].mxu0
        %v4942 = vadd.f32 %v614, %v4941
        %v4943 = vpop.f32.mrb[0].mxu0
        %v4944 = vpop.f32.mrb[0].mxu0
        %v4945 = vadd.f32 %v618, %v4944
        %v4946 = vpop.f32.mrb[0].mxu0
        %4947 = vmatprep.mubr.bf16.mxu0 0
        %4948 = vmatmul.mubr.bf16.gmra.mrb[0].mxu0 %v4818
        %v4949 = vpop.f32.mrb[0].mxu0
        %v4950 = vadd.f32 %v624, %v4949
        %v4951 = vpop.f32.mrb[0].mxu0
        %v4952 = vpop.f32.mrb[0].mxu0
        %v4953 = vadd.f32 %v628, %v4952
        %v4954 = vpop.f32.mrb[0].mxu0
        %4955 = vmatprep.mubr.bf16.mxu0 0
        %4956 = vmatmul.mubr.bf16.gmra.mrb[0].mxu0 %v4821
        %v4957 = vpop.f32.mrb[0].mxu0
        %v4958 = vadd.f32 %v634, %v4957
        %v4959 = vpop.f32.mrb[0].mxu0
        %v4960 = vpop.f32.mrb[0].mxu0
        %v4961 = vadd.f32 %v638, %v4960
        %v4962 = vpop.f32.mrb[0].mxu0
        %4963 = vmatprep.mubr.bf16.mxu0 0
        %4964 = vmatmul.mubr.bf16.gmra.mrb[0].mxu0 %v4824
        %v4965 = vpop.f32.mrb[0].mxu0
        %v4966 = vadd.f32 %v644, %v4965
        %v4967 = vpop.f32.mrb[0].mxu0
        %v4968 = vpop.f32.mrb[0].mxu0
        %v4969 = vadd.f32 %v648, %v4968
        %v4970 = vpop.f32.mrb[0].mxu0
        %4971 = vmatprep.mubr.bf16.mxu0 0
        %4972 = vmatmul.mubr.bf16.gmra.mrb[0].mxu0 %v4827
        %v4973 = vpop.f32.mrb[0].mxu0
        %v4974 = vadd.f32 %v654, %v4973
        %v4975 = vpop.f32.mrb[0].mxu0
        %v4976 = vpop.f32.mrb[0].mxu0
        %v4977 = vadd.f32 %v658, %v4976
        %v4978 = vpop.f32.mrb[0].mxu0
        %4979 = vmatprep.mubr.bf16.mxu0 0
        %4980 = vmatmul.mubr.bf16.gmra.mrb[0].mxu0 %v4830
        %v4981 = vpop.f32.mrb[0].mxu0
        %v4982 = vadd.f32 %v664, %v4981
        %v4983 = vpop.f32.mrb[0].mxu0
        %v4984 = vpop.f32.mrb[0].mxu0
        %v4985 = vadd.f32 %v668, %v4984
        %v4986 = vpop.f32.mrb[0].mxu0
        %4987 = vmatprep.mubr.bf16.mxu0 0
        %4988 = vmatmul.mubr.bf16.gmra.mrb[0].mxu0 %v4833
        %v4989 = vpop.f32.mrb[0].mxu0
        %v4990 = vadd.f32 %v674, %v4989
        %v4991 = vpop.f32.mrb[0].mxu0
        %v4992 = vpop.f32.mrb[0].mxu0
        %v4993 = vadd.f32 %v678, %v4992
        %v4994 = vpop.f32.mrb[0].mxu0
        %4995 = vdwg.mxu0
        %v4996 = vxor.u32 %v4870, 2147483648
        %v4997 = vxor.u32 %v4873, 2147483648
        %v4998 = vxor.u32 %v4878, 2147483648
        %v4999 = vxor.u32 %v4881, 2147483648
        %v5000 = vxor.u32 %v4886, 2147483648
        %v5001 = vxor.u32 %v4889, 2147483648
        %v5002 = vxor.u32 %v4894, 2147483648
        %v5003 = vxor.u32 %v4897, 2147483648
        %v5004 = vxor.u32 %v4902, 2147483648
        %v5005 = vxor.u32 %v4905, 2147483648
        %v5006 = vxor.u32 %v4910, 2147483648
        %v5007 = vxor.u32 %v4913, 2147483648
        %v5008 = vxor.u32 %v4918, 2147483648
        %v5009 = vxor.u32 %v4921, 2147483648
        %v5010 = vxor.u32 %v4926, 2147483648
        %v5011 = vxor.u32 %v4929, 2147483648
        %v5012 = vxor.u32 %v4934, 2147483648
        %v5013 = vxor.u32 %v4937, 2147483648
        %v5014 = vxor.u32 %v4942, 2147483648
        %v5015 = vxor.u32 %v4945, 2147483648
        %v5016 = vxor.u32 %v4950, 2147483648
        %v5017 = vxor.u32 %v4953, 2147483648
        %v5018 = vxor.u32 %v4958, 2147483648
        %v5019 = vxor.u32 %v4961, 2147483648
        %v5020 = vxor.u32 %v4966, 2147483648
        %v5021 = vxor.u32 %v4969, 2147483648
        %v5022 = vxor.u32 %v4974, 2147483648
        %v5023 = vxor.u32 %v4977, 2147483648
        %v5024 = vxor.u32 %v4982, 2147483648
        %v5025 = vxor.u32 %v4985, 2147483648
        %v5026 = vxor.u32 %v4990, 2147483648
        %v5027 = vxor.u32 %v4993, 2147483648
        %v5028 = vmul.f32 %v4996, 1.442695
        %v5029 = vpow.pop %v5028
        %v5030 = vmul.f32 %v4997, 1.442695
        %v5031 = vpow.pop %v5030
        %v5032 = vmul.f32 %v4998, 1.442695
        %v5033 = vpow.pop %v5032
        %v5034 = vmul.f32 %v4999, 1.442695
        %v5035 = vpow.pop %v5034
        %v5036 = vmul.f32 %v5000, 1.442695
        %v5037 = vpow.pop %v5036
        %v5038 = vmul.f32 %v5001, 1.442695
        %v5039 = vpow.pop %v5038
        %v5040 = vmul.f32 %v5002, 1.442695
        %v5041 = vpow.pop %v5040
        %v5042 = vmul.f32 %v5003, 1.442695
        %v5043 = vpow.pop %v5042
        %v5044 = vmul.f32 %v5004, 1.442695
        %v5045 = vpow.pop %v5044
        %v5046 = vmul.f32 %v5005, 1.442695
        %v5047 = vpow.pop %v5046
        %v5048 = vmul.f32 %v5006, 1.442695
        %v5049 = vpow.pop %v5048
        %v5050 = vmul.f32 %v5007, 1.442695
        %v5051 = vpow.pop %v5050
        %v5052 = vmul.f32 %v5008, 1.442695
        %v5053 = vpow.pop %v5052
        %v5054 = vmul.f32 %v5009, 1.442695
        %v5055 = vpow.pop %v5054
        %v5056 = vmul.f32 %v5010, 1.442695
        %v5057 = vpow.pop %v5056
        %v5058 = vmul.f32 %v5011, 1.442695
        %v5059 = vpow.pop %v5058
        %v5060 = vmul.f32 %v5012, 1.442695
        %v5061 = vpow.pop %v5060
        %v5062 = vmul.f32 %v5013, 1.442695
        %v5063 = vpow.pop %v5062
        %v5064 = vmul.f32 %v5014, 1.442695
        %v5065 = vpow.pop %v5064
        %v5066 = vmul.f32 %v5015, 1.442695
        %v5067 = vpow.pop %v5066
        %v5068 = vmul.f32 %v5016, 1.442695
        %v5069 = vpow.pop %v5068
        %v5070 = vmul.f32 %v5017, 1.442695
        %v5071 = vpow.pop %v5070
        %v5072 = vmul.f32 %v5018, 1.442695
        %v5073 = vpow.pop %v5072
        %v5074 = vmul.f32 %v5019, 1.442695
        %v5075 = vpow.pop %v5074
        %v5076 = vmul.f32 %v5020, 1.442695
        %v5077 = vpow.pop %v5076
        %v5078 = vmul.f32 %v5021, 1.442695
        %v5079 = vpow.pop %v5078
        %v5080 = vmul.f32 %v5022, 1.442695
        %v5081 = vpow.pop %v5080
        %v5082 = vmul.f32 %v5023, 1.442695
        %v5083 = vpow.pop %v5082
        %v5084 = vmul.f32 %v5024, 1.442695
        %v5085 = vpow.pop %v5084
        %v5086 = vmul.f32 %v5025, 1.442695
        %v5087 = vpow.pop %v5086
        %v5088 = vmul.f32 %v5026, 1.442695
        %v5089 = vpow.pop %v5088
        %v5090 = vmul.f32 %v5027, 1.442695
        %v5091 = vpow.pop %v5090
        %v5092 = vadd.f32 %v5029, 1.0
        %v5093 = vadd.f32 %v5031, 1.0
        %v5094 = vadd.f32 %v5033, 1.0
        %v5095 = vadd.f32 %v5035, 1.0
        %v5096 = vadd.f32 %v5037, 1.0
        %v5097 = vadd.f32 %v5039, 1.0
        %v5098 = vadd.f32 %v5041, 1.0
        %v5099 = vadd.f32 %v5043, 1.0
        %v5100 = vadd.f32 %v5045, 1.0
        %v5101 = vadd.f32 %v5047, 1.0
        %v5102 = vadd.f32 %v5049, 1.0
        %v5103 = vadd.f32 %v5051, 1.0
        %v5104 = vadd.f32 %v5053, 1.0
        %v5105 = vadd.f32 %v5055, 1.0
        %v5106 = vadd.f32 %v5057, 1.0
        %v5107 = vadd.f32 %v5059, 1.0
        %v5108 = vadd.f32 %v5061, 1.0
        %v5109 = vadd.f32 %v5063, 1.0
        %v5110 = vadd.f32 %v5065, 1.0
        %v5111 = vadd.f32 %v5067, 1.0
        %v5112 = vadd.f32 %v5069, 1.0
        %v5113 = vadd.f32 %v5071, 1.0
        %v5114 = vadd.f32 %v5073, 1.0
        %v5115 = vadd.f32 %v5075, 1.0
        %v5116 = vadd.f32 %v5077, 1.0
        %v5117 = vadd.f32 %v5079, 1.0
        %v5118 = vadd.f32 %v5081, 1.0
        %v5119 = vadd.f32 %v5083, 1.0
        %v5120 = vadd.f32 %v5085, 1.0
        %v5121 = vadd.f32 %v5087, 1.0
        %v5122 = vadd.f32 %v5089, 1.0
        %v5123 = vadd.f32 %v5091, 1.0
        %v5124 = vrcp.pop %v5092
        %v5125 = vmul.f32 1.0, %v5124
        %v5126 = vrcp.pop %v5093
        %v5127 = vmul.f32 1.0, %v5126
        %v5128 = vrcp.pop %v5094
        %v5129 = vmul.f32 1.0, %v5128
        %v5130 = vrcp.pop %v5095
        %v5131 = vmul.f32 1.0, %v5130
        %v5132 = vrcp.pop %v5096
        %v5133 = vmul.f32 1.0, %v5132
        %v5134 = vrcp.pop %v5097
        %v5135 = vmul.f32 1.0, %v5134
        %v5136 = vrcp.pop %v5098
        %v5137 = vmul.f32 1.0, %v5136
        %v5138 = vrcp.pop %v5099
        %v5139 = vmul.f32 1.0, %v5138
        %v5140 = vrcp.pop %v5100
        %v5141 = vmul.f32 1.0, %v5140
        %v5142 = vrcp.pop %v5101
        %v5143 = vmul.f32 1.0, %v5142
        %v5144 = vrcp.pop %v5102
        %v5145 = vmul.f32 1.0, %v5144
        %v5146 = vrcp.pop %v5103
        %v5147 = vmul.f32 1.0, %v5146
        %v5148 = vrcp.pop %v5104
        %v5149 = vmul.f32 1.0, %v5148
        %v5150 = vrcp.pop %v5105
        %v5151 = vmul.f32 1.0, %v5150
        %v5152 = vrcp.pop %v5106
        %v5153 = vmul.f32 1.0, %v5152
        %v5154 = vrcp.pop %v5107
        %v5155 = vmul.f32 1.0, %v5154
        %v5156 = vrcp.pop %v5108
        %v5157 = vmul.f32 1.0, %v5156
        %v5158 = vrcp.pop %v5109
        %v5159 = vmul.f32 1.0, %v5158
        %v5160 = vrcp.pop %v5110
        %v5161 = vmul.f32 1.0, %v5160
        %v5162 = vrcp.pop %v5111
        %v5163 = vmul.f32 1.0, %v5162
        %v5164 = vrcp.pop %v5112
        %v5165 = vmul.f32 1.0, %v5164
        %v5166 = vrcp.pop %v5113
        %v5167 = vmul.f32 1.0, %v5166
        %v5168 = vrcp.pop %v5114
        %v5169 = vmul.f32 1.0, %v5168
        %v5170 = vrcp.pop %v5115
        %v5171 = vmul.f32 1.0, %v5170
        %v5172 = vrcp.pop %v5116
        %v5173 = vmul.f32 1.0, %v5172
        %v5174 = vrcp.pop %v5117
        %v5175 = vmul.f32 1.0, %v5174
        %v5176 = vrcp.pop %v5118
        %v5177 = vmul.f32 1.0, %v5176
        %v5178 = vrcp.pop %v5119
        %v5179 = vmul.f32 1.0, %v5178
        %v5180 = vrcp.pop %v5120
        %v5181 = vmul.f32 1.0, %v5180
        %v5182 = vrcp.pop %v5121
        %v5183 = vmul.f32 1.0, %v5182
        %v5184 = vrcp.pop %v5122
        %v5185 = vmul.f32 1.0, %v5184
        %v5186 = vrcp.pop %v5123
        %v5187 = vmul.f32 1.0, %v5186
        %5220 = vrot.lane.b32.xlu0 %v4739, 64
        %v5221 = vpop.permute.xlu0 %5220
        %5222 = vrot.lane.b32.xlu0 %v4740, 64
        %v5223 = vpop.permute.xlu0 %5222
        %5224 = vrot.lane.b32.xlu0 %v4741, 64
        %v5225 = vpop.permute.xlu0 %5224
        %5226 = vrot.lane.b32.xlu0 %v4742, 64
        %v5227 = vpop.permute.xlu0 %5226
        %5228 = vrot.lane.b32.xlu0 %v4743, 64
        %v5229 = vpop.permute.xlu0 %5228
        %5230 = vrot.lane.b32.xlu0 %v4744, 64
        %v5231 = vpop.permute.xlu0 %5230
        %5232 = vrot.lane.b32.xlu0 %v4745, 64
        %v5233 = vpop.permute.xlu0 %5232
        %5234 = vrot.lane.b32.xlu0 %v4746, 64
        %v5235 = vpop.permute.xlu0 %5234
        %5236 = vrot.lane.b32.xlu0 %v4747, 64
        %v5237 = vpop.permute.xlu0 %5236
        %5238 = vrot.lane.b32.xlu0 %v4748, 64
        %v5239 = vpop.permute.xlu0 %5238
        %5240 = vrot.lane.b32.xlu0 %v4749, 64
        %v5241 = vpop.permute.xlu0 %5240
        %5242 = vrot.lane.b32.xlu0 %v4750, 64
        %v5243 = vpop.permute.xlu0 %5242
        %5244 = vrot.lane.b32.xlu0 %v4751, 64
        %v5245 = vpop.permute.xlu0 %5244
        %5246 = vrot.lane.b32.xlu0 %v4752, 64
        %v5247 = vpop.permute.xlu0 %5246
        %5248 = vrot.lane.b32.xlu0 %v4753, 64
        %v5249 = vpop.permute.xlu0 %5248
        %5250 = vrot.lane.b32.xlu0 %v4754, 64
        %v5251 = vpop.permute.xlu0 %5250
        %5252 = vrot.lane.b32.xlu0 %v4755, 64
        %v5253 = vpop.permute.xlu0 %5252
        %5254 = vrot.lane.b32.xlu0 %v4756, 64
        %v5255 = vpop.permute.xlu0 %5254
        %5256 = vrot.lane.b32.xlu0 %v4757, 64
        %v5257 = vpop.permute.xlu0 %5256
        %5258 = vrot.lane.b32.xlu0 %v4758, 64
        %v5259 = vpop.permute.xlu0 %5258
        %5260 = vrot.lane.b32.xlu0 %v4759, 64
        %v5261 = vpop.permute.xlu0 %5260
        %5262 = vrot.lane.b32.xlu0 %v4760, 64
        %v5263 = vpop.permute.xlu0 %5262
        %5264 = vrot.lane.b32.xlu0 %v4761, 64
        %v5265 = vpop.permute.xlu0 %5264
        %5266 = vrot.lane.b32.xlu0 %v4762, 64
        %v5267 = vpop.permute.xlu0 %5266
        %5268 = vrot.lane.b32.xlu0 %v4763, 64
        %v5269 = vpop.permute.xlu0 %5268
        %5270 = vrot.lane.b32.xlu0 %v4764, 64
        %v5271 = vpop.permute.xlu0 %5270
        %5272 = vrot.lane.b32.xlu0 %v4765, 64
        %v5273 = vpop.permute.xlu0 %5272
        %5274 = vrot.lane.b32.xlu0 %v4766, 64
        %v5275 = vpop.permute.xlu0 %5274
        %5276 = vrot.lane.b32.xlu0 %v4767, 64
        %v5277 = vpop.permute.xlu0 %5276
        %5278 = vrot.lane.b32.xlu0 %v4768, 64
        %v5279 = vpop.permute.xlu0 %5278
        %5280 = vrot.lane.b32.xlu0 %v4769, 64
        %v5281 = vpop.permute.xlu0 %5280
        %5282 = vrot.lane.b32.xlu0 %v4770, 64
        %v5283 = vpop.permute.xlu0 %5282
        %v5316 = vmul.f32 %v5125, %v5221
        %v5317 = vmul.f32 %v5127, %v5223
        %v5318 = vmul.f32 %v5129, %v5225
        %v5319 = vmul.f32 %v5131, %v5227
        %v5320 = vmul.f32 %v5133, %v5229
        %v5321 = vmul.f32 %v5135, %v5231
        %v5322 = vmul.f32 %v5137, %v5233
        %v5323 = vmul.f32 %v5139, %v5235
        %v5324 = vmul.f32 %v5141, %v5237
        %v5325 = vmul.f32 %v5143, %v5239
        %v5326 = vmul.f32 %v5145, %v5241
        %v5327 = vmul.f32 %v5147, %v5243
        %v5328 = vmul.f32 %v5149, %v5245
        %v5329 = vmul.f32 %v5151, %v5247
        %v5330 = vmul.f32 %v5153, %v5249
        %v5331 = vmul.f32 %v5155, %v5251
        %v5332 = vmul.f32 %v5157, %v5253
        %v5333 = vmul.f32 %v5159, %v5255
        %v5334 = vmul.f32 %v5161, %v5257
        %v5335 = vmul.f32 %v5163, %v5259
        %v5336 = vmul.f32 %v5165, %v5261
        %v5337 = vmul.f32 %v5167, %v5263
        %v5338 = vmul.f32 %v5169, %v5265
        %v5339 = vmul.f32 %v5171, %v5267
        %v5340 = vmul.f32 %v5173, %v5269
        %v5341 = vmul.f32 %v5175, %v5271
        %v5342 = vmul.f32 %v5177, %v5273
        %v5343 = vmul.f32 %v5179, %v5275
        %v5344 = vmul.f32 %v5181, %v5277
        %v5345 = vmul.f32 %v5183, %v5279
        %v5346 = vmul.f32 %v5185, %v5281
        %v5347 = vmul.f32 %v5187, %v5283
        %v5348 = vpack.c.bf16 %v5317, %v5316
        %v5349 = vpack.c.bf16 %v5319, %v5318
        %v5350 = vpack.c.bf16 %v5321, %v5320
        %v5351 = vpack.c.bf16 %v5323, %v5322
        %v5352 = vpack.c.bf16 %v5325, %v5324
        %v5353 = vpack.c.bf16 %v5327, %v5326
        %v5354 = vpack.c.bf16 %v5329, %v5328
        %v5355 = vpack.c.bf16 %v5331, %v5330
        %v5356 = vpack.c.bf16 %v5333, %v5332
        %v5357 = vpack.c.bf16 %v5335, %v5334
        %v5358 = vpack.c.bf16 %v5337, %v5336
        %v5359 = vpack.c.bf16 %v5339, %v5338
        %v5360 = vpack.c.bf16 %v5341, %v5340
        %v5361 = vpack.c.bf16 %v5343, %v5342
        %v5362 = vpack.c.bf16 %v5345, %v5344
        %v5363 = vpack.c.bf16 %v5347, %v5346
        %5380 = vrot.lane.b32.xlu0 %v5348, 64
        %v5381 = vpop.permute.xlu0 %5380
        %5382 = vrot.lane.b32.xlu0 %v5349, 64
        %v5383 = vpop.permute.xlu0 %5382
        %5384 = vrot.lane.b32.xlu0 %v5350, 64
        %v5385 = vpop.permute.xlu0 %5384
        %5386 = vrot.lane.b32.xlu0 %v5351, 64
        %v5387 = vpop.permute.xlu0 %5386
        %5388 = vrot.lane.b32.xlu0 %v5352, 64
        %v5389 = vpop.permute.xlu0 %5388
        %5390 = vrot.lane.b32.xlu0 %v5353, 64
        %v5391 = vpop.permute.xlu0 %5390
        %5392 = vrot.lane.b32.xlu0 %v5354, 64
        %v5393 = vpop.permute.xlu0 %5392
        %5394 = vrot.lane.b32.xlu0 %v5355, 64
        %v5395 = vpop.permute.xlu0 %5394
        %5396 = vrot.lane.b32.xlu0 %v5356, 64
        %v5397 = vpop.permute.xlu0 %5396
        %5398 = vrot.lane.b32.xlu0 %v5357, 64
        %v5399 = vpop.permute.xlu0 %5398
        %5400 = vrot.lane.b32.xlu0 %v5358, 64
        %v5401 = vpop.permute.xlu0 %5400
        %5402 = vrot.lane.b32.xlu0 %v5359, 64
        %v5403 = vpop.permute.xlu0 %5402
        %5404 = vrot.lane.b32.xlu0 %v5360, 64
        %v5405 = vpop.permute.xlu0 %5404
        %5406 = vrot.lane.b32.xlu0 %v5361, 64
        %v5407 = vpop.permute.xlu0 %5406
        %5408 = vrot.lane.b32.xlu0 %v5362, 64
        %v5409 = vpop.permute.xlu0 %5408
        %5410 = vrot.lane.b32.xlu0 %v5363, 64
        %v5411 = vpop.permute.xlu0 %5410
        %v5413 = vsel %vm722, %v5381, 0
        %v5416 = vsel %vm722, %v5383, 0
        %v5419 = vsel %vm722, %v5385, 0
        %v5422 = vsel %vm722, %v5387, 0
        %v5425 = vsel %vm722, %v5389, 0
        %v5428 = vsel %vm722, %v5391, 0
        %v5431 = vsel %vm722, %v5393, 0
        %v5434 = vsel %vm722, %v5395, 0
        %v5437 = vsel %vm722, %v5397, 0
        %v5440 = vsel %vm722, %v5399, 0
        %v5443 = vsel %vm722, %v5401, 0
        %v5446 = vsel %vm722, %v5403, 0
        %v5449 = vsel %vm722, %v5405, 0
        %v5452 = vsel %vm722, %v5407, 0
        %v5455 = vsel %vm722, %v5409, 0
        %v5458 = vsel %vm722, %v5411, 0
        %5460 = vmatprep.subr.bf16.mxu0 0
        %5461 = vmatpush1.bf16.msra.mxu0 %v1364
        %5462 = vmatprep.subr.bf16.mxu0 0
        %5463 = vmatpush1.bf16.msra.mxu0 %v1365
        %5464 = vmatprep.subr.bf16.mxu0 0
        %5465 = vmatpush1.bf16.msra.mxu0 %v1366
        %5466 = vmatprep.subr.bf16.mxu0 0
        %5467 = vmatpush1.bf16.msra.mxu0 %v1367
        %5468 = vmatprep.subr.bf16.mxu0 0
        %5469 = vmatpush1.bf16.msra.mxu0 0
        %5470 = vmatprep.subr.bf16.mxu0 0
        %5471 = vmatpush1.bf16.msra.mxu0 0
        %5472 = vmatprep.subr.bf16.mxu0 0
        %5473 = vmatpush1.bf16.msra.mxu0 0
        %5474 = vmatprep.subr.bf16.mxu0 0
        %5475 = vmatpush1.bf16.msra.mxu0 0
        %5476 = vmatprep.subr.bf16.mxu0 0
        %5477 = vmatpush1.bf16.msra.mxu0 0
        %5478 = vmatprep.subr.bf16.mxu0 0
        %5479 = vmatpush1.bf16.msra.mxu0 0
        %5480 = vmatprep.subr.bf16.mxu0 0
        %5481 = vmatpush1.bf16.msra.mxu0 0
        %5482 = vmatprep.subr.bf16.mxu0 0
        %5483 = vmatpush1.bf16.msra.mxu0 0
        %5484 = vmatprep.subr.bf16.mxu0 0
        %5485 = vmatpush1.bf16.msra.mxu0 0
        %5486 = vmatprep.subr.bf16.mxu0 0
        %5487 = vmatpush1.bf16.msra.mxu0 0
        %5488 = vmatprep.subr.bf16.mxu0 0
        %5489 = vmatpush1.bf16.msra.mxu0 0
        %5490 = vmatprep.subr.bf16.mxu0 0
        %5491 = vmatpush1.bf16.msra.mxu0 0
        %5492 = vmatprep.mubr.bf16.mxu0 0
        %5493 = vmatmul.mubr.bf16.gmra.mrb[0].mxu0 %v5413
        %v5494 = vpop.f32.mrb[0].mxu0
        %v5495 = vadd.f32 %v526, %v5494
        %v5496 = vpop.f32.mrb[0].mxu0
        %v5497 = vpop.f32.mrb[0].mxu0
        %v5498 = vadd.f32 %v530, %v5497
        %v5499 = vpop.f32.mrb[0].mxu0
        %5500 = vmatprep.mubr.bf16.mxu0 0
        %5501 = vmatmul.mubr.bf16.gmra.mrb[0].mxu0 %v5416
        %v5502 = vpop.f32.mrb[0].mxu0
        %v5503 = vadd.f32 %v536, %v5502
        %v5504 = vpop.f32.mrb[0].mxu0
        %v5505 = vpop.f32.mrb[0].mxu0
        %v5506 = vadd.f32 %v540, %v5505
        %v5507 = vpop.f32.mrb[0].mxu0
        %5508 = vmatprep.mubr.bf16.mxu0 0
        %5509 = vmatmul.mubr.bf16.gmra.mrb[0].mxu0 %v5419
        %v5510 = vpop.f32.mrb[0].mxu0
        %v5511 = vadd.f32 %v546, %v5510
        %v5512 = vpop.f32.mrb[0].mxu0
        %v5513 = vpop.f32.mrb[0].mxu0
        %v5514 = vadd.f32 %v550, %v5513
        %v5515 = vpop.f32.mrb[0].mxu0
        %5516 = vmatprep.mubr.bf16.mxu0 0
        %5517 = vmatmul.mubr.bf16.gmra.mrb[0].mxu0 %v5422
        %v5518 = vpop.f32.mrb[0].mxu0
        %v5519 = vadd.f32 %v556, %v5518
        %v5520 = vpop.f32.mrb[0].mxu0
        %v5521 = vpop.f32.mrb[0].mxu0
        %v5522 = vadd.f32 %v560, %v5521
        %v5523 = vpop.f32.mrb[0].mxu0
        %5524 = vmatprep.mubr.bf16.mxu0 0
        %5525 = vmatmul.mubr.bf16.gmra.mrb[0].mxu0 %v5425
        %v5526 = vpop.f32.mrb[0].mxu0
        %v5527 = vadd.f32 %v566, %v5526
        %v5528 = vpop.f32.mrb[0].mxu0
        %v5529 = vpop.f32.mrb[0].mxu0
        %v5530 = vadd.f32 %v570, %v5529
        %v5531 = vpop.f32.mrb[0].mxu0
        %5532 = vmatprep.mubr.bf16.mxu0 0
        %5533 = vmatmul.mubr.bf16.gmra.mrb[0].mxu0 %v5428
        %v5534 = vpop.f32.mrb[0].mxu0
        %v5535 = vadd.f32 %v576, %v5534
        %v5536 = vpop.f32.mrb[0].mxu0
        %v5537 = vpop.f32.mrb[0].mxu0
        %v5538 = vadd.f32 %v580, %v5537
        %v5539 = vpop.f32.mrb[0].mxu0
        %5540 = vmatprep.mubr.bf16.mxu0 0
        %5541 = vmatmul.mubr.bf16.gmra.mrb[0].mxu0 %v5431
        %v5542 = vpop.f32.mrb[0].mxu0
        %v5543 = vadd.f32 %v586, %v5542
        %v5544 = vpop.f32.mrb[0].mxu0
        %v5545 = vpop.f32.mrb[0].mxu0
        %v5546 = vadd.f32 %v590, %v5545
        %v5547 = vpop.f32.mrb[0].mxu0
        %5548 = vmatprep.mubr.bf16.mxu0 0
        %5549 = vmatmul.mubr.bf16.gmra.mrb[0].mxu0 %v5434
        %v5550 = vpop.f32.mrb[0].mxu0
        %v5551 = vadd.f32 %v596, %v5550
        %v5552 = vpop.f32.mrb[0].mxu0
        %v5553 = vpop.f32.mrb[0].mxu0
        %v5554 = vadd.f32 %v600, %v5553
        %v5555 = vpop.f32.mrb[0].mxu0
        %5556 = vmatprep.mubr.bf16.mxu0 0
        %5557 = vmatmul.mubr.bf16.gmra.mrb[0].mxu0 %v5437
        %v5558 = vpop.f32.mrb[0].mxu0
        %v5559 = vadd.f32 %v606, %v5558
        %v5560 = vpop.f32.mrb[0].mxu0
        %v5561 = vpop.f32.mrb[0].mxu0
        %v5562 = vadd.f32 %v610, %v5561
        %v5563 = vpop.f32.mrb[0].mxu0
        %5564 = vmatprep.mubr.bf16.mxu0 0
        %5565 = vmatmul.mubr.bf16.gmra.mrb[0].mxu0 %v5440
        %v5566 = vpop.f32.mrb[0].mxu0
        %v5567 = vadd.f32 %v616, %v5566
        %v5568 = vpop.f32.mrb[0].mxu0
        %v5569 = vpop.f32.mrb[0].mxu0
        %v5570 = vadd.f32 %v620, %v5569
        %v5571 = vpop.f32.mrb[0].mxu0
        %5572 = vmatprep.mubr.bf16.mxu0 0
        %5573 = vmatmul.mubr.bf16.gmra.mrb[0].mxu0 %v5443
        %v5574 = vpop.f32.mrb[0].mxu0
        %v5575 = vadd.f32 %v626, %v5574
        %v5576 = vpop.f32.mrb[0].mxu0
        %v5577 = vpop.f32.mrb[0].mxu0
        %v5578 = vadd.f32 %v630, %v5577
        %v5579 = vpop.f32.mrb[0].mxu0
        %5580 = vmatprep.mubr.bf16.mxu0 0
        %5581 = vmatmul.mubr.bf16.gmra.mrb[0].mxu0 %v5446
        %v5582 = vpop.f32.mrb[0].mxu0
        %v5583 = vadd.f32 %v636, %v5582
        %v5584 = vpop.f32.mrb[0].mxu0
        %v5585 = vpop.f32.mrb[0].mxu0
        %v5586 = vadd.f32 %v640, %v5585
        %v5587 = vpop.f32.mrb[0].mxu0
        %5588 = vmatprep.mubr.bf16.mxu0 0
        %5589 = vmatmul.mubr.bf16.gmra.mrb[0].mxu0 %v5449
        %v5590 = vpop.f32.mrb[0].mxu0
        %v5591 = vadd.f32 %v646, %v5590
        %v5592 = vpop.f32.mrb[0].mxu0
        %v5593 = vpop.f32.mrb[0].mxu0
        %v5594 = vadd.f32 %v650, %v5593
        %v5595 = vpop.f32.mrb[0].mxu0
        %5596 = vmatprep.mubr.bf16.mxu0 0
        %5597 = vmatmul.mubr.bf16.gmra.mrb[0].mxu0 %v5452
        %v5598 = vpop.f32.mrb[0].mxu0
        %v5599 = vadd.f32 %v656, %v5598
        %v5600 = vpop.f32.mrb[0].mxu0
        %v5601 = vpop.f32.mrb[0].mxu0
        %v5602 = vadd.f32 %v660, %v5601
        %v5603 = vpop.f32.mrb[0].mxu0
        %5604 = vmatprep.mubr.bf16.mxu0 0
        %5605 = vmatmul.mubr.bf16.gmra.mrb[0].mxu0 %v5455
        %v5606 = vpop.f32.mrb[0].mxu0
        %v5607 = vadd.f32 %v666, %v5606
        %v5608 = vpop.f32.mrb[0].mxu0
        %v5609 = vpop.f32.mrb[0].mxu0
        %v5610 = vadd.f32 %v670, %v5609
        %v5611 = vpop.f32.mrb[0].mxu0
        %5612 = vmatprep.mubr.bf16.mxu0 0
        %5613 = vmatmul.mubr.bf16.gmra.mrb[0].mxu0 %v5458
        %v5614 = vpop.f32.mrb[0].mxu0
        %v5615 = vadd.f32 %v676, %v5614
        %v5616 = vpop.f32.mrb[0].mxu0
        %v5617 = vpop.f32.mrb[0].mxu0
        %v5618 = vadd.f32 %v680, %v5617
        %v5619 = vpop.f32.mrb[0].mxu0
        %5620 = vdwg.mxu0
        %v5621 = vtanh.pop %v5495
        %v5622 = vtanh.pop %v5498
        %v5623 = vtanh.pop %v5503
        %v5624 = vtanh.pop %v5506
        %v5625 = vtanh.pop %v5511
        %v5626 = vtanh.pop %v5514
        %v5627 = vtanh.pop %v5519
        %v5628 = vtanh.pop %v5522
        %v5629 = vtanh.pop %v5527
        %v5630 = vtanh.pop %v5530
        %v5631 = vtanh.pop %v5535
        %v5632 = vtanh.pop %v5538
        %v5633 = vtanh.pop %v5543
        %v5634 = vtanh.pop %v5546
        %v5635 = vtanh.pop %v5551
        %v5636 = vtanh.pop %v5554
        %v5637 = vtanh.pop %v5559
        %v5638 = vtanh.pop %v5562
        %v5639 = vtanh.pop %v5567
        %v5640 = vtanh.pop %v5570
        %v5641 = vtanh.pop %v5575
        %v5642 = vtanh.pop %v5578
        %v5643 = vtanh.pop %v5583
        %v5644 = vtanh.pop %v5586
        %v5645 = vtanh.pop %v5591
        %v5646 = vtanh.pop %v5594
        %v5647 = vtanh.pop %v5599
        %v5648 = vtanh.pop %v5602
        %v5649 = vtanh.pop %v5607
        %v5650 = vtanh.pop %v5610
        %v5651 = vtanh.pop %v5615
        %v5652 = vtanh.pop %v5618
        %v5653 = vsub.f32 1.0, %v5125
        %v5654 = vsub.f32 1.0, %v5127
        %v5655 = vsub.f32 1.0, %v5129
        %v5656 = vsub.f32 1.0, %v5131
        %v5657 = vsub.f32 1.0, %v5133
        %v5658 = vsub.f32 1.0, %v5135
        %v5659 = vsub.f32 1.0, %v5137
        %v5660 = vsub.f32 1.0, %v5139
        %v5661 = vsub.f32 1.0, %v5141
        %v5662 = vsub.f32 1.0, %v5143
        %v5663 = vsub.f32 1.0, %v5145
        %v5664 = vsub.f32 1.0, %v5147
        %v5665 = vsub.f32 1.0, %v5149
        %v5666 = vsub.f32 1.0, %v5151
        %v5667 = vsub.f32 1.0, %v5153
        %v5668 = vsub.f32 1.0, %v5155
        %v5669 = vsub.f32 1.0, %v5157
        %v5670 = vsub.f32 1.0, %v5159
        %v5671 = vsub.f32 1.0, %v5161
        %v5672 = vsub.f32 1.0, %v5163
        %v5673 = vsub.f32 1.0, %v5165
        %v5674 = vsub.f32 1.0, %v5167
        %v5675 = vsub.f32 1.0, %v5169
        %v5676 = vsub.f32 1.0, %v5171
        %v5677 = vsub.f32 1.0, %v5173
        %v5678 = vsub.f32 1.0, %v5175
        %v5679 = vsub.f32 1.0, %v5177
        %v5680 = vsub.f32 1.0, %v5179
        %v5681 = vsub.f32 1.0, %v5181
        %v5682 = vsub.f32 1.0, %v5183
        %v5683 = vsub.f32 1.0, %v5185
        %v5684 = vsub.f32 1.0, %v5187
        %v5685 = vmul.f32 %v5653, %v4739
        %v5686 = vmul.f32 %v5654, %v4740
        %v5687 = vmul.f32 %v5655, %v4741
        %v5688 = vmul.f32 %v5656, %v4742
        %v5689 = vmul.f32 %v5657, %v4743
        %v5690 = vmul.f32 %v5658, %v4744
        %v5691 = vmul.f32 %v5659, %v4745
        %v5692 = vmul.f32 %v5660, %v4746
        %v5693 = vmul.f32 %v5661, %v4747
        %v5694 = vmul.f32 %v5662, %v4748
        %v5695 = vmul.f32 %v5663, %v4749
        %v5696 = vmul.f32 %v5664, %v4750
        %v5697 = vmul.f32 %v5665, %v4751
        %v5698 = vmul.f32 %v5666, %v4752
        %v5699 = vmul.f32 %v5667, %v4753
        %v5700 = vmul.f32 %v5668, %v4754
        %v5701 = vmul.f32 %v5669, %v4755
        %v5702 = vmul.f32 %v5670, %v4756
        %v5703 = vmul.f32 %v5671, %v4757
        %v5704 = vmul.f32 %v5672, %v4758
        %v5705 = vmul.f32 %v5673, %v4759
        %v5706 = vmul.f32 %v5674, %v4760
        %v5707 = vmul.f32 %v5675, %v4761
        %v5708 = vmul.f32 %v5676, %v4762
        %v5709 = vmul.f32 %v5677, %v4763
        %v5710 = vmul.f32 %v5678, %v4764
        %v5711 = vmul.f32 %v5679, %v4765
        %v5712 = vmul.f32 %v5680, %v4766
        %v5713 = vmul.f32 %v5681, %v4767
        %v5714 = vmul.f32 %v5682, %v4768
        %v5715 = vmul.f32 %v5683, %v4769
        %v5716 = vmul.f32 %v5684, %v4770
        %v5717 = vmul.f32 %v5125, %v5621
        %v5718 = vmul.f32 %v5127, %v5622
        %v5719 = vmul.f32 %v5129, %v5623
        %v5720 = vmul.f32 %v5131, %v5624
        %v5721 = vmul.f32 %v5133, %v5625
        %v5722 = vmul.f32 %v5135, %v5626
        %v5723 = vmul.f32 %v5137, %v5627
        %v5724 = vmul.f32 %v5139, %v5628
        %v5725 = vmul.f32 %v5141, %v5629
        %v5726 = vmul.f32 %v5143, %v5630
        %v5727 = vmul.f32 %v5145, %v5631
        %v5728 = vmul.f32 %v5147, %v5632
        %v5729 = vmul.f32 %v5149, %v5633
        %v5730 = vmul.f32 %v5151, %v5634
        %v5731 = vmul.f32 %v5153, %v5635
        %v5732 = vmul.f32 %v5155, %v5636
        %v5733 = vmul.f32 %v5157, %v5637
        %v5734 = vmul.f32 %v5159, %v5638
        %v5735 = vmul.f32 %v5161, %v5639
        %v5736 = vmul.f32 %v5163, %v5640
        %v5737 = vmul.f32 %v5165, %v5641
        %v5738 = vmul.f32 %v5167, %v5642
        %v5739 = vmul.f32 %v5169, %v5643
        %v5740 = vmul.f32 %v5171, %v5644
        %v5741 = vmul.f32 %v5173, %v5645
        %v5742 = vmul.f32 %v5175, %v5646
        %v5743 = vmul.f32 %v5177, %v5647
        %v5744 = vmul.f32 %v5179, %v5648
        %v5745 = vmul.f32 %v5181, %v5649
        %v5746 = vmul.f32 %v5183, %v5650
        %v5747 = vmul.f32 %v5185, %v5651
        %v5748 = vmul.f32 %v5187, %v5652
        %v5749 = vadd.f32 %v5685, %v5717
        %v5750 = vadd.f32 %v5686, %v5718
        %v5751 = vadd.f32 %v5687, %v5719
        %v5752 = vadd.f32 %v5688, %v5720
        %v5753 = vadd.f32 %v5689, %v5721
        %v5754 = vadd.f32 %v5690, %v5722
        %v5755 = vadd.f32 %v5691, %v5723
        %v5756 = vadd.f32 %v5692, %v5724
        %v5757 = vadd.f32 %v5693, %v5725
        %v5758 = vadd.f32 %v5694, %v5726
        %v5759 = vadd.f32 %v5695, %v5727
        %v5760 = vadd.f32 %v5696, %v5728
        %v5761 = vadd.f32 %v5697, %v5729
        %v5762 = vadd.f32 %v5698, %v5730
        %v5763 = vadd.f32 %v5699, %v5731
        %v5764 = vadd.f32 %v5700, %v5732
        %v5765 = vadd.f32 %v5701, %v5733
        %v5766 = vadd.f32 %v5702, %v5734
        %v5767 = vadd.f32 %v5703, %v5735
        %v5768 = vadd.f32 %v5704, %v5736
        %v5769 = vadd.f32 %v5705, %v5737
        %v5770 = vadd.f32 %v5706, %v5738
        %v5771 = vadd.f32 %v5707, %v5739
        %v5772 = vadd.f32 %v5708, %v5740
        %v5773 = vadd.f32 %v5709, %v5741
        %v5774 = vadd.f32 %v5710, %v5742
        %v5775 = vadd.f32 %v5711, %v5743
        %v5776 = vadd.f32 %v5712, %v5744
        %v5777 = vadd.f32 %v5713, %v5745
        %v5778 = vadd.f32 %v5714, %v5746
        %v5779 = vadd.f32 %v5715, %v5747
        %v5780 = vadd.f32 %v5716, %v5748
        %v5781 = vpack.c.bf16 %v5750, %v5749
        %v5782 = vpack.c.bf16 %v5752, %v5751
        %v5783 = vpack.c.bf16 %v5754, %v5753
        %v5784 = vpack.c.bf16 %v5756, %v5755
        %v5785 = vpack.c.bf16 %v5758, %v5757
        %v5786 = vpack.c.bf16 %v5760, %v5759
        %v5787 = vpack.c.bf16 %v5762, %v5761
        %v5788 = vpack.c.bf16 %v5764, %v5763
        %v5789 = vpack.c.bf16 %v5766, %v5765
        %v5790 = vpack.c.bf16 %v5768, %v5767
        %v5791 = vpack.c.bf16 %v5770, %v5769
        %v5792 = vpack.c.bf16 %v5772, %v5771
        %v5793 = vpack.c.bf16 %v5774, %v5773
        %v5794 = vpack.c.bf16 %v5776, %v5775
        %v5795 = vpack.c.bf16 %v5778, %v5777
        %v5796 = vpack.c.bf16 %v5780, %v5779
        %v5797 = vld [vmem:[%s5] sm:$0xf]
        %v5798 = vld [vmem:[%s5 + $0x4] sm:$0xf]
        %v5799 = vld [vmem:[%s5 + $0x8] sm:$0xf]
        %v5800 = vld [vmem:[%s5 + $0xc] sm:$0xf]
        %v5801 = vld [vmem:[%s5 + $0x10] sm:$0xf]
        %v5802 = vld [vmem:[%s5 + $0x14] sm:$0xf]
        %v5803 = vld [vmem:[%s5 + $0x18] sm:$0xf]
        %v5804 = vld [vmem:[%s5 + $0x1c] sm:$0xf]
        %v5813 = vunpack.c.l.b16 %v5797
        %v5814 = vunpack.c.l.b16 %v5798
        %v5815 = vunpack.c.l.b16 %v5799
        %v5816 = vunpack.c.l.b16 %v5800
        %v5817 = vunpack.c.l.b16 %v5801
        %v5818 = vunpack.c.l.b16 %v5802
        %v5819 = vunpack.c.l.b16 %v5803
        %v5820 = vunpack.c.l.b16 %v5804
        %v5821 = vpack.c.b16 %v5814, %v5813
        %v5822 = vpack.c.b16 %v5816, %v5815
        %v5823 = vpack.c.b16 %v5818, %v5817
        %v5824 = vpack.c.b16 %v5820, %v5819
        %5861 = vrot.lane.b32.xlu0 %v526, 64
        %v5862 = vpop.permute.xlu0 %5861
        %5863 = vrot.lane.b32.xlu0 %v530, 64
        %v5864 = vpop.permute.xlu0 %5863
        %5865 = vrot.lane.b32.xlu0 %v536, 64
        %v5866 = vpop.permute.xlu0 %5865
        %5867 = vrot.lane.b32.xlu0 %v540, 64
        %v5868 = vpop.permute.xlu0 %5867
        %5869 = vrot.lane.b32.xlu0 %v546, 64
        %v5870 = vpop.permute.xlu0 %5869
        %5871 = vrot.lane.b32.xlu0 %v550, 64
        %v5872 = vpop.permute.xlu0 %5871
        %5873 = vrot.lane.b32.xlu0 %v556, 64
        %v5874 = vpop.permute.xlu0 %5873
        %5875 = vrot.lane.b32.xlu0 %v560, 64
        %v5876 = vpop.permute.xlu0 %5875
        %5877 = vrot.lane.b32.xlu0 %v566, 64
        %v5878 = vpop.permute.xlu0 %5877
        %5879 = vrot.lane.b32.xlu0 %v570, 64
        %v5880 = vpop.permute.xlu0 %5879
        %5881 = vrot.lane.b32.xlu0 %v576, 64
        %v5882 = vpop.permute.xlu0 %5881
        %5883 = vrot.lane.b32.xlu0 %v580, 64
        %v5884 = vpop.permute.xlu0 %5883
        %5885 = vrot.lane.b32.xlu0 %v586, 64
        %v5886 = vpop.permute.xlu0 %5885
        %5887 = vrot.lane.b32.xlu0 %v590, 64
        %v5888 = vpop.permute.xlu0 %5887
        %5889 = vrot.lane.b32.xlu0 %v596, 64
        %v5890 = vpop.permute.xlu0 %5889
        %5891 = vrot.lane.b32.xlu0 %v600, 64
        %v5892 = vpop.permute.xlu0 %5891
        %5893 = vrot.lane.b32.xlu0 %v606, 64
        %v5894 = vpop.permute.xlu0 %5893
        %5895 = vrot.lane.b32.xlu0 %v610, 64
        %v5896 = vpop.permute.xlu0 %5895
        %5897 = vrot.lane.b32.xlu0 %v616, 64
        %v5898 = vpop.permute.xlu0 %5897
        %5899 = vrot.lane.b32.xlu0 %v620, 64
        %v5900 = vpop.permute.xlu0 %5899
        %5901 = vrot.lane.b32.xlu0 %v626, 64
        %v5902 = vpop.permute.xlu0 %5901
        %5903 = vrot.lane.b32.xlu0 %v630, 64
        %v5904 = vpop.permute.xlu0 %5903
        %5905 = vrot.lane.b32.xlu0 %v636, 64
        %v5906 = vpop.permute.xlu0 %5905
        %5907 = vrot.lane.b32.xlu0 %v640, 64
        %v5908 = vpop.permute.xlu0 %5907
        %5909 = vrot.lane.b32.xlu0 %v646, 64
        %v5910 = vpop.permute.xlu0 %5909
        %5911 = vrot.lane.b32.xlu0 %v650, 64
        %v5912 = vpop.permute.xlu0 %5911
        %5913 = vrot.lane.b32.xlu0 %v656, 64
        %v5914 = vpop.permute.xlu0 %5913
        %5915 = vrot.lane.b32.xlu0 %v660, 64
        %v5916 = vpop.permute.xlu0 %5915
        %5917 = vrot.lane.b32.xlu0 %v666, 64
        %v5918 = vpop.permute.xlu0 %5917
        %5919 = vrot.lane.b32.xlu0 %v670, 64
        %v5920 = vpop.permute.xlu0 %5919
        %5921 = vrot.lane.b32.xlu0 %v676, 64
        %v5922 = vpop.permute.xlu0 %5921
        %5923 = vrot.lane.b32.xlu0 %v680, 64
        %v5924 = vpop.permute.xlu0 %5923
        %v5958 = vsel %vm722, %v5781, 0
        %v5961 = vsel %vm722, %v5782, 0
        %v5964 = vsel %vm722, %v5783, 0
        %v5967 = vsel %vm722, %v5784, 0
        %v5970 = vsel %vm722, %v5785, 0
        %v5973 = vsel %vm722, %v5786, 0
        %v5976 = vsel %vm722, %v5787, 0
        %v5979 = vsel %vm722, %v5788, 0
        %v5982 = vsel %vm722, %v5789, 0
        %v5985 = vsel %vm722, %v5790, 0
        %v5988 = vsel %vm722, %v5791, 0
        %v5991 = vsel %vm722, %v5792, 0
        %v5994 = vsel %vm722, %v5793, 0
        %v5997 = vsel %vm722, %v5794, 0
        %v6000 = vsel %vm722, %v5795, 0
        %v6003 = vsel %vm722, %v5796, 0
        %6005 = vmatprep.subr.bf16.mxu0 0
        %6006 = vmatpush1.bf16.msra.mxu0 %v5821
        %6007 = vmatprep.subr.bf16.mxu0 0
        %6008 = vmatpush1.bf16.msra.mxu0 %v5822
        %6009 = vmatprep.subr.bf16.mxu0 0
        %6010 = vmatpush1.bf16.msra.mxu0 %v5823
        %6011 = vmatprep.subr.bf16.mxu0 0
        %6012 = vmatpush1.bf16.msra.mxu0 %v5824
        %6013 = vmatprep.subr.bf16.mxu0 0
        %6014 = vmatpush1.bf16.msra.mxu0 0
        %6015 = vmatprep.subr.bf16.mxu0 0
        %6016 = vmatpush1.bf16.msra.mxu0 0
        %6017 = vmatprep.subr.bf16.mxu0 0
        %6018 = vmatpush1.bf16.msra.mxu0 0
        %6019 = vmatprep.subr.bf16.mxu0 0
        %6020 = vmatpush1.bf16.msra.mxu0 0
        %6021 = vmatprep.subr.bf16.mxu0 0
        %6022 = vmatpush1.bf16.msra.mxu0 0
        %6023 = vmatprep.subr.bf16.mxu0 0
        %6024 = vmatpush1.bf16.msra.mxu0 0
        %6025 = vmatprep.subr.bf16.mxu0 0
        %6026 = vmatpush1.bf16.msra.mxu0 0
        %6027 = vmatprep.subr.bf16.mxu0 0
        %6028 = vmatpush1.bf16.msra.mxu0 0
        %6029 = vmatprep.subr.bf16.mxu0 0
        %6030 = vmatpush1.bf16.msra.mxu0 0
        %6031 = vmatprep.subr.bf16.mxu0 0
        %6032 = vmatpush1.bf16.msra.mxu0 0
        %6033 = vmatprep.subr.bf16.mxu0 0
        %6034 = vmatpush1.bf16.msra.mxu0 0
        %6035 = vmatprep.subr.bf16.mxu0 0
        %6036 = vmatpush1.bf16.msra.mxu0 0
        %6037 = vmatprep.mubr.bf16.mxu0 0
        %6038 = vmatmul.mubr.bf16.gmra.mrb[0].mxu0 %v5958
        %v6039 = vpop.f32.mrb[0].mxu0
        %v6040 = vadd.f32 %v5862, %v6039
        %v6041 = vpop.f32.mrb[0].mxu0
        %v6042 = vpop.f32.mrb[0].mxu0
        %v6043 = vadd.f32 %v5864, %v6042
        %v6044 = vpop.f32.mrb[0].mxu0
        %6045 = vmatprep.mubr.bf16.mxu0 0
        %6046 = vmatmul.mubr.bf16.gmra.mrb[0].mxu0 %v5961
        %v6047 = vpop.f32.mrb[0].mxu0
        %v6048 = vadd.f32 %v5866, %v6047
        %v6049 = vpop.f32.mrb[0].mxu0
        %v6050 = vpop.f32.mrb[0].mxu0
        %v6051 = vadd.f32 %v5868, %v6050
        %v6052 = vpop.f32.mrb[0].mxu0
        %6053 = vmatprep.mubr.bf16.mxu0 0
        %6054 = vmatmul.mubr.bf16.gmra.mrb[0].mxu0 %v5964
        %v6055 = vpop.f32.mrb[0].mxu0
        %v6056 = vadd.f32 %v5870, %v6055
        %v6057 = vpop.f32.mrb[0].mxu0
        %v6058 = vpop.f32.mrb[0].mxu0
        %v6059 = vadd.f32 %v5872, %v6058
        %v6060 = vpop.f32.mrb[0].mxu0
        %6061 = vmatprep.mubr.bf16.mxu0 0
        %6062 = vmatmul.mubr.bf16.gmra.mrb[0].mxu0 %v5967
        %v6063 = vpop.f32.mrb[0].mxu0
        %v6064 = vadd.f32 %v5874, %v6063
        %v6065 = vpop.f32.mrb[0].mxu0
        %v6066 = vpop.f32.mrb[0].mxu0
        %v6067 = vadd.f32 %v5876, %v6066
        %v6068 = vpop.f32.mrb[0].mxu0
        %6069 = vmatprep.mubr.bf16.mxu0 0
        %6070 = vmatmul.mubr.bf16.gmra.mrb[0].mxu0 %v5970
        %v6071 = vpop.f32.mrb[0].mxu0
        %v6072 = vadd.f32 %v5878, %v6071
        %v6073 = vpop.f32.mrb[0].mxu0
        %v6074 = vpop.f32.mrb[0].mxu0
        %v6075 = vadd.f32 %v5880, %v6074
        %v6076 = vpop.f32.mrb[0].mxu0
        %6077 = vmatprep.mubr.bf16.mxu0 0
        %6078 = vmatmul.mubr.bf16.gmra.mrb[0].mxu0 %v5973
        %v6079 = vpop.f32.mrb[0].mxu0
        %v6080 = vadd.f32 %v5882, %v6079
        %v6081 = vpop.f32.mrb[0].mxu0
        %v6082 = vpop.f32.mrb[0].mxu0
        %v6083 = vadd.f32 %v5884, %v6082
        %v6084 = vpop.f32.mrb[0].mxu0
        %6085 = vmatprep.mubr.bf16.mxu0 0
        %6086 = vmatmul.mubr.bf16.gmra.mrb[0].mxu0 %v5976
        %v6087 = vpop.f32.mrb[0].mxu0
        %v6088 = vadd.f32 %v5886, %v6087
        %v6089 = vpop.f32.mrb[0].mxu0
        %v6090 = vpop.f32.mrb[0].mxu0
        %v6091 = vadd.f32 %v5888, %v6090
        %v6092 = vpop.f32.mrb[0].mxu0
        %6093 = vmatprep.mubr.bf16.mxu0 0
        %6094 = vmatmul.mubr.bf16.gmra.mrb[0].mxu0 %v5979
        %v6095 = vpop.f32.mrb[0].mxu0
        %v6096 = vadd.f32 %v5890, %v6095
        %v6097 = vpop.f32.mrb[0].mxu0
        %v6098 = vpop.f32.mrb[0].mxu0
        %v6099 = vadd.f32 %v5892, %v6098
        %v6100 = vpop.f32.mrb[0].mxu0
        %6101 = vmatprep.mubr.bf16.mxu0 0
        %6102 = vmatmul.mubr.bf16.gmra.mrb[0].mxu0 %v5982
        %v6103 = vpop.f32.mrb[0].mxu0
        %v6104 = vadd.f32 %v5894, %v6103
        %v6105 = vpop.f32.mrb[0].mxu0
        %v6106 = vpop.f32.mrb[0].mxu0
        %v6107 = vadd.f32 %v5896, %v6106
        %v6108 = vpop.f32.mrb[0].mxu0
        %6109 = vmatprep.mubr.bf16.mxu0 0
        %6110 = vmatmul.mubr.bf16.gmra.mrb[0].mxu0 %v5985
        %v6111 = vpop.f32.mrb[0].mxu0
        %v6112 = vadd.f32 %v5898, %v6111
        %v6113 = vpop.f32.mrb[0].mxu0
        %v6114 = vpop.f32.mrb[0].mxu0
        %v6115 = vadd.f32 %v5900, %v6114
        %v6116 = vpop.f32.mrb[0].mxu0
        %6117 = vmatprep.mubr.bf16.mxu0 0
        %6118 = vmatmul.mubr.bf16.gmra.mrb[0].mxu0 %v5988
        %v6119 = vpop.f32.mrb[0].mxu0
        %v6120 = vadd.f32 %v5902, %v6119
        %v6121 = vpop.f32.mrb[0].mxu0
        %v6122 = vpop.f32.mrb[0].mxu0
        %v6123 = vadd.f32 %v5904, %v6122
        %v6124 = vpop.f32.mrb[0].mxu0
        %6125 = vmatprep.mubr.bf16.mxu0 0
        %6126 = vmatmul.mubr.bf16.gmra.mrb[0].mxu0 %v5991
        %v6127 = vpop.f32.mrb[0].mxu0
        %v6128 = vadd.f32 %v5906, %v6127
        %v6129 = vpop.f32.mrb[0].mxu0
        %v6130 = vpop.f32.mrb[0].mxu0
        %v6131 = vadd.f32 %v5908, %v6130
        %v6132 = vpop.f32.mrb[0].mxu0
        %6133 = vmatprep.mubr.bf16.mxu0 0
        %6134 = vmatmul.mubr.bf16.gmra.mrb[0].mxu0 %v5994
        %v6135 = vpop.f32.mrb[0].mxu0
        %v6136 = vadd.f32 %v5910, %v6135
        %v6137 = vpop.f32.mrb[0].mxu0
        %v6138 = vpop.f32.mrb[0].mxu0
        %v6139 = vadd.f32 %v5912, %v6138
        %v6140 = vpop.f32.mrb[0].mxu0
        %6141 = vmatprep.mubr.bf16.mxu0 0
        %6142 = vmatmul.mubr.bf16.gmra.mrb[0].mxu0 %v5997
        %v6143 = vpop.f32.mrb[0].mxu0
        %v6144 = vadd.f32 %v5914, %v6143
        %v6145 = vpop.f32.mrb[0].mxu0
        %v6146 = vpop.f32.mrb[0].mxu0
        %v6147 = vadd.f32 %v5916, %v6146
        %v6148 = vpop.f32.mrb[0].mxu0
        %6149 = vmatprep.mubr.bf16.mxu0 0
        %6150 = vmatmul.mubr.bf16.gmra.mrb[0].mxu0 %v6000
        %v6151 = vpop.f32.mrb[0].mxu0
        %v6152 = vadd.f32 %v5918, %v6151
        %v6153 = vpop.f32.mrb[0].mxu0
        %v6154 = vpop.f32.mrb[0].mxu0
        %v6155 = vadd.f32 %v5920, %v6154
        %v6156 = vpop.f32.mrb[0].mxu0
        %6157 = vmatprep.mubr.bf16.mxu0 0
        %6158 = vmatmul.mubr.bf16.gmra.mrb[0].mxu0 %v6003
        %v6159 = vpop.f32.mrb[0].mxu0
        %v6160 = vadd.f32 %v5922, %v6159
        %v6161 = vpop.f32.mrb[0].mxu0
        %v6162 = vpop.f32.mrb[0].mxu0
        %v6163 = vadd.f32 %v5924, %v6162
        %v6164 = vpop.f32.mrb[0].mxu0
        %6165 = vdwg.mxu0
        %v6166 = vmul.f32 %v6040, 0.5
        %v6167 = vmul.f32 %v6043, 0.5
        %v6168 = vmul.f32 %v6048, 0.5
        %v6169 = vmul.f32 %v6051, 0.5
        %v6170 = vmul.f32 %v6056, 0.5
        %v6171 = vmul.f32 %v6059, 0.5
        %v6172 = vmul.f32 %v6064, 0.5
        %v6173 = vmul.f32 %v6067, 0.5
        %v6174 = vmul.f32 %v6072, 0.5
        %v6175 = vmul.f32 %v6075, 0.5
        %v6176 = vmul.f32 %v6080, 0.5
        %v6177 = vmul.f32 %v6083, 0.5
        %v6178 = vmul.f32 %v6088, 0.5
        %v6179 = vmul.f32 %v6091, 0.5
        %v6180 = vmul.f32 %v6096, 0.5
        %v6181 = vmul.f32 %v6099, 0.5
        %v6182 = vmul.f32 %v6104, 0.5
        %v6183 = vmul.f32 %v6107, 0.5
        %v6184 = vmul.f32 %v6112, 0.5
        %v6185 = vmul.f32 %v6115, 0.5
        %v6186 = vmul.f32 %v6120, 0.5
        %v6187 = vmul.f32 %v6123, 0.5
        %v6188 = vmul.f32 %v6128, 0.5
        %v6189 = vmul.f32 %v6131, 0.5
        %v6190 = vmul.f32 %v6136, 0.5
        %v6191 = vmul.f32 %v6139, 0.5
        %v6192 = vmul.f32 %v6144, 0.5
        %v6193 = vmul.f32 %v6147, 0.5
        %v6194 = vmul.f32 %v6152, 0.5
        %v6195 = vmul.f32 %v6155, 0.5
        %v6196 = vmul.f32 %v6160, 0.5
        %v6197 = vmul.f32 %v6163, 0.5
        %v6198 = vmul.f32 %v6040, 0.70710677
        %v6199 = vmul.f32 %v6043, 0.70710677
        %v6200 = vmul.f32 %v6048, 0.70710677
        %v6201 = vmul.f32 %v6051, 0.70710677
        %v6202 = vmul.f32 %v6056, 0.70710677
        %v6203 = vmul.f32 %v6059, 0.70710677
        %v6204 = vmul.f32 %v6064, 0.70710677
        %v6205 = vmul.f32 %v6067, 0.70710677
        %v6206 = vmul.f32 %v6072, 0.70710677
        %v6207 = vmul.f32 %v6075, 0.70710677
        %v6208 = vmul.f32 %v6080, 0.70710677
        %v6209 = vmul.f32 %v6083, 0.70710677
        %v6210 = vmul.f32 %v6088, 0.70710677
        %v6211 = vmul.f32 %v6091, 0.70710677
        %v6212 = vmul.f32 %v6096, 0.70710677
        %v6213 = vmul.f32 %v6099, 0.70710677
        %v6214 = vmul.f32 %v6104, 0.70710677
        %v6215 = vmul.f32 %v6107, 0.70710677
        %v6216 = vmul.f32 %v6112, 0.70710677
        %v6217 = vmul.f32 %v6115, 0.70710677
        %v6218 = vmul.f32 %v6120, 0.70710677
        %v6219 = vmul.f32 %v6123, 0.70710677
        %v6220 = vmul.f32 %v6128, 0.70710677
        %v6221 = vmul.f32 %v6131, 0.70710677
        %v6222 = vmul.f32 %v6136, 0.70710677
        %v6223 = vmul.f32 %v6139, 0.70710677
        %v6224 = vmul.f32 %v6144, 0.70710677
        %v6225 = vmul.f32 %v6147, 0.70710677
        %v6226 = vmul.f32 %v6152, 0.70710677
        %v6227 = vmul.f32 %v6155, 0.70710677
        %v6228 = vmul.f32 %v6160, 0.70710677
        %v6229 = vmul.f32 %v6163, 0.70710677
        %v6230 = verf.f32.pop %v6198
        %v6231 = verf.f32.pop %v6199
        %v6232 = verf.f32.pop %v6200
        %v6233 = verf.f32.pop %v6201
        %v6234 = verf.f32.pop %v6202
        %v6235 = verf.f32.pop %v6203
        %v6236 = verf.f32.pop %v6204
        %v6237 = verf.f32.pop %v6205
        %v6238 = verf.f32.pop %v6206
        %v6239 = verf.f32.pop %v6207
        %v6240 = verf.f32.pop %v6208
        %v6241 = verf.f32.pop %v6209
        %v6242 = verf.f32.pop %v6210
        %v6243 = verf.f32.pop %v6211
        %v6244 = verf.f32.pop %v6212
        %v6245 = verf.f32.pop %v6213
        %v6246 = verf.f32.pop %v6214
        %v6247 = verf.f32.pop %v6215
        %v6248 = verf.f32.pop %v6216
        %v6249 = verf.f32.pop %v6217
        %v6250 = verf.f32.pop %v6218
        %v6251 = verf.f32.pop %v6219
        %v6252 = verf.f32.pop %v6220
        %v6253 = verf.f32.pop %v6221
        %v6254 = verf.f32.pop %v6222
        %v6255 = verf.f32.pop %v6223
        %v6256 = verf.f32.pop %v6224
        %v6257 = verf.f32.pop %v6225
        %v6258 = verf.f32.pop %v6226
        %v6259 = verf.f32.pop %v6227
        %v6260 = verf.f32.pop %v6228
        %v6261 = verf.f32.pop %v6229
        %v6262 = vadd.f32 %v6230, 1.0
        %v6263 = vadd.f32 %v6231, 1.0
        %v6264 = vadd.f32 %v6232, 1.0
        %v6265 = vadd.f32 %v6233, 1.0
        %v6266 = vadd.f32 %v6234, 1.0
        %v6267 = vadd.f32 %v6235, 1.0
        %v6268 = vadd.f32 %v6236, 1.0
        %v6269 = vadd.f32 %v6237, 1.0
        %v6270 = vadd.f32 %v6238, 1.0
        %v6271 = vadd.f32 %v6239, 1.0
        %v6272 = vadd.f32 %v6240, 1.0
        %v6273 = vadd.f32 %v6241, 1.0
        %v6274 = vadd.f32 %v6242, 1.0
        %v6275 = vadd.f32 %v6243, 1.0
        %v6276 = vadd.f32 %v6244, 1.0
        %v6277 = vadd.f32 %v6245, 1.0
        %v6278 = vadd.f32 %v6246, 1.0
        %v6279 = vadd.f32 %v6247, 1.0
        %v6280 = vadd.f32 %v6248, 1.0
        %v6281 = vadd.f32 %v6249, 1.0
        %v6282 = vadd.f32 %v6250, 1.0
        %v6283 = vadd.f32 %v6251, 1.0
        %v6284 = vadd.f32 %v6252, 1.0
        %v6285 = vadd.f32 %v6253, 1.0
        %v6286 = vadd.f32 %v6254, 1.0
        %v6287 = vadd.f32 %v6255, 1.0
        %v6288 = vadd.f32 %v6256, 1.0
        %v6289 = vadd.f32 %v6257, 1.0
        %v6290 = vadd.f32 %v6258, 1.0
        %v6291 = vadd.f32 %v6259, 1.0
        %v6292 = vadd.f32 %v6260, 1.0
        %v6293 = vadd.f32 %v6261, 1.0
        %v6294 = vmul.f32 %v6166, %v6262
        %v6295 = vmul.f32 %v6167, %v6263
        %v6296 = vmul.f32 %v6168, %v6264
        %v6297 = vmul.f32 %v6169, %v6265
        %v6298 = vmul.f32 %v6170, %v6266
        %v6299 = vmul.f32 %v6171, %v6267
        %v6300 = vmul.f32 %v6172, %v6268
        %v6301 = vmul.f32 %v6173, %v6269
        %v6302 = vmul.f32 %v6174, %v6270
        %v6303 = vmul.f32 %v6175, %v6271
        %v6304 = vmul.f32 %v6176, %v6272
        %v6305 = vmul.f32 %v6177, %v6273
        %v6306 = vmul.f32 %v6178, %v6274
        %v6307 = vmul.f32 %v6179, %v6275
        %v6308 = vmul.f32 %v6180, %v6276
        %v6309 = vmul.f32 %v6181, %v6277
        %v6310 = vmul.f32 %v6182, %v6278
        %v6311 = vmul.f32 %v6183, %v6279
        %v6312 = vmul.f32 %v6184, %v6280
        %v6313 = vmul.f32 %v6185, %v6281
        %v6314 = vmul.f32 %v6186, %v6282
        %v6315 = vmul.f32 %v6187, %v6283
        %v6316 = vmul.f32 %v6188, %v6284
        %v6317 = vmul.f32 %v6189, %v6285
        %v6318 = vmul.f32 %v6190, %v6286
        %v6319 = vmul.f32 %v6191, %v6287
        %v6320 = vmul.f32 %v6192, %v6288
        %v6321 = vmul.f32 %v6193, %v6289
        %v6322 = vmul.f32 %v6194, %v6290
        %v6323 = vmul.f32 %v6195, %v6291
        %v6324 = vmul.f32 %v6196, %v6292
        %v6325 = vmul.f32 %v6197, %v6293
        %v6326 = vpack.c.bf16 %v6295, %v6294
        %v6327 = vpack.c.bf16 %v6297, %v6296
        %v6328 = vpack.c.bf16 %v6299, %v6298
        %v6329 = vpack.c.bf16 %v6301, %v6300
        %v6330 = vpack.c.bf16 %v6303, %v6302
        %v6331 = vpack.c.bf16 %v6305, %v6304
        %v6332 = vpack.c.bf16 %v6307, %v6306
        %v6333 = vpack.c.bf16 %v6309, %v6308
        %v6334 = vpack.c.bf16 %v6311, %v6310
        %v6335 = vpack.c.bf16 %v6313, %v6312
        %v6336 = vpack.c.bf16 %v6315, %v6314
        %v6337 = vpack.c.bf16 %v6317, %v6316
        %v6338 = vpack.c.bf16 %v6319, %v6318
        %v6339 = vpack.c.bf16 %v6321, %v6320
        %v6340 = vpack.c.bf16 %v6323, %v6322
        %v6341 = vpack.c.bf16 %v6325, %v6324
        %v6342 = vld [vmem:[%s6] sm:$0xf]
        %v6343 = vld [vmem:[%s6 + $0x4] sm:$0xf]
        %v6344 = vld [vmem:[%s7] sm:$0x1]
        %v6346 = vlaneseq
        %v6347 = vshrl.u32 %v6346, 7
        %v6348 = vsub.s32 0, %v6347
        %v6349 = vrot.slane %v6344, %v6348
        %v6353 = vunpack.c.l.b16 %v6342
        %v6354 = vunpack.c.l.b16 %v6343
        %v6355 = vpack.c.b16 %v6354, %v6353
        %vm6357 = vcmask 130048
        %v6359 = vsel %vm6357, %v6326, 0
        %v6362 = vsel %vm6357, %v6327, 0
        %v6365 = vsel %vm6357, %v6328, 0
        %v6368 = vsel %vm6357, %v6329, 0
        %v6371 = vsel %vm6357, %v6330, 0
        %v6374 = vsel %vm6357, %v6331, 0
        %v6377 = vsel %vm6357, %v6332, 0
        %v6380 = vsel %vm6357, %v6333, 0
        %v6383 = vsel %vm6357, %v6334, 0
        %v6386 = vsel %vm6357, %v6335, 0
        %v6389 = vsel %vm6357, %v6336, 0
        %v6392 = vsel %vm6357, %v6337, 0
        %v6395 = vsel %vm6357, %v6338, 0
        %v6398 = vsel %vm6357, %v6339, 0
        %v6401 = vsel %vm6357, %v6340, 0
        %v6404 = vsel %vm6357, %v6341, 0
        %6406 = vmatprep.subr.bf16.mxu0 0
        %6407 = vmatpush1.bf16.msra.mxu0 %v6355
        %6408 = vmatprep.subr.bf16.mxu0 0
        %6409 = vmatpush1.bf16.msra.mxu0 0
        %6410 = vmatprep.subr.bf16.mxu0 0
        %6411 = vmatpush1.bf16.msra.mxu0 0
        %6412 = vmatprep.subr.bf16.mxu0 0
        %6413 = vmatpush1.bf16.msra.mxu0 0
        %6414 = vmatprep.subr.bf16.mxu0 0
        %6415 = vmatpush1.bf16.msra.mxu0 0
        %6416 = vmatprep.subr.bf16.mxu0 0
        %6417 = vmatpush1.bf16.msra.mxu0 0
        %6418 = vmatprep.subr.bf16.mxu0 0
        %6419 = vmatpush1.bf16.msra.mxu0 0
        %6420 = vmatprep.subr.bf16.mxu0 0
        %6421 = vmatpush1.bf16.msra.mxu0 0
        %6422 = vmatprep.subr.bf16.mxu0 0
        %6423 = vmatpush1.bf16.msra.mxu0 0
        %6424 = vmatprep.subr.bf16.mxu0 0
        %6425 = vmatpush1.bf16.msra.mxu0 0
        %6426 = vmatprep.subr.bf16.mxu0 0
        %6427 = vmatpush1.bf16.msra.mxu0 0
        %6428 = vmatprep.subr.bf16.mxu0 0
        %6429 = vmatpush1.bf16.msra.mxu0 0
        %6430 = vmatprep.subr.bf16.mxu0 0
        %6431 = vmatpush1.bf16.msra.mxu0 0
        %6432 = vmatprep.subr.bf16.mxu0 0
        %6433 = vmatpush1.bf16.msra.mxu0 0
        %6434 = vmatprep.subr.bf16.mxu0 0
        %6435 = vmatpush1.bf16.msra.mxu0 0
        %6436 = vmatprep.subr.bf16.mxu0 0
        %6437 = vmatpush1.bf16.msra.mxu0 0
        %6438 = vmatprep.mubr.bf16.mxu0 0
        %6439 = vmatmul.mubr.bf16.gmra.mrb[0].mxu0 %v6359
        %v6440 = vpop.f32.mrb[0].mxu0
        %v6441 = vadd.f32 %v6349, %v6440
        %v6442 = vpop.f32.mrb[0].mxu0
        %v6443 = vpop.f32.mrb[0].mxu0
        %v6444 = vadd.f32 %v6349, %v6443
        %v6445 = vpop.f32.mrb[0].mxu0
        %6446 = vmatprep.mubr.bf16.mxu0 0
        %6447 = vmatmul.mubr.bf16.gmra.mrb[0].mxu0 %v6362
        %v6448 = vpop.f32.mrb[0].mxu0
        %v6449 = vadd.f32 %v6349, %v6448
        %v6450 = vpop.f32.mrb[0].mxu0
        %v6451 = vpop.f32.mrb[0].mxu0
        %v6452 = vadd.f32 %v6349, %v6451
        %v6453 = vpop.f32.mrb[0].mxu0
        %6454 = vmatprep.mubr.bf16.mxu0 0
        %6455 = vmatmul.mubr.bf16.gmra.mrb[0].mxu0 %v6365
        %v6456 = vpop.f32.mrb[0].mxu0
        %v6457 = vadd.f32 %v6349, %v6456
        %v6458 = vpop.f32.mrb[0].mxu0
        %v6459 = vpop.f32.mrb[0].mxu0
        %v6460 = vadd.f32 %v6349, %v6459
        %v6461 = vpop.f32.mrb[0].mxu0
        %6462 = vmatprep.mubr.bf16.mxu0 0
        %6463 = vmatmul.mubr.bf16.gmra.mrb[0].mxu0 %v6368
        %v6464 = vpop.f32.mrb[0].mxu0
        %v6465 = vadd.f32 %v6349, %v6464
        %v6466 = vpop.f32.mrb[0].mxu0
        %v6467 = vpop.f32.mrb[0].mxu0
        %v6468 = vadd.f32 %v6349, %v6467
        %v6469 = vpop.f32.mrb[0].mxu0
        %6470 = vmatprep.mubr.bf16.mxu0 0
        %6471 = vmatmul.mubr.bf16.gmra.mrb[0].mxu0 %v6371
        %v6472 = vpop.f32.mrb[0].mxu0
        %v6473 = vadd.f32 %v6349, %v6472
        %v6474 = vpop.f32.mrb[0].mxu0
        %v6475 = vpop.f32.mrb[0].mxu0
        %v6476 = vadd.f32 %v6349, %v6475
        %v6477 = vpop.f32.mrb[0].mxu0
        %6478 = vmatprep.mubr.bf16.mxu0 0
        %6479 = vmatmul.mubr.bf16.gmra.mrb[0].mxu0 %v6374
        %v6480 = vpop.f32.mrb[0].mxu0
        %v6481 = vadd.f32 %v6349, %v6480
        %v6482 = vpop.f32.mrb[0].mxu0
        %v6483 = vpop.f32.mrb[0].mxu0
        %v6484 = vadd.f32 %v6349, %v6483
        %v6485 = vpop.f32.mrb[0].mxu0
        %6486 = vmatprep.mubr.bf16.mxu0 0
        %6487 = vmatmul.mubr.bf16.gmra.mrb[0].mxu0 %v6377
        %v6488 = vpop.f32.mrb[0].mxu0
        %v6489 = vadd.f32 %v6349, %v6488
        %v6490 = vpop.f32.mrb[0].mxu0
        %v6491 = vpop.f32.mrb[0].mxu0
        %v6492 = vadd.f32 %v6349, %v6491
        %v6493 = vpop.f32.mrb[0].mxu0
        %6494 = vmatprep.mubr.bf16.mxu0 0
        %6495 = vmatmul.mubr.bf16.gmra.mrb[0].mxu0 %v6380
        %v6496 = vpop.f32.mrb[0].mxu0
        %v6497 = vadd.f32 %v6349, %v6496
        %v6498 = vpop.f32.mrb[0].mxu0
        %v6499 = vpop.f32.mrb[0].mxu0
        %v6500 = vadd.f32 %v6349, %v6499
        %v6501 = vpop.f32.mrb[0].mxu0
        %6502 = vmatprep.mubr.bf16.mxu0 0
        %6503 = vmatmul.mubr.bf16.gmra.mrb[0].mxu0 %v6383
        %v6504 = vpop.f32.mrb[0].mxu0
        %v6505 = vadd.f32 %v6349, %v6504
        %v6506 = vpop.f32.mrb[0].mxu0
        %v6507 = vpop.f32.mrb[0].mxu0
        %v6508 = vadd.f32 %v6349, %v6507
        %v6509 = vpop.f32.mrb[0].mxu0
        %6510 = vmatprep.mubr.bf16.mxu0 0
        %6511 = vmatmul.mubr.bf16.gmra.mrb[0].mxu0 %v6386
        %v6512 = vpop.f32.mrb[0].mxu0
        %v6513 = vadd.f32 %v6349, %v6512
        %v6514 = vpop.f32.mrb[0].mxu0
        %v6515 = vpop.f32.mrb[0].mxu0
        %v6516 = vadd.f32 %v6349, %v6515
        %v6517 = vpop.f32.mrb[0].mxu0
        %6518 = vmatprep.mubr.bf16.mxu0 0
        %6519 = vmatmul.mubr.bf16.gmra.mrb[0].mxu0 %v6389
        %v6520 = vpop.f32.mrb[0].mxu0
        %v6521 = vadd.f32 %v6349, %v6520
        %v6522 = vpop.f32.mrb[0].mxu0
        %v6523 = vpop.f32.mrb[0].mxu0
        %v6524 = vadd.f32 %v6349, %v6523
        %v6525 = vpop.f32.mrb[0].mxu0
        %6526 = vmatprep.mubr.bf16.mxu0 0
        %6527 = vmatmul.mubr.bf16.gmra.mrb[0].mxu0 %v6392
        %v6528 = vpop.f32.mrb[0].mxu0
        %v6529 = vadd.f32 %v6349, %v6528
        %v6530 = vpop.f32.mrb[0].mxu0
        %v6531 = vpop.f32.mrb[0].mxu0
        %v6532 = vadd.f32 %v6349, %v6531
        %v6533 = vpop.f32.mrb[0].mxu0
        %6534 = vmatprep.mubr.bf16.mxu0 0
        %6535 = vmatmul.mubr.bf16.gmra.mrb[0].mxu0 %v6395
        %v6536 = vpop.f32.mrb[0].mxu0
        %v6537 = vadd.f32 %v6349, %v6536
        %v6538 = vpop.f32.mrb[0].mxu0
        %v6539 = vpop.f32.mrb[0].mxu0
        %v6540 = vadd.f32 %v6349, %v6539
        %v6541 = vpop.f32.mrb[0].mxu0
        %6542 = vmatprep.mubr.bf16.mxu0 0
        %6543 = vmatmul.mubr.bf16.gmra.mrb[0].mxu0 %v6398
        %v6544 = vpop.f32.mrb[0].mxu0
        %v6545 = vadd.f32 %v6349, %v6544
        %v6546 = vpop.f32.mrb[0].mxu0
        %v6547 = vpop.f32.mrb[0].mxu0
        %v6548 = vadd.f32 %v6349, %v6547
        %v6549 = vpop.f32.mrb[0].mxu0
        %6550 = vmatprep.mubr.bf16.mxu0 0
        %6551 = vmatmul.mubr.bf16.gmra.mrb[0].mxu0 %v6401
        %v6552 = vpop.f32.mrb[0].mxu0
        %v6553 = vadd.f32 %v6349, %v6552
        %v6554 = vpop.f32.mrb[0].mxu0
        %v6555 = vpop.f32.mrb[0].mxu0
        %v6556 = vadd.f32 %v6349, %v6555
        %v6557 = vpop.f32.mrb[0].mxu0
        %6558 = vmatprep.mubr.bf16.mxu0 0
        %6559 = vmatmul.mubr.bf16.gmra.mrb[0].mxu0 %v6404
        %v6560 = vpop.f32.mrb[0].mxu0
        %v6561 = vadd.f32 %v6349, %v6560
        %v6562 = vpop.f32.mrb[0].mxu0
        %v6563 = vpop.f32.mrb[0].mxu0
        %v6564 = vadd.f32 %v6349, %v6563
        %v6565 = vpop.f32.mrb[0].mxu0
        %6566 = vdwg.mxu0
        %6567 = vst [vmem:[%s299] sm:$0xff] %v6441
        %6568 = vst [vmem:[%s299 + $0x8] sm:$0xff] %v6444
        %6569 = vst [vmem:[%s299 + $0x10] sm:$0xff] %v6449
        %6570 = vst [vmem:[%s299 + $0x18] sm:$0xff] %v6452
        %6571 = vst [vmem:[%s299 + $0x20] sm:$0xff] %v6457
        %6572 = vst [vmem:[%s299 + $0x28] sm:$0xff] %v6460
        %6573 = vst [vmem:[%s299 + $0x30] sm:$0xff] %v6465
        %6574 = vst [vmem:[%s299 + $0x38] sm:$0xff] %v6468
        %6575 = vst [vmem:[%s299 + $0x40] sm:$0xff] %v6473
        %6576 = vst [vmem:[%s299 + $0x48] sm:$0xff] %v6476
        %6577 = vst [vmem:[%s299 + $0x50] sm:$0xff] %v6481
        %6578 = vst [vmem:[%s299 + $0x58] sm:$0xff] %v6484
        %6579 = vst [vmem:[%s299 + $0x60] sm:$0xff] %v6489
        %6580 = vst [vmem:[%s299 + $0x68] sm:$0xff] %v6492
        %6581 = vst [vmem:[%s299 + $0x70] sm:$0xff] %v6497
        %6582 = vst [vmem:[%s299 + $0x78] sm:$0xff] %v6500
        %6583 = vst [vmem:[%s299 + $0x80] sm:$0xff] %v6505
        %6584 = vst [vmem:[%s299 + $0x88] sm:$0xff] %v6508
        %6585 = vst [vmem:[%s299 + $0x90] sm:$0xff] %v6513
        %6586 = vst [vmem:[%s299 + $0x98] sm:$0xff] %v6516
        %6587 = vst [vmem:[%s299 + $0xa0] sm:$0xff] %v6521
        %6588 = vst [vmem:[%s299 + $0xa8] sm:$0xff] %v6524
        %6589 = vst [vmem:[%s299 + $0xb0] sm:$0xff] %v6529
        %6590 = vst [vmem:[%s299 + $0xb8] sm:$0xff] %v6532
        %6591 = vst [vmem:[%s299 + $0xc0] sm:$0xff] %v6537
        %6592 = vst [vmem:[%s299 + $0xc8] sm:$0xff] %v6540
        %6593 = vst [vmem:[%s299 + $0xd0] sm:$0xff] %v6545
        %6594 = vst [vmem:[%s299 + $0xd8] sm:$0xff] %v6548
        %6595 = vst [vmem:[%s299 + $0xe0] sm:$0xff] %v6553
        %6596 = vst [vmem:[%s299 + $0xe8] sm:$0xff] %v6556
        %6597 = vst [vmem:[%s299 + $0xf0] sm:$0xff] %v6561
        %6598 = vst [vmem:[%s299 + $0xf8] sm:$0xff] %v6564
        %s6599 = sand.u32 %s203, 1
        %s6600 = scalar_lea.sflag [#allocation3], %s6599
        %s6601 = sand.u32 %s203, 1
        %s6602 = smul.addr %s6601, 256
        %s6603 = scalar_lea.vmem [#allocation2], %s6602
        // Predicated region
        $region53: #{tpu_custom_call.1} parent=51 // pred_check
          %p6604 = pneg %p213
        $region54: #{tpu_custom_call.1} parent=51 // pred_check_branch
          %6606 = sbr.rel (%p6604) target = $region56
        $region55: #{tpu_custom_call.1} parent=51 // pred_region
          %s6607 = smul.u32 32, %s22
          %s6609 = ssub.s32 4096, 4096
          %6610 = vsyncadd %s6600, %s6609
          %s6611 = smul.addr %s6607, 128
          %s6612 = scalar_lea.hbm %s8, %s6611
          %s6613 = sshll.u32 %s6603, 4
          %s6614 = int_to_ptr.vmem [resolvable:$true] %s6613
          %6619 = dma.vmem_to_hbm [thread:$0]  %s6614, 4096, %s6612, %s6600, 128, 128, 8
        $region56: #{tpu_custom_call.1} parent=51 // pred_fallthru
          _
      $region52: #{tpu_custom_call.1} parent=5 // pred_fallthru
        _
      %p6620 = scmp.le.s32.totalorder 2, %s17
      // Predicated region
      $region57: #{tpu_custom_call.1} parent=5 // pred_check
        %p6621 = pneg %p6620
      $region58: #{tpu_custom_call.1} parent=5 // pred_check_branch
        %6623 = sbr.rel (%p6621) target = $region60
      $region59: #{tpu_custom_call.1} parent=5 // pred_region
        %s6624 = ssub.s32 %s17, 2
        // Predicated region
        $region61: #{tpu_custom_call.1} parent=59 // pred_check
          %p6625 = pneg %p219
        $region62: #{tpu_custom_call.1} parent=59 // pred_check_branch
          %6627 = sbr.rel (%p6625) target = $region64
        $region63: #{tpu_custom_call.1} parent=59 // pred_region
          %s6628 = sand.u32 %s204, 1
          %s6629 = scalar_lea.sflag [#allocation3], %s6628
          %s6630 = sand.u32 %s204, 1
          %s6631 = smul.addr %s6630, 256
          %s6632 = scalar_lea.vmem [#allocation2], %s6631
          %6633 = dma.done %s6629, 4096
        $region64: #{tpu_custom_call.1} parent=59 // pred_fallthru
          _
      $region60: #{tpu_custom_call.1} parent=5 // pred_fallthru
        _
    $region6: #{tpu_custom_call.1} parent=1 // loop_footer
      %s21 = sadd.s32 1, %s17
    $region7: #{tpu_custom_call.1} parent=1 // loop_footer_branch
      %16 = sbr.rel target = $region3
    $region8: #{tpu_custom_call.1} parent=1 // loop_exit
      _
    %6634 = vsyncpa [#allocation3], 1
    %s6635 = scalar_lea.sflag [#allocation3], 1
    %6636 = vsyncpa %s6635, 1

</llo_original>
